<compile_context>
chip_gen: v6e
topology: v6e:2x2x1
jax: 0.10.0
libtpu: 0.0.40
codegen_flags: <defaults>
</compile_context>

<pallas_src>
import math

import jax
import jax.numpy as jnp
from jax.experimental import pallas as pl
from jax.experimental.pallas import tpu as pltpu


def round_up(x, m):
    return ((x + m - 1) // m) * m


def pick_time_chunk(T, cap=32):
    """Largest divisor of T that is <= cap (amortizes ~600-cycle per-grid-step overhead)."""
    best = 1
    for c in range(1, min(T, cap) + 1):
        if T % c == 0:
            best = c
    return best


# ----------------------------------------------------------------------------
# Pallas kernel: fused bidirectional LSTM recurrence (one layer)
# ----------------------------------------------------------------------------
def fused_bidir_lstm_kernel(gih_ref, whh_ref, out_ref, h_scr, c_scr):
    """One (direction, time-chunk) grid step of a fused bidirectional LSTM layer.

    gih_ref : (TT, B, 4H)  precomputed x @ W_ih^T + b gate pre-activations (f32)
    whh_ref : (H, 4H)      recurrent weights for this direction (bf16, transposed)
    out_ref : (TT, B, H)   hidden-state outputs (bf16)
    h_scr   : (2, B, H)    per-direction hidden state carried across chunks (f32)
    c_scr   : (2, B, H)    per-direction cell state carried across chunks (f32)
    """
    d = pl.program_id(0)          # 0 = forward, 1 = backward (time-reversed)
    chunk = pl.program_id(1)
    TT, B, H = out_ref.shape

    # Carried state; at the first chunk of each direction start from zeros.
    h_prev = h_scr[pl.ds(d, 1)][0]
    c_prev = c_scr[pl.ds(d, 1)][0]
    start = chunk == 0
    h0 = jnp.where(start, jnp.zeros_like(h_prev), h_prev)
    c0 = jnp.where(start, jnp.zeros_like(c_prev), c_prev)

    def step(it, carry):
        h, c_state = carry
        # forward walks the chunk 0..TT-1, backward walks TT-1..0
        t = it + d * (TT - 1 - 2 * it)
        # Only the small h @ W_hh matmul remains on the sequential critical path.
        g = gih_ref[pl.ds(t, 1)][0] + jnp.dot(
            h.astype(jnp.bfloat16), whh_ref[...],
            preferred_element_type=jnp.float32)              # (B, 4H) f32
        # PyTorch gate ordering: i, f, g, o; slices are 128-lane aligned (H % 128 == 0).
        i_g = jax.nn.sigmoid(g[:, 0 * H:1 * H])
        f_g = jax.nn.sigmoid(g[:, 1 * H:2 * H])
        g_g = jnp.tanh(g[:, 2 * H:3 * H])
        o_g = jax.nn.sigmoid(g[:, 3 * H:4 * H])
        c_new = f_g * c_state + i_g * g_g
        h_new = o_g * jnp.tanh(c_new)
        out_ref[pl.ds(t, 1)] = h_new[None].astype(out_ref.dtype)
        return h_new, c_new

    h_f, c_f = jax.lax.fori_loop(0, TT, step, (h0, c0), unroll=True)
    h_scr[pl.ds(d, 1)] = h_f[None]
    c_scr[pl.ds(d, 1)] = c_f[None]


def bidir_lstm_layer(gih, w_hh, time_chunk):
    """Run both directions of one LSTM layer.

    gih  : (2, T, B, 4H) f32  gate pre-activations (direction-stacked)
    w_hh : (2, H, 4H)    bf16 recurrent weights (transposed, direction-stacked)
    returns (2, T, B, H) bf16 hidden states (index [1, t] is the backward state at
    original time t, matching torch's bidirectional output layout).
    """
    _, T, B, G = gih.shape
    H = G // 4
    TT = time_chunk
    nc = T // TT
    assert nc * TT == T

    def io_index(d, c):
        # forward touches chunk c, backward touches chunk nc-1-c (reversal via index_map,
        # no extra HBM pass).
        return (d, c + d * (nc - 1 - 2 * c), 0, 0)

    grid_spec = pltpu.PrefetchScalarGridSpec(
        num_scalar_prefetch=0,
        grid=(2, nc),
        in_specs=[
            pl.BlockSpec((None, TT, B, G), io_index),
            # NOTE: at realistic H the (H,4H) weights dominate VMEM; they could be
            # single-buffered (pipeline_mode) since only 2 distinct blocks exist.
            pl.BlockSpec((None, H, G), lambda d, c: (d, 0, 0)),
        ],
        out_specs=pl.BlockSpec((None, TT, B, H), io_index),
        scratch_shapes=[
            pltpu.VMEM((2, B, H), jnp.float32),   # per-direction h state
            pltpu.VMEM((2, B, H), jnp.float32),   # per-direction c state
        ],
    )
    return pl.pallas_call(
        fused_bidir_lstm_kernel,
        out_shape=jax.ShapeDtypeStruct((2, T, B, H), jnp.bfloat16),
        grid_spec=grid_spec,
        compiler_params=pltpu.CompilerParams(
            # directions are independent (per-direction scratch slices) -> v7x can split
            # them across its 2 TensorCores; time chunks are the sequential recurrence.
            dimension_semantics=("parallel", "arbitrary"),
            vmem_limit_bytes=64 * 1024 * 1024,
        ),
    )(gih, w_hh)


# ----------------------------------------------------------------------------
# Full forward pass
# ----------------------------------------------------------------------------
def lstm_net_forward(token_ids, params):
    """token_ids: (B, T) int32 -> (B, 1) float32."""
    B, T = token_ids.shape
    Hp = params["lstm"][0]["w_hh"].shape[1]        # padded hidden size (multiple of 128)
    Bp = round_up(max(B, 1), 16)                   # sublane-dense batch (bf16 stores)
    TT = pick_time_chunk(T)

    # Embedding lookup (gather stays in XLA) -> time-major (T, Bp, E), bf16 operands.
    emb = jnp.take(params["embedding"], token_ids, axis=0)        # (B, T, E)
    x = jnp.transpose(emb, (1, 0, 2))                             # (T, B, E)
    x = jnp.pad(x, ((0, 0), (0, Bp - B), (0, 0))).astype(jnp.bfloat16)

    h = None
    for lp in params["lstm"]:
        # Hoisted input projection: ONE big MXU matmul per layer covering both
        # directions and all timesteps (bias folded in here, not in the recurrence).
        if h is None:
            gih = jnp.einsum("tbe,deg->dtbg", x, lp["w_ih"],
                             preferred_element_type=jnp.float32)
        else:
            # Consumes the stacked-direction layout directly == matmul against the
            # concatenated [h_fwd | h_bwd] features, without materializing a concat.
            gih = jnp.einsum("ptbh,dphg->dtbg", h, lp["w_ih"],
                             preferred_element_type=jnp.float32)
        gih = gih + lp["bias"][:, None, None, :]                  # (2, T, Bp, 4Hp) f32
        h = bidir_lstm_layer(gih, lp["w_hh"], TT)                 # (2, T, Bp, Hp) bf16

    # torch x[:, -1, :] of the batch_first bidirectional output == [h_fwd[T-1], h_bwd[T-1]]
    h_last = h[:, T - 1, :B, :].astype(jnp.float32)               # (2, B, Hp)
    # Dropout -> identity (eval).  Linear(2H->1) + Sigmoid in plain JAX.
    logits = jnp.einsum("dbh,dh->b", h_last, params["cls_w"]) + params["cls_b"]
    return jax.nn.sigmoid(logits)[:, None]                        # (B, 1)


# ----------------------------------------------------------------------------
# Deterministic parameter construction (mirrors the PyTorch __init__ shapes),
# packed into the padded / transposed / direction-stacked device layout.
# ----------------------------------------------------------------------------
def make_params(key, vocab, emb_dim, hidden_dim, num_layers):
    H = hidden_dim
    Hp = round_up(H, 128)                          # lane-dense hidden size
    keys = list(jax.random.split(key, 3 + 8 * num_layers))
    kit = iter(keys)

    def xavier(k, shape):
        fan_out, fan_in = shape
        b = math.sqrt(6.0 / (fan_in + fan_out))
        return jax.random.uniform(k, shape, jnp.float32, -b, b)

    def pad_gate_blocks(w):
        """(4H, ...) -> (4Hp, ...): pad each of the i,f,g,o blocks from H to Hp with 0."""
        w4 = w.reshape((4, H) + w.shape[1:])
        pads = [(0, 0), (0, Hp - H)] + [(0, 0)] * (w.ndim - 1)
        return jnp.pad(w4, pads).reshape((4 * Hp,) + w.shape[1:])

    params = {"embedding": jax.random.normal(next(kit), (vocab, emb_dim), jnp.float32)}

    inv_sqrt_h = 1.0 / math.sqrt(H)
    layers = []
    for layer in range(num_layers):
        d_in = emb_dim if layer == 0 else 2 * H
        w_ih_l, w_hh_l, bias_l = [], [], []
        for _direction in range(2):
            w_ih = xavier(next(kit), (4 * H, d_in))
            w_hh = xavier(next(kit), (4 * H, H))
            b_ih = jax.random.uniform(next(kit), (4 * H,), jnp.float32,
                                      -inv_sqrt_h, inv_sqrt_h)
            b_hh = jax.random.uniform(next(kit), (4 * H,), jnp.float32,
                                      -inv_sqrt_h, inv_sqrt_h)

            w_ih_p = pad_gate_blocks(w_ih)                        # (4Hp, d_in)
            w_hh_p = pad_gate_blocks(w_hh)                        # (4Hp, H)
            w_hh_p = jnp.pad(w_hh_p, ((0, 0), (0, Hp - H)))       # (4Hp, Hp)
            bias_p = pad_gate_blocks(b_ih + b_hh)                 # (4Hp,)

            if layer == 0:
                w_ih_t = w_ih_p.T                                 # (E, 4Hp)
            else:
                # input features = [h_fwd | h_bwd]: split the 2H axis and pad each half.
                w3 = w_ih_p.reshape(4 * Hp, 2, H)
                w3 = jnp.pad(w3, ((0, 0), (0, 0), (0, Hp - H)))
                w_ih_t = jnp.transpose(w3, (1, 2, 0))             # (2, Hp, 4Hp)
            w_ih_l.append(w_ih_t.astype(jnp.bfloat16))
            w_hh_l.append(w_hh_p.T.astype(jnp.bfloat16))          # (Hp, 4Hp)
            bias_l.append(bias_p)
        layers.append({
            "w_ih": jnp.stack(w_ih_l),    # layer0: (2, E, 4Hp); else (2, 2, Hp, 4Hp) bf16
            "w_hh": jnp.stack(w_hh_l),    # (2, Hp, 4Hp) bf16
            "bias": jnp.stack(bias_l),    # (2, 4Hp) f32
        })
    params["lstm"] = layers

    cls_w = xavier(next(kit), (1, 2 * H))                         # torch Linear weight
    cls_w = jnp.pad(cls_w.reshape(2, H), ((0, 0), (0, Hp - H)))   # (2, Hp): [fwd; bwd]
    inv_sqrt_in = 1.0 / math.sqrt(2 * H)
    cls_b = jax.random.uniform(next(kit), (1,), jnp.float32, -inv_sqrt_in, inv_sqrt_in)
    params["cls_w"] = cls_w
    params["cls_b"] = cls_b
    return params


# ----------------------------------------------------------------------------
if __name__ == "__main__":
    VOCAB = 20
    EMB_DIM = 16
    HIDDEN_DIM = 32
    NUM_LAYERS = 2
    BATCH = 2
    SEQ = 8

    key = jax.random.PRNGKey(0)
    k_params, k_tokens = jax.random.split(key)

    params = make_params(k_params, VOCAB, EMB_DIM, HIDDEN_DIM, NUM_LAYERS)
    token_ids = jax.random.randint(k_tokens, (BATCH, SEQ), 0, VOCAB, dtype=jnp.int32)

    fwd = jax.jit(lstm_net_forward)
    out = jax.block_until_ready(fwd(token_ids, params))

    assert out.shape == (BATCH, 1), out.shape
    assert bool(jnp.all(jnp.isfinite(out)))
    assert bool(jnp.all((out >= 0.0) & (out <= 1.0)))
    print("KERNEL_OK")
</pallas_src>

<mosaic_0001>
module attributes {stable_mosaic.version = 11 : i64} {
  func.func @fused_bidir_lstm_kernel(%arg0: i32, %arg1: i32, %arg2: memref<1x8x16x512xf32, #tpu.memory_space<vmem>>, %arg3: memref<1x128x512xbf16, #tpu.memory_space<vmem>>, %arg4: memref<1x8x16x128xbf16, #tpu.memory_space<vmem>>, %arg5: memref<2x16x128xf32, #tpu.memory_space<vmem>>, %arg6: memref<2x16x128xf32, #tpu.memory_space<vmem>>) attributes {dimension_semantics = [#tpu.dimension_semantics<parallel>, #tpu.dimension_semantics<arbitrary>], iteration_bounds = array<i64: 2, 1>, scalar_prefetch = 0 : i64, scratch_operands = 2 : i64, tpu.core_type = #tpu.core_type<tc>, window_params = [{transform_indices = @transform_0, window_bounds = array<i64: 1, 8, 16, 512>}, {transform_indices = @transform_1, window_bounds = array<i64: 1, 128, 512>}, {transform_indices = @transform_2, window_bounds = array<i64: 1, 8, 16, 128>}]} {
    %0 = arith.index_cast %arg0 : i32 to index
    %c0 = arith.constant 0 : index
    %c0_0 = arith.constant 0 : index
    %1 = vector.load %arg5[%0, %c0, %c0_0] : memref<2x16x128xf32, #tpu.memory_space<vmem>>, vector<1x16x128xf32>
    %2 = vector.shape_cast %1 : vector<1x16x128xf32> to vector<16x128xf32>
    %3 = arith.index_cast %arg0 : i32 to index
    %c0_1 = arith.constant 0 : index
    %c0_2 = arith.constant 0 : index
    %4 = vector.load %arg6[%3, %c0_1, %c0_2] : memref<2x16x128xf32, #tpu.memory_space<vmem>>, vector<1x16x128xf32>
    %5 = vector.shape_cast %4 : vector<1x16x128xf32> to vector<16x128xf32>
    %c0_i32 = arith.constant 0 : i32
    %6 = arith.cmpi eq, %arg1, %c0_i32 : i32
    %cst = arith.constant 0.000000e+00 : f32
    %7 = vector.broadcast %cst : f32 to vector<16x128xf32>
    %8 = arith.select %6, %7, %2 : vector<16x128xf32>
    %cst_3 = arith.constant 0.000000e+00 : f32
    %9 = vector.broadcast %cst_3 : f32 to vector<16x128xf32>
    %10 = arith.select %6, %9, %5 : vector<16x128xf32>
    %c0_i32_4 = arith.constant 0 : i32
    %c2_i32 = arith.constant 2 : i32
    %11 = arith.muli %c2_i32, %c0_i32_4 : i32
    %c7_i32 = arith.constant 7 : i32
    %12 = arith.subi %c7_i32, %11 : i32
    %13 = arith.muli %arg0, %12 : i32
    %14 = arith.addi %c0_i32_4, %13 : i32
    %c0_5 = arith.constant 0 : index
    %15 = arith.index_cast %14 : i32 to index
    %c0_6 = arith.constant 0 : index
    %c0_7 = arith.constant 0 : index
    %16 = vector.load %arg2[%c0_5, %15, %c0_6, %c0_7] : memref<1x8x16x512xf32, #tpu.memory_space<vmem>>, vector<1x1x16x512xf32>
    %17 = vector.shape_cast %16 : vector<1x1x16x512xf32> to vector<1x16x512xf32>
    %18 = vector.shape_cast %17 : vector<1x16x512xf32> to vector<16x512xf32>
    %19 = arith.truncf %8 : vector<16x128xf32> to vector<16x128xbf16>
    %c0_8 = arith.constant 0 : index
    %c0_9 = arith.constant 0 : index
    %c0_10 = arith.constant 0 : index
    %20 = vector.load %arg3[%c0_8, %c0_9, %c0_10] : memref<1x128x512xbf16, #tpu.memory_space<vmem>>, vector<1x128x512xbf16>
    %21 = vector.shape_cast %20 : vector<1x128x512xbf16> to vector<128x512xbf16>
    %cst_11 = arith.constant dense<0.000000e+00> : vector<16x512xf32>
    %22 = tpu.matmul %19, %21, %cst_11 {dimension_numbers = #tpu.dot_dimension_numbers<[1], [0], [0], [1], [0, 0, 1, 1], [], []>} : vector<16x128xbf16>, vector<128x512xbf16>, vector<16x512xf32> -> vector<16x512xf32>
    %23 = arith.addf %18, %22 : vector<16x512xf32>
    %24 = vector.extract_strided_slice %23 {offsets = [0, 0], sizes = [16, 128], strides = [1, 1]} : vector<16x512xf32> to vector<16x128xf32>
    %25 = arith.negf %24 : vector<16x128xf32>
    %26 = math.exp %25 : vector<16x128xf32>
    %cst_12 = arith.constant 1.000000e+00 : f32
    %27 = vector.broadcast %cst_12 : f32 to vector<16x128xf32>
    %28 = arith.addf %27, %26 : vector<16x128xf32>
    %29 = arith.divf %27, %28 : vector<16x128xf32>
    %30 = vector.extract_strided_slice %23 {offsets = [0, 128], sizes = [16, 128], strides = [1, 1]} : vector<16x512xf32> to vector<16x128xf32>
    %31 = arith.negf %30 : vector<16x128xf32>
    %32 = math.exp %31 : vector<16x128xf32>
    %cst_13 = arith.constant 1.000000e+00 : f32
    %33 = vector.broadcast %cst_13 : f32 to vector<16x128xf32>
    %34 = arith.addf %33, %32 : vector<16x128xf32>
    %35 = arith.divf %33, %34 : vector<16x128xf32>
    %36 = vector.extract_strided_slice %23 {offsets = [0, 256], sizes = [16, 128], strides = [1, 1]} : vector<16x512xf32> to vector<16x128xf32>
    %37 = math.tanh %36 : vector<16x128xf32>
    %38 = vector.extract_strided_slice %23 {offsets = [0, 384], sizes = [16, 128], strides = [1, 1]} : vector<16x512xf32> to vector<16x128xf32>
    %39 = arith.negf %38 : vector<16x128xf32>
    %40 = math.exp %39 : vector<16x128xf32>
    %cst_14 = arith.constant 1.000000e+00 : f32
    %41 = vector.broadcast %cst_14 : f32 to vector<16x128xf32>
    %42 = arith.addf %41, %40 : vector<16x128xf32>
    %43 = arith.divf %41, %42 : vector<16x128xf32>
    %44 = arith.mulf %35, %10 : vector<16x128xf32>
    %45 = arith.mulf %29, %37 : vector<16x128xf32>
    %46 = arith.addf %44, %45 : vector<16x128xf32>
    %47 = math.tanh %46 : vector<16x128xf32>
    %48 = arith.mulf %43, %47 : vector<16x128xf32>
    %49 = vector.shape_cast %48 : vector<16x128xf32> to vector<1x16x128xf32>
    %50 = arith.truncf %49 : vector<1x16x128xf32> to vector<1x16x128xbf16>
    %c0_15 = arith.constant 0 : index
    %51 = arith.index_cast %14 : i32 to index
    %c0_16 = arith.constant 0 : index
    %c0_17 = arith.constant 0 : index
    %52 = vector.load %arg4[%c0_15, %51, %c0_16, %c0_17] : memref<1x8x16x128xbf16, #tpu.memory_space<vmem>>, vector<1x1x16x128xbf16>
    %53 = vector.shape_cast %52 : vector<1x1x16x128xbf16> to vector<1x16x128xbf16>
    %54 = vector.shape_cast %50 : vector<1x16x128xbf16> to vector<1x1x16x128xbf16>
    tpu.vector_store %arg4[%c0_15, %51, %c0_16, %c0_17], %54 {strides = array<i32>} : memref<1x8x16x128xbf16, #tpu.memory_space<vmem>>, vector<1x1x16x128xbf16>,
    %c1_i32 = arith.constant 1 : i32
    %c2_i32_18 = arith.constant 2 : i32
    %55 = arith.muli %c2_i32_18, %c1_i32 : i32
    %c7_i32_19 = arith.constant 7 : i32
    %56 = arith.subi %c7_i32_19, %55 : i32
    %57 = arith.muli %arg0, %56 : i32
    %58 = arith.addi %c1_i32, %57 : i32
    %c0_20 = arith.constant 0 : index
    %59 = arith.index_cast %58 : i32 to index
    %c0_21 = arith.constant 0 : index
    %c0_22 = arith.constant 0 : index
    %60 = vector.load %arg2[%c0_20, %59, %c0_21, %c0_22] : memref<1x8x16x512xf32, #tpu.memory_space<vmem>>, vector<1x1x16x512xf32>
    %61 = vector.shape_cast %60 : vector<1x1x16x512xf32> to vector<1x16x512xf32>
    %62 = vector.shape_cast %61 : vector<1x16x512xf32> to vector<16x512xf32>
    %63 = arith.truncf %48 : vector<16x128xf32> to vector<16x128xbf16>
    %c0_23 = arith.constant 0 : index
    %c0_24 = arith.constant 0 : index
    %c0_25 = arith.constant 0 : index
    %64 = vector.load %arg3[%c0_23, %c0_24, %c0_25] : memref<1x128x512xbf16, #tpu.memory_space<vmem>>, vector<1x128x512xbf16>
    %65 = vector.shape_cast %64 : vector<1x128x512xbf16> to vector<128x512xbf16>
    %cst_26 = arith.constant dense<0.000000e+00> : vector<16x512xf32>
    %66 = tpu.matmul %63, %65, %cst_26 {dimension_numbers = #tpu.dot_dimension_numbers<[1], [0], [0], [1], [0, 0, 1, 1], [], []>} : vector<16x128xbf16>, vector<128x512xbf16>, vector<16x512xf32> -> vector<16x512xf32>
    %67 = arith.addf %62, %66 : vector<16x512xf32>
    %68 = vector.extract_strided_slice %67 {offsets = [0, 0], sizes = [16, 128], strides = [1, 1]} : vector<16x512xf32> to vector<16x128xf32>
    %69 = arith.negf %68 : vector<16x128xf32>
    %70 = math.exp %69 : vector<16x128xf32>
    %cst_27 = arith.constant 1.000000e+00 : f32
    %71 = vector.broadcast %cst_27 : f32 to vector<16x128xf32>
    %72 = arith.addf %71, %70 : vector<16x128xf32>
    %73 = arith.divf %71, %72 : vector<16x128xf32>
    %74 = vector.extract_strided_slice %67 {offsets = [0, 128], sizes = [16, 128], strides = [1, 1]} : vector<16x512xf32> to vector<16x128xf32>
    %75 = arith.negf %74 : vector<16x128xf32>
    %76 = math.exp %75 : vector<16x128xf32>
    %cst_28 = arith.constant 1.000000e+00 : f32
    %77 = vector.broadcast %cst_28 : f32 to vector<16x128xf32>
    %78 = arith.addf %77, %76 : vector<16x128xf32>
    %79 = arith.divf %77, %78 : vector<16x128xf32>
    %80 = vector.extract_strided_slice %67 {offsets = [0, 256], sizes = [16, 128], strides = [1, 1]} : vector<16x512xf32> to vector<16x128xf32>
    %81 = math.tanh %80 : vector<16x128xf32>
    %82 = vector.extract_strided_slice %67 {offsets = [0, 384], sizes = [16, 128], strides = [1, 1]} : vector<16x512xf32> to vector<16x128xf32>
    %83 = arith.negf %82 : vector<16x128xf32>
    %84 = math.exp %83 : vector<16x128xf32>
    %cst_29 = arith.constant 1.000000e+00 : f32
    %85 = vector.broadcast %cst_29 : f32 to vector<16x128xf32>
    %86 = arith.addf %85, %84 : vector<16x128xf32>
    %87 = arith.divf %85, %86 : vector<16x128xf32>
    %88 = arith.mulf %79, %46 : vector<16x128xf32>
    %89 = arith.mulf %73, %81 : vector<16x128xf32>
    %90 = arith.addf %88, %89 : vector<16x128xf32>
    %91 = math.tanh %90 : vector<16x128xf32>
    %92 = arith.mulf %87, %91 : vector<16x128xf32>
    %93 = vector.shape_cast %92 : vector<16x128xf32> to vector<1x16x128xf32>
    %94 = arith.truncf %93 : vector<1x16x128xf32> to vector<1x16x128xbf16>
    %c0_30 = arith.constant 0 : index
    %95 = arith.index_cast %58 : i32 to index
    %c0_31 = arith.constant 0 : index
    %c0_32 = arith.constant 0 : index
    %96 = vector.load %arg4[%c0_30, %95, %c0_31, %c0_32] : memref<1x8x16x128xbf16, #tpu.memory_space<vmem>>, vector<1x1x16x128xbf16>
    %97 = vector.shape_cast %96 : vector<1x1x16x128xbf16> to vector<1x16x128xbf16>
    %98 = vector.shape_cast %94 : vector<1x16x128xbf16> to vector<1x1x16x128xbf16>
    tpu.vector_store %arg4[%c0_30, %95, %c0_31, %c0_32], %98 {strides = array<i32>} : memref<1x8x16x128xbf16, #tpu.memory_space<vmem>>, vector<1x1x16x128xbf16>,
    %c2_i32_33 = arith.constant 2 : i32
    %c2_i32_34 = arith.constant 2 : i32
    %99 = arith.muli %c2_i32_34, %c2_i32_33 : i32
    %c7_i32_35 = arith.constant 7 : i32
    %100 = arith.subi %c7_i32_35, %99 : i32
    %101 = arith.muli %arg0, %100 : i32
    %102 = arith.addi %c2_i32_33, %101 : i32
    %c0_36 = arith.constant 0 : index
    %103 = arith.index_cast %102 : i32 to index
    %c0_37 = arith.constant 0 : index
    %c0_38 = arith.constant 0 : index
    %104 = vector.load %arg2[%c0_36, %103, %c0_37, %c0_38] : memref<1x8x16x512xf32, #tpu.memory_space<vmem>>, vector<1x1x16x512xf32>
    %105 = vector.shape_cast %104 : vector<1x1x16x512xf32> to vector<1x16x512xf32>
    %106 = vector.shape_cast %105 : vector<1x16x512xf32> to vector<16x512xf32>
    %107 = arith.truncf %92 : vector<16x128xf32> to vector<16x128xbf16>
    %c0_39 = arith.constant 0 : index
    %c0_40 = arith.constant 0 : index
    %c0_41 = arith.constant 0 : index
    %108 = vector.load %arg3[%c0_39, %c0_40, %c0_41] : memref<1x128x512xbf16, #tpu.memory_space<vmem>>, vector<1x128x512xbf16>
    %109 = vector.shape_cast %108 : vector<1x128x512xbf16> to vector<128x512xbf16>
    %cst_42 = arith.constant dense<0.000000e+00> : vector<16x512xf32>
    %110 = tpu.matmul %107, %109, %cst_42 {dimension_numbers = #tpu.dot_dimension_numbers<[1], [0], [0], [1], [0, 0, 1, 1], [], []>} : vector<16x128xbf16>, vector<128x512xbf16>, vector<16x512xf32> -> vector<16x512xf32>
    %111 = arith.addf %106, %110 : vector<16x512xf32>
    %112 = vector.extract_strided_slice %111 {offsets = [0, 0], sizes = [16, 128], strides = [1, 1]} : vector<16x512xf32> to vector<16x128xf32>
    %113 = arith.negf %112 : vector<16x128xf32>
    %114 = math.exp %113 : vector<16x128xf32>
    %cst_43 = arith.constant 1.000000e+00 : f32
    %115 = vector.broadcast %cst_43 : f32 to vector<16x128xf32>
    %116 = arith.addf %115, %114 : vector<16x128xf32>
    %117 = arith.divf %115, %116 : vector<16x128xf32>
    %118 = vector.extract_strided_slice %111 {offsets = [0, 128], sizes = [16, 128], strides = [1, 1]} : vector<16x512xf32> to vector<16x128xf32>
    %119 = arith.negf %118 : vector<16x128xf32>
    %120 = math.exp %119 : vector<16x128xf32>
    %cst_44 = arith.constant 1.000000e+00 : f32
    %121 = vector.broadcast %cst_44 : f32 to vector<16x128xf32>
    %122 = arith.addf %121, %120 : vector<16x128xf32>
    %123 = arith.divf %121, %122 : vector<16x128xf32>
    %124 = vector.extract_strided_slice %111 {offsets = [0, 256], sizes = [16, 128], strides = [1, 1]} : vector<16x512xf32> to vector<16x128xf32>
    %125 = math.tanh %124 : vector<16x128xf32>
    %126 = vector.extract_strided_slice %111 {offsets = [0, 384], sizes = [16, 128], strides = [1, 1]} : vector<16x512xf32> to vector<16x128xf32>
    %127 = arith.negf %126 : vector<16x128xf32>
    %128 = math.exp %127 : vector<16x128xf32>
    %cst_45 = arith.constant 1.000000e+00 : f32
    %129 = vector.broadcast %cst_45 : f32 to vector<16x128xf32>
    %130 = arith.addf %129, %128 : vector<16x128xf32>
    %131 = arith.divf %129, %130 : vector<16x128xf32>
    %132 = arith.mulf %123, %90 : vector<16x128xf32>
    %133 = arith.mulf %117, %125 : vector<16x128xf32>
    %134 = arith.addf %132, %133 : vector<16x128xf32>
    %135 = math.tanh %134 : vector<16x128xf32>
    %136 = arith.mulf %131, %135 : vector<16x128xf32>
    %137 = vector.shape_cast %136 : vector<16x128xf32> to vector<1x16x128xf32>
    %138 = arith.truncf %137 : vector<1x16x128xf32> to vector<1x16x128xbf16>
    %c0_46 = arith.constant 0 : index
    %139 = arith.index_cast %102 : i32 to index
    %c0_47 = arith.constant 0 : index
    %c0_48 = arith.constant 0 : index
    %140 = vector.load %arg4[%c0_46, %139, %c0_47, %c0_48] : memref<1x8x16x128xbf16, #tpu.memory_space<vmem>>, vector<1x1x16x128xbf16>
    %141 = vector.shape_cast %140 : vector<1x1x16x128xbf16> to vector<1x16x128xbf16>
    %142 = vector.shape_cast %138 : vector<1x16x128xbf16> to vector<1x1x16x128xbf16>
    tpu.vector_store %arg4[%c0_46, %139, %c0_47, %c0_48], %142 {strides = array<i32>} : memref<1x8x16x128xbf16, #tpu.memory_space<vmem>>, vector<1x1x16x128xbf16>,
    %c3_i32 = arith.constant 3 : i32
    %c2_i32_49 = arith.constant 2 : i32
    %143 = arith.muli %c2_i32_49, %c3_i32 : i32
    %c7_i32_50 = arith.constant 7 : i32
    %144 = arith.subi %c7_i32_50, %143 : i32
    %145 = arith.muli %arg0, %144 : i32
    %146 = arith.addi %c3_i32, %145 : i32
    %c0_51 = arith.constant 0 : index
    %147 = arith.index_cast %146 : i32 to index
    %c0_52 = arith.constant 0 : index
    %c0_53 = arith.constant 0 : index
    %148 = vector.load %arg2[%c0_51, %147, %c0_52, %c0_53] : memref<1x8x16x512xf32, #tpu.memory_space<vmem>>, vector<1x1x16x512xf32>
    %149 = vector.shape_cast %148 : vector<1x1x16x512xf32> to vector<1x16x512xf32>
    %150 = vector.shape_cast %149 : vector<1x16x512xf32> to vector<16x512xf32>
    %151 = arith.truncf %136 : vector<16x128xf32> to vector<16x128xbf16>
    %c0_54 = arith.constant 0 : index
    %c0_55 = arith.constant 0 : index
    %c0_56 = arith.constant 0 : index
    %152 = vector.load %arg3[%c0_54, %c0_55, %c0_56] : memref<1x128x512xbf16, #tpu.memory_space<vmem>>, vector<1x128x512xbf16>
    %153 = vector.shape_cast %152 : vector<1x128x512xbf16> to vector<128x512xbf16>
    %cst_57 = arith.constant dense<0.000000e+00> : vector<16x512xf32>
    %154 = tpu.matmul %151, %153, %cst_57 {dimension_numbers = #tpu.dot_dimension_numbers<[1], [0], [0], [1], [0, 0, 1, 1], [], []>} : vector<16x128xbf16>, vector<128x512xbf16>, vector<16x512xf32> -> vector<16x512xf32>
    %155 = arith.addf %150, %154 : vector<16x512xf32>
    %156 = vector.extract_strided_slice %155 {offsets = [0, 0], sizes = [16, 128], strides = [1, 1]} : vector<16x512xf32> to vector<16x128xf32>
    %157 = arith.negf %156 : vector<16x128xf32>
    %158 = math.exp %157 : vector<16x128xf32>
    %cst_58 = arith.constant 1.000000e+00 : f32
    %159 = vector.broadcast %cst_58 : f32 to vector<16x128xf32>
    %160 = arith.addf %159, %158 : vector<16x128xf32>
    %161 = arith.divf %159, %160 : vector<16x128xf32>
    %162 = vector.extract_strided_slice %155 {offsets = [0, 128], sizes = [16, 128], strides = [1, 1]} : vector<16x512xf32> to vector<16x128xf32>
    %163 = arith.negf %162 : vector<16x128xf32>
    %164 = math.exp %163 : vector<16x128xf32>
    %cst_59 = arith.constant 1.000000e+00 : f32
    %165 = vector.broadcast %cst_59 : f32 to vector<16x128xf32>
    %166 = arith.addf %165, %164 : vector<16x128xf32>
    %167 = arith.divf %165, %166 : vector<16x128xf32>
    %168 = vector.extract_strided_slice %155 {offsets = [0, 256], sizes = [16, 128], strides = [1, 1]} : vector<16x512xf32> to vector<16x128xf32>
    %169 = math.tanh %168 : vector<16x128xf32>
    %170 = vector.extract_strided_slice %155 {offsets = [0, 384], sizes = [16, 128], strides = [1, 1]} : vector<16x512xf32> to vector<16x128xf32>
    %171 = arith.negf %170 : vector<16x128xf32>
    %172 = math.exp %171 : vector<16x128xf32>
    %cst_60 = arith.constant 1.000000e+00 : f32
    %173 = vector.broadcast %cst_60 : f32 to vector<16x128xf32>
    %174 = arith.addf %173, %172 : vector<16x128xf32>
    %175 = arith.divf %173, %174 : vector<16x128xf32>
    %176 = arith.mulf %167, %134 : vector<16x128xf32>
    %177 = arith.mulf %161, %169 : vector<16x128xf32>
    %178 = arith.addf %176, %177 : vector<16x128xf32>
    %179 = math.tanh %178 : vector<16x128xf32>
    %180 = arith.mulf %175, %179 : vector<16x128xf32>
    %181 = vector.shape_cast %180 : vector<16x128xf32> to vector<1x16x128xf32>
    %182 = arith.truncf %181 : vector<1x16x128xf32> to vector<1x16x128xbf16>
    %c0_61 = arith.constant 0 : index
    %183 = arith.index_cast %146 : i32 to index
    %c0_62 = arith.constant 0 : index
    %c0_63 = arith.constant 0 : index
    %184 = vector.load %arg4[%c0_61, %183, %c0_62, %c0_63] : memref<1x8x16x128xbf16, #tpu.memory_space<vmem>>, vector<1x1x16x128xbf16>
    %185 = vector.shape_cast %184 : vector<1x1x16x128xbf16> to vector<1x16x128xbf16>
    %186 = vector.shape_cast %182 : vector<1x16x128xbf16> to vector<1x1x16x128xbf16>
    tpu.vector_store %arg4[%c0_61, %183, %c0_62, %c0_63], %186 {strides = array<i32>} : memref<1x8x16x128xbf16, #tpu.memory_space<vmem>>, vector<1x1x16x128xbf16>,
    %c4_i32 = arith.constant 4 : i32
    %c2_i32_64 = arith.constant 2 : i32
    %187 = arith.muli %c2_i32_64, %c4_i32 : i32
    %c7_i32_65 = arith.constant 7 : i32
    %188 = arith.subi %c7_i32_65, %187 : i32
    %189 = arith.muli %arg0, %188 : i32
    %190 = arith.addi %c4_i32, %189 : i32
    %c0_66 = arith.constant 0 : index
    %191 = arith.index_cast %190 : i32 to index
    %c0_67 = arith.constant 0 : index
    %c0_68 = arith.constant 0 : index
    %192 = vector.load %arg2[%c0_66, %191, %c0_67, %c0_68] : memref<1x8x16x512xf32, #tpu.memory_space<vmem>>, vector<1x1x16x512xf32>
    %193 = vector.shape_cast %192 : vector<1x1x16x512xf32> to vector<1x16x512xf32>
    %194 = vector.shape_cast %193 : vector<1x16x512xf32> to vector<16x512xf32>
    %195 = arith.truncf %180 : vector<16x128xf32> to vector<16x128xbf16>
    %c0_69 = arith.constant 0 : index
    %c0_70 = arith.constant 0 : index
    %c0_71 = arith.constant 0 : index
    %196 = vector.load %arg3[%c0_69, %c0_70, %c0_71] : memref<1x128x512xbf16, #tpu.memory_space<vmem>>, vector<1x128x512xbf16>
    %197 = vector.shape_cast %196 : vector<1x128x512xbf16> to vector<128x512xbf16>
    %cst_72 = arith.constant dense<0.000000e+00> : vector<16x512xf32>
    %198 = tpu.matmul %195, %197, %cst_72 {dimension_numbers = #tpu.dot_dimension_numbers<[1], [0], [0], [1], [0, 0, 1, 1], [], []>} : vector<16x128xbf16>, vector<128x512xbf16>, vector<16x512xf32> -> vector<16x512xf32>
    %199 = arith.addf %194, %198 : vector<16x512xf32>
    %200 = vector.extract_strided_slice %199 {offsets = [0, 0], sizes = [16, 128], strides = [1, 1]} : vector<16x512xf32> to vector<16x128xf32>
    %201 = arith.negf %200 : vector<16x128xf32>
    %202 = math.exp %201 : vector<16x128xf32>
    %cst_73 = arith.constant 1.000000e+00 : f32
    %203 = vector.broadcast %cst_73 : f32 to vector<16x128xf32>
    %204 = arith.addf %203, %202 : vector<16x128xf32>
    %205 = arith.divf %203, %204 : vector<16x128xf32>
    %206 = vector.extract_strided_slice %199 {offsets = [0, 128], sizes = [16, 128], strides = [1, 1]} : vector<16x512xf32> to vector<16x128xf32>
    %207 = arith.negf %206 : vector<16x128xf32>
    %208 = math.exp %207 : vector<16x128xf32>
    %cst_74 = arith.constant 1.000000e+00 : f32
    %209 = vector.broadcast %cst_74 : f32 to vector<16x128xf32>
    %210 = arith.addf %209, %208 : vector<16x128xf32>
    %211 = arith.divf %209, %210 : vector<16x128xf32>
    %212 = vector.extract_strided_slice %199 {offsets = [0, 256], sizes = [16, 128], strides = [1, 1]} : vector<16x512xf32> to vector<16x128xf32>
    %213 = math.tanh %212 : vector<16x128xf32>
    %214 = vector.extract_strided_slice %199 {offsets = [0, 384], sizes = [16, 128], strides = [1, 1]} : vector<16x512xf32> to vector<16x128xf32>
    %215 = arith.negf %214 : vector<16x128xf32>
    %216 = math.exp %215 : vector<16x128xf32>
    %cst_75 = arith.constant 1.000000e+00 : f32
    %217 = vector.broadcast %cst_75 : f32 to vector<16x128xf32>
    %218 = arith.addf %217, %216 : vector<16x128xf32>
    %219 = arith.divf %217, %218 : vector<16x128xf32>
    %220 = arith.mulf %211, %178 : vector<16x128xf32>
    %221 = arith.mulf %205, %213 : vector<16x128xf32>
    %222 = arith.addf %220, %221 : vector<16x128xf32>
    %223 = math.tanh %222 : vector<16x128xf32>
    %224 = arith.mulf %219, %223 : vector<16x128xf32>
    %225 = vector.shape_cast %224 : vector<16x128xf32> to vector<1x16x128xf32>
    %226 = arith.truncf %225 : vector<1x16x128xf32> to vector<1x16x128xbf16>
    %c0_76 = arith.constant 0 : index
    %227 = arith.index_cast %190 : i32 to index
    %c0_77 = arith.constant 0 : index
    %c0_78 = arith.constant 0 : index
    %228 = vector.load %arg4[%c0_76, %227, %c0_77, %c0_78] : memref<1x8x16x128xbf16, #tpu.memory_space<vmem>>, vector<1x1x16x128xbf16>
    %229 = vector.shape_cast %228 : vector<1x1x16x128xbf16> to vector<1x16x128xbf16>
    %230 = vector.shape_cast %226 : vector<1x16x128xbf16> to vector<1x1x16x128xbf16>
    tpu.vector_store %arg4[%c0_76, %227, %c0_77, %c0_78], %230 {strides = array<i32>} : memref<1x8x16x128xbf16, #tpu.memory_space<vmem>>, vector<1x1x16x128xbf16>,
    %c5_i32 = arith.constant 5 : i32
    %c2_i32_79 = arith.constant 2 : i32
    %231 = arith.muli %c2_i32_79, %c5_i32 : i32
    %c7_i32_80 = arith.constant 7 : i32
    %232 = arith.subi %c7_i32_80, %231 : i32
    %233 = arith.muli %arg0, %232 : i32
    %234 = arith.addi %c5_i32, %233 : i32
    %c0_81 = arith.constant 0 : index
    %235 = arith.index_cast %234 : i32 to index
    %c0_82 = arith.constant 0 : index
    %c0_83 = arith.constant 0 : index
    %236 = vector.load %arg2[%c0_81, %235, %c0_82, %c0_83] : memref<1x8x16x512xf32, #tpu.memory_space<vmem>>, vector<1x1x16x512xf32>
    %237 = vector.shape_cast %236 : vector<1x1x16x512xf32> to vector<1x16x512xf32>
    %238 = vector.shape_cast %237 : vector<1x16x512xf32> to vector<16x512xf32>
    %239 = arith.truncf %224 : vector<16x128xf32> to vector<16x128xbf16>
    %c0_84 = arith.constant 0 : index
    %c0_85 = arith.constant 0 : index
    %c0_86 = arith.constant 0 : index
    %240 = vector.load %arg3[%c0_84, %c0_85, %c0_86] : memref<1x128x512xbf16, #tpu.memory_space<vmem>>, vector<1x128x512xbf16>
    %241 = vector.shape_cast %240 : vector<1x128x512xbf16> to vector<128x512xbf16>
    %cst_87 = arith.constant dense<0.000000e+00> : vector<16x512xf32>
    %242 = tpu.matmul %239, %241, %cst_87 {dimension_numbers = #tpu.dot_dimension_numbers<[1], [0], [0], [1], [0, 0, 1, 1], [], []>} : vector<16x128xbf16>, vector<128x512xbf16>, vector<16x512xf32> -> vector<16x512xf32>
    %243 = arith.addf %238, %242 : vector<16x512xf32>
    %244 = vector.extract_strided_slice %243 {offsets = [0, 0], sizes = [16, 128], strides = [1, 1]} : vector<16x512xf32> to vector<16x128xf32>
    %245 = arith.negf %244 : vector<16x128xf32>
    %246 = math.exp %245 : vector<16x128xf32>
    %cst_88 = arith.constant 1.000000e+00 : f32
    %247 = vector.broadcast %cst_88 : f32 to vector<16x128xf32>
    %248 = arith.addf %247, %246 : vector<16x128xf32>
    %249 = arith.divf %247, %248 : vector<16x128xf32>
    %250 = vector.extract_strided_slice %243 {offsets = [0, 128], sizes = [16, 128], strides = [1, 1]} : vector<16x512xf32> to vector<16x128xf32>
    %251 = arith.negf %250 : vector<16x128xf32>
    %252 = math.exp %251 : vector<16x128xf32>
    %cst_89 = arith.constant 1.000000e+00 : f32
    %253 = vector.broadcast %cst_89 : f32 to vector<16x128xf32>
    %254 = arith.addf %253, %252 : vector<16x128xf32>
    %255 = arith.divf %253, %254 : vector<16x128xf32>
    %256 = vector.extract_strided_slice %243 {offsets = [0, 256], sizes = [16, 128], strides = [1, 1]} : vector<16x512xf32> to vector<16x128xf32>
    %257 = math.tanh %256 : vector<16x128xf32>
    %258 = vector.extract_strided_slice %243 {offsets = [0, 384], sizes = [16, 128], strides = [1, 1]} : vector<16x512xf32> to vector<16x128xf32>
    %259 = arith.negf %258 : vector<16x128xf32>
    %260 = math.exp %259 : vector<16x128xf32>
    %cst_90 = arith.constant 1.000000e+00 : f32
    %261 = vector.broadcast %cst_90 : f32 to vector<16x128xf32>
    %262 = arith.addf %261, %260 : vector<16x128xf32>
    %263 = arith.divf %261, %262 : vector<16x128xf32>
    %264 = arith.mulf %255, %222 : vector<16x128xf32>
    %265 = arith.mulf %249, %257 : vector<16x128xf32>
    %266 = arith.addf %264, %265 : vector<16x128xf32>
    %267 = math.tanh %266 : vector<16x128xf32>
    %268 = arith.mulf %263, %267 : vector<16x128xf32>
    %269 = vector.shape_cast %268 : vector<16x128xf32> to vector<1x16x128xf32>
    %270 = arith.truncf %269 : vector<1x16x128xf32> to vector<1x16x128xbf16>
    %c0_91 = arith.constant 0 : index
    %271 = arith.index_cast %234 : i32 to index
    %c0_92 = arith.constant 0 : index
    %c0_93 = arith.constant 0 : index
    %272 = vector.load %arg4[%c0_91, %271, %c0_92, %c0_93] : memref<1x8x16x128xbf16, #tpu.memory_space<vmem>>, vector<1x1x16x128xbf16>
    %273 = vector.shape_cast %272 : vector<1x1x16x128xbf16> to vector<1x16x128xbf16>
    %274 = vector.shape_cast %270 : vector<1x16x128xbf16> to vector<1x1x16x128xbf16>
    tpu.vector_store %arg4[%c0_91, %271, %c0_92, %c0_93], %274 {strides = array<i32>} : memref<1x8x16x128xbf16, #tpu.memory_space<vmem>>, vector<1x1x16x128xbf16>,
    %c6_i32 = arith.constant 6 : i32
    %c2_i32_94 = arith.constant 2 : i32
    %275 = arith.muli %c2_i32_94, %c6_i32 : i32
    %c7_i32_95 = arith.constant 7 : i32
    %276 = arith.subi %c7_i32_95, %275 : i32
    %277 = arith.muli %arg0, %276 : i32
    %278 = arith.addi %c6_i32, %277 : i32
    %c0_96 = arith.constant 0 : index
    %279 = arith.index_cast %278 : i32 to index
    %c0_97 = arith.constant 0 : index
    %c0_98 = arith.constant 0 : index
    %280 = vector.load %arg2[%c0_96, %279, %c0_97, %c0_98] : memref<1x8x16x512xf32, #tpu.memory_space<vmem>>, vector<1x1x16x512xf32>
    %281 = vector.shape_cast %280 : vector<1x1x16x512xf32> to vector<1x16x512xf32>
    %282 = vector.shape_cast %281 : vector<1x16x512xf32> to vector<16x512xf32>
    %283 = arith.truncf %268 : vector<16x128xf32> to vector<16x128xbf16>
    %c0_99 = arith.constant 0 : index
    %c0_100 = arith.constant 0 : index
    %c0_101 = arith.constant 0 : index
    %284 = vector.load %arg3[%c0_99, %c0_100, %c0_101] : memref<1x128x512xbf16, #tpu.memory_space<vmem>>, vector<1x128x512xbf16>
    %285 = vector.shape_cast %284 : vector<1x128x512xbf16> to vector<128x512xbf16>
    %cst_102 = arith.constant dense<0.000000e+00> : vector<16x512xf32>
    %286 = tpu.matmul %283, %285, %cst_102 {dimension_numbers = #tpu.dot_dimension_numbers<[1], [0], [0], [1], [0, 0, 1, 1], [], []>} : vector<16x128xbf16>, vector<128x512xbf16>, vector<16x512xf32> -> vector<16x512xf32>
    %287 = arith.addf %282, %286 : vector<16x512xf32>
    %288 = vector.extract_strided_slice %287 {offsets = [0, 0], sizes = [16, 128], strides = [1, 1]} : vector<16x512xf32> to vector<16x128xf32>
    %289 = arith.negf %288 : vector<16x128xf32>
    %290 = math.exp %289 : vector<16x128xf32>
    %cst_103 = arith.constant 1.000000e+00 : f32
    %291 = vector.broadcast %cst_103 : f32 to vector<16x128xf32>
    %292 = arith.addf %291, %290 : vector<16x128xf32>
    %293 = arith.divf %291, %292 : vector<16x128xf32>
    %294 = vector.extract_strided_slice %287 {offsets = [0, 128], sizes = [16, 128], strides = [1, 1]} : vector<16x512xf32> to vector<16x128xf32>
    %295 = arith.negf %294 : vector<16x128xf32>
    %296 = math.exp %295 : vector<16x128xf32>
    %cst_104 = arith.constant 1.000000e+00 : f32
    %297 = vector.broadcast %cst_104 : f32 to vector<16x128xf32>
    %298 = arith.addf %297, %296 : vector<16x128xf32>
    %299 = arith.divf %297, %298 : vector<16x128xf32>
    %300 = vector.extract_strided_slice %287 {offsets = [0, 256], sizes = [16, 128], strides = [1, 1]} : vector<16x512xf32> to vector<16x128xf32>
    %301 = math.tanh %300 : vector<16x128xf32>
    %302 = vector.extract_strided_slice %287 {offsets = [0, 384], sizes = [16, 128], strides = [1, 1]} : vector<16x512xf32> to vector<16x128xf32>
    %303 = arith.negf %302 : vector<16x128xf32>
    %304 = math.exp %303 : vector<16x128xf32>
    %cst_105 = arith.constant 1.000000e+00 : f32
    %305 = vector.broadcast %cst_105 : f32 to vector<16x128xf32>
    %306 = arith.addf %305, %304 : vector<16x128xf32>
    %307 = arith.divf %305, %306 : vector<16x128xf32>
    %308 = arith.mulf %299, %266 : vector<16x128xf32>
    %309 = arith.mulf %293, %301 : vector<16x128xf32>
    %310 = arith.addf %308, %309 : vector<16x128xf32>
    %311 = math.tanh %310 : vector<16x128xf32>
    %312 = arith.mulf %307, %311 : vector<16x128xf32>
    %313 = vector.shape_cast %312 : vector<16x128xf32> to vector<1x16x128xf32>
    %314 = arith.truncf %313 : vector<1x16x128xf32> to vector<1x16x128xbf16>
    %c0_106 = arith.constant 0 : index
    %315 = arith.index_cast %278 : i32 to index
    %c0_107 = arith.constant 0 : index
    %c0_108 = arith.constant 0 : index
    %316 = vector.load %arg4[%c0_106, %315, %c0_107, %c0_108] : memref<1x8x16x128xbf16, #tpu.memory_space<vmem>>, vector<1x1x16x128xbf16>
    %317 = vector.shape_cast %316 : vector<1x1x16x128xbf16> to vector<1x16x128xbf16>
    %318 = vector.shape_cast %314 : vector<1x16x128xbf16> to vector<1x1x16x128xbf16>
    tpu.vector_store %arg4[%c0_106, %315, %c0_107, %c0_108], %318 {strides = array<i32>} : memref<1x8x16x128xbf16, #tpu.memory_space<vmem>>, vector<1x1x16x128xbf16>,
    %c7_i32_109 = arith.constant 7 : i32
    %c2_i32_110 = arith.constant 2 : i32
    %319 = arith.muli %c2_i32_110, %c7_i32_109 : i32
    %c7_i32_111 = arith.constant 7 : i32
    %320 = arith.subi %c7_i32_111, %319 : i32
    %321 = arith.muli %arg0, %320 : i32
    %322 = arith.addi %c7_i32_109, %321 : i32
    %c0_112 = arith.constant 0 : index
    %323 = arith.index_cast %322 : i32 to index
    %c0_113 = arith.constant 0 : index
    %c0_114 = arith.constant 0 : index
    %324 = vector.load %arg2[%c0_112, %323, %c0_113, %c0_114] : memref<1x8x16x512xf32, #tpu.memory_space<vmem>>, vector<1x1x16x512xf32>
    %325 = vector.shape_cast %324 : vector<1x1x16x512xf32> to vector<1x16x512xf32>
    %326 = vector.shape_cast %325 : vector<1x16x512xf32> to vector<16x512xf32>
    %327 = arith.truncf %312 : vector<16x128xf32> to vector<16x128xbf16>
    %c0_115 = arith.constant 0 : index
    %c0_116 = arith.constant 0 : index
    %c0_117 = arith.constant 0 : index
    %328 = vector.load %arg3[%c0_115, %c0_116, %c0_117] : memref<1x128x512xbf16, #tpu.memory_space<vmem>>, vector<1x128x512xbf16>
    %329 = vector.shape_cast %328 : vector<1x128x512xbf16> to vector<128x512xbf16>
    %cst_118 = arith.constant dense<0.000000e+00> : vector<16x512xf32>
    %330 = tpu.matmul %327, %329, %cst_118 {dimension_numbers = #tpu.dot_dimension_numbers<[1], [0], [0], [1], [0, 0, 1, 1], [], []>} : vector<16x128xbf16>, vector<128x512xbf16>, vector<16x512xf32> -> vector<16x512xf32>
    %331 = arith.addf %326, %330 : vector<16x512xf32>
    %332 = vector.extract_strided_slice %331 {offsets = [0, 0], sizes = [16, 128], strides = [1, 1]} : vector<16x512xf32> to vector<16x128xf32>
    %333 = arith.negf %332 : vector<16x128xf32>
    %334 = math.exp %333 : vector<16x128xf32>
    %cst_119 = arith.constant 1.000000e+00 : f32
    %335 = vector.broadcast %cst_119 : f32 to vector<16x128xf32>
    %336 = arith.addf %335, %334 : vector<16x128xf32>
    %337 = arith.divf %335, %336 : vector<16x128xf32>
    %338 = vector.extract_strided_slice %331 {offsets = [0, 128], sizes = [16, 128], strides = [1, 1]} : vector<16x512xf32> to vector<16x128xf32>
    %339 = arith.negf %338 : vector<16x128xf32>
    %340 = math.exp %339 : vector<16x128xf32>
    %cst_120 = arith.constant 1.000000e+00 : f32
    %341 = vector.broadcast %cst_120 : f32 to vector<16x128xf32>
    %342 = arith.addf %341, %340 : vector<16x128xf32>
    %343 = arith.divf %341, %342 : vector<16x128xf32>
    %344 = vector.extract_strided_slice %331 {offsets = [0, 256], sizes = [16, 128], strides = [1, 1]} : vector<16x512xf32> to vector<16x128xf32>
    %345 = math.tanh %344 : vector<16x128xf32>
    %346 = vector.extract_strided_slice %331 {offsets = [0, 384], sizes = [16, 128], strides = [1, 1]} : vector<16x512xf32> to vector<16x128xf32>
    %347 = arith.negf %346 : vector<16x128xf32>
    %348 = math.exp %347 : vector<16x128xf32>
    %cst_121 = arith.constant 1.000000e+00 : f32
    %349 = vector.broadcast %cst_121 : f32 to vector<16x128xf32>
    %350 = arith.addf %349, %348 : vector<16x128xf32>
    %351 = arith.divf %349, %350 : vector<16x128xf32>
    %352 = arith.mulf %343, %310 : vector<16x128xf32>
    %353 = arith.mulf %337, %345 : vector<16x128xf32>
    %354 = arith.addf %352, %353 : vector<16x128xf32>
    %355 = math.tanh %354 : vector<16x128xf32>
    %356 = arith.mulf %351, %355 : vector<16x128xf32>
    %357 = vector.shape_cast %356 : vector<16x128xf32> to vector<1x16x128xf32>
    %358 = arith.truncf %357 : vector<1x16x128xf32> to vector<1x16x128xbf16>
    %c0_122 = arith.constant 0 : index
    %359 = arith.index_cast %322 : i32 to index
    %c0_123 = arith.constant 0 : index
    %c0_124 = arith.constant 0 : index
    %360 = vector.load %arg4[%c0_122, %359, %c0_123, %c0_124] : memref<1x8x16x128xbf16, #tpu.memory_space<vmem>>, vector<1x1x16x128xbf16>
    %361 = vector.shape_cast %360 : vector<1x1x16x128xbf16> to vector<1x16x128xbf16>
    %362 = vector.shape_cast %358 : vector<1x16x128xbf16> to vector<1x1x16x128xbf16>
    tpu.vector_store %arg4[%c0_122, %359, %c0_123, %c0_124], %362 {strides = array<i32>} : memref<1x8x16x128xbf16, #tpu.memory_space<vmem>>, vector<1x1x16x128xbf16>,
    %c8_i32 = arith.constant 8 : i32
    %363 = vector.shape_cast %356 : vector<16x128xf32> to vector<1x16x128xf32>
    %364 = arith.index_cast %arg0 : i32 to index
    %c0_125 = arith.constant 0 : index
    %c0_126 = arith.constant 0 : index
    %365 = vector.load %arg5[%364, %c0_125, %c0_126] : memref<2x16x128xf32, #tpu.memory_space<vmem>>, vector<1x16x128xf32>
    tpu.vector_store %arg5[%364, %c0_125, %c0_126], %363 {strides = array<i32>} : memref<2x16x128xf32, #tpu.memory_space<vmem>>, vector<1x16x128xf32>,
    %366 = vector.shape_cast %354 : vector<16x128xf32> to vector<1x16x128xf32>
    %367 = arith.index_cast %arg0 : i32 to index
    %c0_127 = arith.constant 0 : index
    %c0_128 = arith.constant 0 : index
    %368 = vector.load %arg6[%367, %c0_127, %c0_128] : memref<2x16x128xf32, #tpu.memory_space<vmem>>, vector<1x16x128xf32>
    tpu.vector_store %arg6[%367, %c0_127, %c0_128], %366 {strides = array<i32>} : memref<2x16x128xf32, #tpu.memory_space<vmem>>, vector<1x16x128xf32>,
    return
  }
  func.func @transform_0(%arg0: i32, %arg1: i32) -> (i32, i32, i32, i32) {
    %c2_i32 = arith.constant 2 : i32
    %0 = arith.muli %c2_i32, %arg1 : i32
    %c0_i32 = arith.constant 0 : i32
    %1 = arith.subi %c0_i32, %0 : i32
    %2 = arith.muli %arg0, %1 : i32
    %3 = arith.addi %arg1, %2 : i32
    %c0_i32_0 = arith.constant 0 : i32
    %c0_i32_1 = arith.constant 0 : i32
    %c0_i32_2 = arith.constant 0 : i32
    return %arg0, %3, %c0_i32_0, %c0_i32_1 : i32, i32, i32, i32
  }
  func.func @transform_1(%arg0: i32, %arg1: i32) -> (i32, i32, i32) {
    %c0_i32 = arith.constant 0 : i32
    %c0_i32_0 = arith.constant 0 : i32
    %c0_i32_1 = arith.constant 0 : i32
    return %arg0, %c0_i32, %c0_i32_0 : i32, i32, i32
  }
  func.func @transform_2(%arg0: i32, %arg1: i32) -> (i32, i32, i32, i32) {
    %c2_i32 = arith.constant 2 : i32
    %0 = arith.muli %c2_i32, %arg1 : i32
    %c0_i32 = arith.constant 0 : i32
    %1 = arith.subi %c0_i32, %0 : i32
    %2 = arith.muli %arg0, %1 : i32
    %3 = arith.addi %arg1, %2 : i32
    %c0_i32_0 = arith.constant 0 : i32
    %c0_i32_1 = arith.constant 0 : i32
    %c0_i32_2 = arith.constant 0 : i32
    return %arg0, %3, %c0_i32_0, %c0_i32_1 : i32, i32, i32, i32
  }
}

</mosaic_0001>

<llo_original>
// kernel: lstm_net_forward.2
$region0: #{lstm_net_forward.2}
  #allocation0 [shape = 'u32[]', space=smem, size = 0x4, offset = 0x4, fixed_abs, tag = 'smem constant byte address 0x4 - core index']
  #allocation1 [shape = 'u32[144,128]{1,0:T(1,128)}', space=vmem, size = 0x12000, scoped, tag = 'internal scratch']
  #allocation2 [shape = 'f32[2,16,128]{2,1,0:T(8,128)}', space=vmem, size = 0x4000, scoped, tag = 'scratch operand']
  #allocation3 [shape = 'f32[2,16,128]{2,1,0:T(8,128)}', space=vmem, size = 0x4000, scoped, tag = 'scratch operand']
  %s0 = inlined_call_operand.vmem [shape: f32[2,8,16,512], index: 0, kind: input, shape index: {}]
  %s1 = inlined_call_operand.vmem [shape: bf16[2,128,512], index: 1, kind: input, shape index: {}]
  %s2 = inlined_call_operand.vmem [shape: bf16[2,8,16,128], index: 2, kind: output, shape index: {}]
  %s3 = sld [smem:[#allocation0]]
  $region41: #{lstm_net_forward.2} parent=0
    _
  %s5 = ssub.s32 1, %s3
  %s6 = scalar_select 0, %s5, %s3
  loop: start=0, step=1, limit=4
  $region2: #{lstm_net_forward.2} parent=0 // loop_pre_header
    _
  $region3: #{lstm_net_forward.2} parent=0 // loop_header
    %s8 = sphi 0, %s12
    %p9 = scmp.ge.s32.totalorder %s8, 4
    %s15 = sphi 0, %s27
    %s16 = sphi 0, %s23
    %s17 = sphi 0, %s15
    %s18 = sphi 0, %s16
    %s19 = sphi 0, %s17
    %s20 = sphi 0, %s18
    %s40 = sphi 0, %s42
    %s43 = sphi 0, %s40
    %s44 = sphi 0, %s43
    %s60 = sphi 0, %s44
    %s66 = sphi 0, %s68
    %s69 = sphi 0, %s66
    %s70 = sphi 0, %s69
    %s86 = sphi 0, %s70
    %s102 = sphi 0, %s104
    %s105 = sphi 0, %s102
    %s106 = sphi 0, %s105
    %s122 = sphi 0, %s106
  $region4: #{lstm_net_forward.2} parent=0 // loop_header_branch
    %11 = sbr.rel (%p9) target = $region8
  $region5: #{lstm_net_forward.2} parent=0 // loop_body
    %s13 = ssub.s32 %s8, 1
    %s14 = ssub.s32 %s8, 2
    %s21 = sadd.s32 1, %s16
    %p22 = scmp.ge.s32.totalorder %s21, 1
    %s23 = scalar_select %p22, 0, %s21
    %s24 = sadd.s32 1, %s15
    %s25 = scalar_select %p22, %s24, %s15
    %p26 = scmp.ge.s32.totalorder %s25, 2
    %s27 = scalar_select %p26, 0, %s25
    %s28 = smul.u32 %s16, 2
    %s29 = ssub.s32 0, %s28
    %s30 = smul.u32 %s15, %s29
    %s31 = sadd.s32 %s16, %s30
    %s32 = smul.u32 %s23, 2
    %s33 = ssub.s32 0, %s32
    %s34 = smul.u32 %s27, %s33
    %s35 = sadd.s32 %s23, %s34
    %s36 = ssub.s32 %s15, %s27
    %s37 = ssub.s32 %s31, %s35
    %s38 = sor.u32 %s36, %s37
    %p39 = scmp.eq.s32.totalorder %s38, 0
    %s41 = sadd.s32 %s40, 1
    %s42 = scalar_select %p39, %s40, %s41
    %p45 = pneg %p39
    %p46 = scmp.eq.s32.totalorder %s8, 1
    %p47 = por %p45, %p46
    %p48 = scmp.ne.s32.totalorder %s40, %s43
    %p49 = scmp.eq.s32.totalorder %s8, 0
    %p50 = por %p48, %p49
    %p51 = scmp.ne.s32.totalorder %s40, %s43
    %p52 = scmp.eq.s32.totalorder %s13, 1
    %p53 = por %p51, %p52
    %p54 = scmp.ne.s32.totalorder %s43, %s44
    %p55 = scmp.eq.s32.totalorder %s13, 0
    %p56 = por %p54, %p55
    %p57 = scmp.ne.s32.totalorder %s43, %s44
    %p58 = scmp.eq.s32.totalorder %s14, 1
    %p59 = por %p57, %p58
    %p61 = scmp.ne.s32.totalorder %s44, %s60
    %p62 = scmp.eq.s32.totalorder %s14, 0
    %p63 = por %p61, %p62
    %s64 = ssub.s32 %s15, %s27
    %p65 = scmp.eq.s32.totalorder %s64, 0
    %s67 = sadd.s32 %s66, 1
    %s68 = scalar_select %p65, %s66, %s67
    %p71 = pneg %p65
    %p72 = scmp.eq.s32.totalorder %s8, 1
    %p73 = por %p71, %p72
    %p74 = scmp.ne.s32.totalorder %s66, %s69
    %p75 = scmp.eq.s32.totalorder %s8, 0
    %p76 = por %p74, %p75
    %p77 = scmp.ne.s32.totalorder %s66, %s69
    %p78 = scmp.eq.s32.totalorder %s13, 1
    %p79 = por %p77, %p78
    %p80 = scmp.ne.s32.totalorder %s69, %s70
    %p81 = scmp.eq.s32.totalorder %s13, 0
    %p82 = por %p80, %p81
    %p83 = scmp.ne.s32.totalorder %s69, %s70
    %p84 = scmp.eq.s32.totalorder %s14, 1
    %p85 = por %p83, %p84
    %p87 = scmp.ne.s32.totalorder %s70, %s86
    %p88 = scmp.eq.s32.totalorder %s14, 0
    %p89 = por %p87, %p88
    %s90 = smul.u32 %s16, 2
    %s91 = ssub.s32 0, %s90
    %s92 = smul.u32 %s15, %s91
    %s93 = sadd.s32 %s16, %s92
    %s94 = smul.u32 %s23, 2
    %s95 = ssub.s32 0, %s94
    %s96 = smul.u32 %s27, %s95
    %s97 = sadd.s32 %s23, %s96
    %s98 = ssub.s32 %s15, %s27
    %s99 = ssub.s32 %s93, %s97
    %s100 = sor.u32 %s98, %s99
    %p101 = scmp.eq.s32.totalorder %s100, 0
    %s103 = sadd.s32 %s102, 1
    %s104 = scalar_select %p101, %s102, %s103
    %p107 = pneg %p101
    %p108 = scmp.eq.s32.totalorder %s8, 1
    %p109 = por %p107, %p108
    %p110 = scmp.ne.s32.totalorder %s102, %s105
    %p111 = scmp.eq.s32.totalorder %s8, 0
    %p112 = por %p110, %p111
    %p113 = scmp.ne.s32.totalorder %s102, %s105
    %p114 = scmp.eq.s32.totalorder %s13, 1
    %p115 = por %p113, %p114
    %p116 = scmp.ne.s32.totalorder %s105, %s106
    %p117 = scmp.eq.s32.totalorder %s13, 0
    %p118 = por %p116, %p117
    %p119 = scmp.ne.s32.totalorder %s105, %s106
    %p120 = scmp.eq.s32.totalorder %s14, 1
    %p121 = por %p119, %p120
    %p123 = scmp.ne.s32.totalorder %s106, %s122
    %p124 = scmp.eq.s32.totalorder %s14, 0
    %p125 = por %p123, %p124
    %p126 = scmp.le.s32.totalorder 1, %s8
    %p127 = scmp.lt.s32.totalorder %s8, 3
    %p128 = pnand %p126, %p127
    %p129 = pneg %p128
    // Predicated region
    $region9: #{lstm_net_forward.2} parent=5 // pred_check
      _
    $region10: #{lstm_net_forward.2} parent=5 // pred_check_branch
      %131 = sbr.rel (%p128) target = $region12
    $region11: #{lstm_net_forward.2} parent=5 // pred_region
      %s132 = ssub.s32 %s8, 1
    $region12: #{lstm_net_forward.2} parent=5 // pred_fallthru
      _
    %p133 = scmp.lt.s32.totalorder %s8, 2
    // Predicated region
    $region13: #{lstm_net_forward.2} parent=5 // pred_check
      %p134 = pneg %p133
    $region14: #{lstm_net_forward.2} parent=5 // pred_check_branch
      %136 = sbr.rel (%p134) target = $region16
    $region15: #{lstm_net_forward.2} parent=5 // pred_region
      // Predicated region
      $region17: #{lstm_net_forward.2} parent=15 // pred_check
        %p137 = pneg %p50
      $region18: #{lstm_net_forward.2} parent=15 // pred_check_branch
        %139 = sbr.rel (%p137) target = $region20
      $region19: #{lstm_net_forward.2} parent=15 // pred_region
        %s140 = smul.u32 %s16, 2
        %s141 = ssub.s32 0, %s140
        %s142 = smul.u32 %s15, %s141
        %s143 = sadd.s32 %s16, %s142
        %s144 = smul.u32 8, %s143
        %p145 = scmp.lt.s32.totalorder %s15, 1
        %s146 = scalar_select %p145, %s15, 1
        %p147 = scmp.lt.s32.totalorder %s144, 7
        %s148 = scalar_select %p147, %s144, 7
        %s149 = smul.addr %s148, 8
        %s150 = smul.addr %s146, 64
        %s151 = sadd.s32 %s149, %s150
        %s152 = smul.addr %s151, 8
        %s153 = scalar_lea.vmem %s0, %s152
        %s154 = smul.u32 %s16, 2
        %s155 = ssub.s32 0, %s154
        %s156 = smul.u32 %s15, %s155
        %s157 = sadd.s32 %s16, %s156
        %s158 = smul.u32 8, %s157
      $region20: #{lstm_net_forward.2} parent=15 // pred_fallthru
        _
      // Predicated region
      $region21: #{lstm_net_forward.2} parent=15 // pred_check
        %p159 = pneg %p76
      $region22: #{lstm_net_forward.2} parent=15 // pred_check_branch
        %161 = sbr.rel (%p159) target = $region24
      $region23: #{lstm_net_forward.2} parent=15 // pred_region
        %p162 = scmp.lt.s32.totalorder %s15, 1
        %s163 = scalar_select %p162, %s15, 1
        %s164 = smul.addr %s163, 64
        %s165 = smul.addr %s164, 4
        %s166 = scalar_lea.vmem %s1, %s165
      $region24: #{lstm_net_forward.2} parent=15 // pred_fallthru
        _
    $region16: #{lstm_net_forward.2} parent=5 // pred_fallthru
      _
    %p167 = scmp.le.s32.totalorder 1, %s8
    %p168 = scmp.lt.s32.totalorder %s8, 3
    %p169 = pnand %p167, %p168
    %p170 = pneg %p169
    // Predicated region
    $region25: #{lstm_net_forward.2} parent=5 // pred_check
      _
    $region26: #{lstm_net_forward.2} parent=5 // pred_check_branch
      %172 = sbr.rel (%p169) target = $region28
    $region27: #{lstm_net_forward.2} parent=5 // pred_region
      %s173 = ssub.s32 %s8, 1
      %s174 = smul.u32 %s18, 2
      %s175 = ssub.s32 0, %s174
      %s176 = smul.u32 %s17, %s175
      %s177 = sadd.s32 %s18, %s176
      %s178 = smul.u32 8, %s177
      %p179 = scmp.lt.s32.totalorder %s17, 1
      %s180 = scalar_select %p179, %s17, 1
      %p181 = scmp.lt.s32.totalorder %s178, 7
      %s182 = scalar_select %p181, %s178, 7
      %s183 = smul.addr %s182, 8
      %s184 = smul.addr %s180, 64
      %s185 = sadd.s32 %s183, %s184
      %s186 = smul.addr %s185, 8
      %s187 = scalar_lea.vmem %s0, %s186
      %p188 = pneg %p56
      %p189 = pneg %p53
      %p190 = scmp.lt.s32.totalorder %s17, 1
      %s191 = scalar_select %p190, %s17, 1
      %s192 = smul.addr %s191, 64
      %s193 = smul.addr %s192, 4
      %s194 = scalar_lea.vmem %s1, %s193
      %p195 = pneg %p82
      %p196 = pneg %p79
      %p197 = pneg %p118
      %p198 = pneg %p115
      %s199 = smul.u32 %s18, 2
      %s200 = ssub.s32 0, %s199
      %s201 = smul.u32 %s17, %s200
      %s202 = sadd.s32 %s18, %s201
      %s203 = smul.u32 8, %s202
      %p204 = scmp.lt.s32.totalorder %s17, 1
      %s205 = scalar_select %p204, %s17, 1
      %p206 = scmp.lt.s32.totalorder %s203, 7
      %s207 = scalar_select %p206, %s203, 7
      %s208 = smul.addr %s207, 2
      %s209 = smul.addr %s205, 16
      %s210 = sadd.s32 %s208, %s209
      %s211 = smul.addr %s210, 4
      %s212 = scalar_lea.vmem %s2, %s211
      %s213 = smul.u32 %s18, 2
      %s214 = ssub.s32 0, %s213
      %s215 = smul.u32 %s17, %s214
      %s216 = sadd.s32 %s18, %s215
      %s217 = smul.u32 8, %s216
      %p218 = scmp.lt.s32.totalorder %s17, 1
      %s219 = scalar_select %p218, %s17, 1
      %p220 = scmp.lt.s32.totalorder %s217, 7
      %s221 = scalar_select %p220, %s217, 7
      %s222 = smul.addr %s221, 8
      %s223 = smul.addr %s219, 64
      %s224 = sadd.s32 %s222, %s223
      %s225 = smul.addr %s224, 8
      %s226 = scalar_lea.vmem %s0, %s225
      %s227 = smul.u32 %s18, 2
      %s228 = ssub.s32 0, %s227
      %s229 = smul.u32 %s17, %s228
      %s230 = sadd.s32 %s18, %s229
      %s231 = smul.u32 8, %s230
      %p232 = scmp.lt.s32.totalorder %s17, 1
      %s233 = scalar_select %p232, %s17, 1
      %s234 = smul.addr %s233, 64
      %s235 = smul.addr %s234, 4
      %s236 = scalar_lea.vmem %s1, %s235
      %s237 = smul.u32 %s18, 2
      %s238 = ssub.s32 0, %s237
      %s239 = smul.u32 %s17, %s238
      %s240 = sadd.s32 %s18, %s239
      %s241 = smul.u32 8, %s240
      %p242 = scmp.lt.s32.totalorder %s17, 1
      %s243 = scalar_select %p242, %s17, 1
      %p244 = scmp.lt.s32.totalorder %s241, 7
      %s245 = scalar_select %p244, %s241, 7
      %s246 = smul.addr %s245, 2
      %s247 = smul.addr %s243, 16
      %s248 = sadd.s32 %s246, %s247
      %s249 = smul.addr %s248, 4
      %s250 = scalar_lea.vmem %s2, %s249
      %s251 = smul.u32 %s18, 2
      %s252 = ssub.s32 0, %s251
      %s253 = smul.u32 %s17, %s252
      %s254 = sadd.s32 %s18, %s253
      %s255 = smul.u32 8, %s254
      %s257 = smul.u32 %s17, 16
      %s258 = scalar_lea.vmem [#allocation2], %s257
      %v259 = vld [vmem:[%s258] sm:$0xff]
      %v260 = vld [vmem:[%s258 + $0x8] sm:$0xff]
      %s261 = scalar_lea.vmem [#allocation3], %s257
      %v262 = vld [vmem:[%s261] sm:$0xff]
      %v263 = vld [vmem:[%s261 + $0x8] sm:$0xff]
      %p264 = scmp.eq.s32.totalorder %s18, 0
      %s265 = scalar_select %p264, 1, 0
      %v266 = vstv %s265
      %vm267 = vcmp.eq.s32.totalorder %v266, 1
      %v268 = vsel %vm267, 0.0, %v259
      %v269 = vsel %vm267, 0.0, %v260
      %v270 = vsel %vm267, 0.0, %v262
      %v271 = vsel %vm267, 0.0, %v263
      %s272 = smul.u32 %s17, 7
      %s273 = smul.u32 %s272, 8
      %s274 = smul.addr %s273, 8
      %s275 = scalar_lea.vmem %s226, %s274
      %v276 = vld [vmem:[%s275] sm:$0xff]
      %v277 = vld [vmem:[%s275 + $0x8] sm:$0xff]
      %v278 = vld [vmem:[%s275 + $0x10] sm:$0xff]
      %v279 = vld [vmem:[%s275 + $0x18] sm:$0xff]
      %v280 = vld [vmem:[%s275 + $0x20] sm:$0xff]
      %v281 = vld [vmem:[%s275 + $0x28] sm:$0xff]
      %v282 = vld [vmem:[%s275 + $0x30] sm:$0xff]
      %v283 = vld [vmem:[%s275 + $0x38] sm:$0xff]
      %v284 = vpack.c.bf16 %v269, %v268
      %v285 = vld [vmem:[%s236] sm:$0xff]
      %v286 = vld [vmem:[%s236 + $0x8] sm:$0xff]
      %v287 = vld [vmem:[%s236 + $0x10] sm:$0xff]
      %v288 = vld [vmem:[%s236 + $0x18] sm:$0xff]
      %v289 = vld [vmem:[%s236 + $0x20] sm:$0xff]
      %v290 = vld [vmem:[%s236 + $0x28] sm:$0xff]
      %v291 = vld [vmem:[%s236 + $0x30] sm:$0xff]
      %v292 = vld [vmem:[%s236 + $0x38] sm:$0xff]
      %v293 = vld [vmem:[%s236 + $0x40] sm:$0xff]
      %v294 = vld [vmem:[%s236 + $0x48] sm:$0xff]
      %v295 = vld [vmem:[%s236 + $0x50] sm:$0xff]
      %v296 = vld [vmem:[%s236 + $0x58] sm:$0xff]
      %v297 = vld [vmem:[%s236 + $0x60] sm:$0xff]
      %v298 = vld [vmem:[%s236 + $0x68] sm:$0xff]
      %v299 = vld [vmem:[%s236 + $0x70] sm:$0xff]
      %v300 = vld [vmem:[%s236 + $0x78] sm:$0xff]
      %v301 = vld [vmem:[%s236 + $0x80] sm:$0xff]
      %v302 = vld [vmem:[%s236 + $0x88] sm:$0xff]
      %v303 = vld [vmem:[%s236 + $0x90] sm:$0xff]
      %v304 = vld [vmem:[%s236 + $0x98] sm:$0xff]
      %v305 = vld [vmem:[%s236 + $0xa0] sm:$0xff]
      %v306 = vld [vmem:[%s236 + $0xa8] sm:$0xff]
      %v307 = vld [vmem:[%s236 + $0xb0] sm:$0xff]
      %v308 = vld [vmem:[%s236 + $0xb8] sm:$0xff]
      %v309 = vld [vmem:[%s236 + $0xc0] sm:$0xff]
      %v310 = vld [vmem:[%s236 + $0xc8] sm:$0xff]
      %v311 = vld [vmem:[%s236 + $0xd0] sm:$0xff]
      %v312 = vld [vmem:[%s236 + $0xd8] sm:$0xff]
      %v313 = vld [vmem:[%s236 + $0xe0] sm:$0xff]
      %v314 = vld [vmem:[%s236 + $0xe8] sm:$0xff]
      %v315 = vld [vmem:[%s236 + $0xf0] sm:$0xff]
      %v316 = vld [vmem:[%s236 + $0xf8] sm:$0xff]
      %v349 = vunpack.c.l.b16 %v285
      %v350 = vunpack.c.h.b16 %v285
      %v351 = vunpack.c.l.b16 %v286
      %v352 = vunpack.c.h.b16 %v286
      %v353 = vunpack.c.l.b16 %v287
      %v354 = vunpack.c.h.b16 %v287
      %v355 = vunpack.c.l.b16 %v288
      %v356 = vunpack.c.h.b16 %v288
      %v357 = vunpack.c.l.b16 %v289
      %v358 = vunpack.c.h.b16 %v289
      %v359 = vunpack.c.l.b16 %v290
      %v360 = vunpack.c.h.b16 %v290
      %v361 = vunpack.c.l.b16 %v291
      %v362 = vunpack.c.h.b16 %v291
      %v363 = vunpack.c.l.b16 %v292
      %v364 = vunpack.c.h.b16 %v292
      %v365 = vunpack.c.l.b16 %v293
      %v366 = vunpack.c.h.b16 %v293
      %v367 = vunpack.c.l.b16 %v294
      %v368 = vunpack.c.h.b16 %v294
      %v369 = vunpack.c.l.b16 %v295
      %v370 = vunpack.c.h.b16 %v295
      %v371 = vunpack.c.l.b16 %v296
      %v372 = vunpack.c.h.b16 %v296
      %v373 = vunpack.c.l.b16 %v297
      %v374 = vunpack.c.h.b16 %v297
      %v375 = vunpack.c.l.b16 %v298
      %v376 = vunpack.c.h.b16 %v298
      %v377 = vunpack.c.l.b16 %v299
      %v378 = vunpack.c.h.b16 %v299
      %v379 = vunpack.c.l.b16 %v300
      %v380 = vunpack.c.h.b16 %v300
      %v381 = vunpack.c.l.b16 %v301
      %v382 = vunpack.c.h.b16 %v301
      %v383 = vunpack.c.l.b16 %v302
      %v384 = vunpack.c.h.b16 %v302
      %v385 = vunpack.c.l.b16 %v303
      %v386 = vunpack.c.h.b16 %v303
      %v387 = vunpack.c.l.b16 %v304
      %v388 = vunpack.c.h.b16 %v304
      %v389 = vunpack.c.l.b16 %v305
      %v390 = vunpack.c.h.b16 %v305
      %v391 = vunpack.c.l.b16 %v306
      %v392 = vunpack.c.h.b16 %v306
      %v393 = vunpack.c.l.b16 %v307
      %v394 = vunpack.c.h.b16 %v307
      %v395 = vunpack.c.l.b16 %v308
      %v396 = vunpack.c.h.b16 %v308
      %v397 = vunpack.c.l.b16 %v309
      %v398 = vunpack.c.h.b16 %v309
      %v399 = vunpack.c.l.b16 %v310
      %v400 = vunpack.c.h.b16 %v310
      %v401 = vunpack.c.l.b16 %v311
      %v402 = vunpack.c.h.b16 %v311
      %v403 = vunpack.c.l.b16 %v312
      %v404 = vunpack.c.h.b16 %v312
      %v405 = vunpack.c.l.b16 %v313
      %v406 = vunpack.c.h.b16 %v313
      %v407 = vunpack.c.l.b16 %v314
      %v408 = vunpack.c.h.b16 %v314
      %v409 = vunpack.c.l.b16 %v315
      %v410 = vunpack.c.h.b16 %v315
      %v411 = vunpack.c.l.b16 %v316
      %v412 = vunpack.c.h.b16 %v316
      %v413 = vpack.c.b16 %v353, %v349
      %v414 = vpack.c.b16 %v354, %v350
      %v415 = vpack.c.b16 %v355, %v351
      %v416 = vpack.c.b16 %v356, %v352
      %v417 = vpack.c.b16 %v361, %v357
      %v418 = vpack.c.b16 %v362, %v358
      %v419 = vpack.c.b16 %v363, %v359
      %v420 = vpack.c.b16 %v364, %v360
      %v421 = vpack.c.b16 %v369, %v365
      %v422 = vpack.c.b16 %v370, %v366
      %v423 = vpack.c.b16 %v371, %v367
      %v424 = vpack.c.b16 %v372, %v368
      %v425 = vpack.c.b16 %v377, %v373
      %v426 = vpack.c.b16 %v378, %v374
      %v427 = vpack.c.b16 %v379, %v375
      %v428 = vpack.c.b16 %v380, %v376
      %v429 = vpack.c.b16 %v385, %v381
      %v430 = vpack.c.b16 %v386, %v382
      %v431 = vpack.c.b16 %v387, %v383
      %v432 = vpack.c.b16 %v388, %v384
      %v433 = vpack.c.b16 %v393, %v389
      %v434 = vpack.c.b16 %v394, %v390
      %v435 = vpack.c.b16 %v395, %v391
      %v436 = vpack.c.b16 %v396, %v392
      %v437 = vpack.c.b16 %v401, %v397
      %v438 = vpack.c.b16 %v402, %v398
      %v439 = vpack.c.b16 %v403, %v399
      %v440 = vpack.c.b16 %v404, %v400
      %v441 = vpack.c.b16 %v409, %v405
      %v442 = vpack.c.b16 %v410, %v406
      %v443 = vpack.c.b16 %v411, %v407
      %v444 = vpack.c.b16 %v412, %v408
      %477 = vmatprep.subr.bf16.mxu0 %v442
      %478 = vmatpush1.bf16.msra.mxu0 %v441
      %479 = vmatprep.subr.bf16.mxu0 %v438
      %480 = vmatpush1.bf16.msra.mxu0 %v437
      %481 = vmatprep.subr.bf16.mxu0 %v434
      %482 = vmatpush1.bf16.msra.mxu0 %v433
      %483 = vmatprep.subr.bf16.mxu0 %v430
      %484 = vmatpush1.bf16.msra.mxu0 %v429
      %485 = vmatprep.subr.bf16.mxu0 %v426
      %486 = vmatpush1.bf16.msra.mxu0 %v425
      %487 = vmatprep.subr.bf16.mxu0 %v422
      %488 = vmatpush1.bf16.msra.mxu0 %v421
      %489 = vmatprep.subr.bf16.mxu0 %v418
      %490 = vmatpush1.bf16.msra.mxu0 %v417
      %491 = vmatprep.subr.bf16.mxu0 %v414
      %492 = vmatpush1.bf16.msra.mxu0 %v413
      %493 = vmatprep.subr.bf16.mxu0 0
      %494 = vmatpush2.bf16.msra.mxu0 0
      %495 = vmatprep.subr.bf16.mxu0 0
      %496 = vmatpush2.bf16.msra.mxu0 0
      %497 = vmatprep.subr.bf16.mxu0 0
      %498 = vmatpush2.bf16.msra.mxu0 0
      %499 = vmatprep.subr.bf16.mxu0 0
      %500 = vmatpush2.bf16.msra.mxu0 0
      %501 = vmatprep.subr.bf16.mxu0 0
      %502 = vmatpush2.bf16.msra.mxu0 0
      %503 = vmatprep.subr.bf16.mxu0 0
      %504 = vmatpush2.bf16.msra.mxu0 0
      %505 = vmatprep.subr.bf16.mxu0 0
      %506 = vmatpush2.bf16.msra.mxu0 0
      %507 = vmatprep.subr.bf16.mxu0 0
      %508 = vmatpush2.bf16.msra.mxu0 0
      %509 = vmatprep.mubr.bf16.mxu0 0
      %510 = vmatmul.mubr.bf16.gmra.mxu0 %v284
      %v511 = vpop.f32.mrf.mxu0
      %v512 = vadd.f32 0.0, %v511
      %v513 = vpop.f32.mrf.mxu0
      %v514 = vadd.f32 0.0, %v513
      %v515 = vpop.f32.mrf.mxu0
      %v516 = vadd.f32 0.0, %v515
      %v517 = vpop.f32.mrf.mxu0
      %v518 = vadd.f32 0.0, %v517
      %519 = vdwg.mxu0
      %520 = vmatprep.subr.bf16.mxu0 %v444
      %521 = vmatpush1.bf16.msra.mxu0 %v443
      %522 = vmatprep.subr.bf16.mxu0 %v440
      %523 = vmatpush1.bf16.msra.mxu0 %v439
      %524 = vmatprep.subr.bf16.mxu0 %v436
      %525 = vmatpush1.bf16.msra.mxu0 %v435
      %526 = vmatprep.subr.bf16.mxu0 %v432
      %527 = vmatpush1.bf16.msra.mxu0 %v431
      %528 = vmatprep.subr.bf16.mxu0 %v428
      %529 = vmatpush1.bf16.msra.mxu0 %v427
      %530 = vmatprep.subr.bf16.mxu0 %v424
      %531 = vmatpush1.bf16.msra.mxu0 %v423
      %532 = vmatprep.subr.bf16.mxu0 %v420
      %533 = vmatpush1.bf16.msra.mxu0 %v419
      %534 = vmatprep.subr.bf16.mxu0 %v416
      %535 = vmatpush1.bf16.msra.mxu0 %v415
      %536 = vmatprep.subr.bf16.mxu0 0
      %537 = vmatpush2.bf16.msra.mxu0 0
      %538 = vmatprep.subr.bf16.mxu0 0
      %539 = vmatpush2.bf16.msra.mxu0 0
      %540 = vmatprep.subr.bf16.mxu0 0
      %541 = vmatpush2.bf16.msra.mxu0 0
      %542 = vmatprep.subr.bf16.mxu0 0
      %543 = vmatpush2.bf16.msra.mxu0 0
      %544 = vmatprep.subr.bf16.mxu0 0
      %545 = vmatpush2.bf16.msra.mxu0 0
      %546 = vmatprep.subr.bf16.mxu0 0
      %547 = vmatpush2.bf16.msra.mxu0 0
      %548 = vmatprep.subr.bf16.mxu0 0
      %549 = vmatpush2.bf16.msra.mxu0 0
      %550 = vmatprep.subr.bf16.mxu0 0
      %551 = vmatpush2.bf16.msra.mxu0 0
      %552 = vmatprep.mubr.bf16.mxu0 0
      %553 = vmatmul.mubr.bf16.gmra.mxu0 %v284
      %v554 = vpop.f32.mrf.mxu0
      %v555 = vadd.f32 0.0, %v554
      %v556 = vpop.f32.mrf.mxu0
      %v557 = vadd.f32 0.0, %v556
      %v558 = vpop.f32.mrf.mxu0
      %v559 = vadd.f32 0.0, %v558
      %v560 = vpop.f32.mrf.mxu0
      %v561 = vadd.f32 0.0, %v560
      %562 = vdwg.mxu0
      %v563 = vadd.f32 %v276, %v512
      %v564 = vadd.f32 %v277, %v514
      %v565 = vadd.f32 %v278, %v555
      %v566 = vadd.f32 %v279, %v557
      %v567 = vadd.f32 %v280, %v516
      %v568 = vadd.f32 %v281, %v518
      %v569 = vadd.f32 %v282, %v559
      %v570 = vadd.f32 %v283, %v561
      %v571 = vxor.u32 %v563, 2147483648
      %v572 = vxor.u32 %v567, 2147483648
      %v573 = vmul.f32 %v571, 1.442695
      %v574 = vpow.pop %v573
      %v575 = vmul.f32 %v572, 1.442695
      %v576 = vpow.pop %v575
      %v577 = vadd.f32 %v574, 1.0
      %v578 = vadd.f32 %v576, 1.0
      %v579 = vrcp.pop %v577
      %v580 = vmul.f32 1.0, %v579
      %v581 = vrcp.pop %v578
      %v582 = vmul.f32 1.0, %v581
      %v583 = vxor.u32 %v564, 2147483648
      %v584 = vxor.u32 %v568, 2147483648
      %v585 = vmul.f32 %v583, 1.442695
      %v586 = vpow.pop %v585
      %v587 = vmul.f32 %v584, 1.442695
      %v588 = vpow.pop %v587
      %v589 = vadd.f32 %v586, 1.0
      %v590 = vadd.f32 %v588, 1.0
      %v591 = vrcp.pop %v589
      %v592 = vmul.f32 1.0, %v591
      %v593 = vrcp.pop %v590
      %v594 = vmul.f32 1.0, %v593
      %v595 = vtanh.pop %v565
      %v596 = vtanh.pop %v569
      %v597 = vxor.u32 %v566, 2147483648
      %v598 = vxor.u32 %v570, 2147483648
      %v599 = vmul.f32 %v597, 1.442695
      %v600 = vpow.pop %v599
      %v601 = vmul.f32 %v598, 1.442695
      %v602 = vpow.pop %v601
      %v603 = vadd.f32 %v600, 1.0
      %v604 = vadd.f32 %v602, 1.0
      %v605 = vrcp.pop %v603
      %v606 = vmul.f32 1.0, %v605
      %v607 = vrcp.pop %v604
      %v608 = vmul.f32 1.0, %v607
      %v609 = vmul.f32 %v592, %v270
      %v610 = vmul.f32 %v594, %v271
      %v611 = vmul.f32 %v580, %v595
      %v612 = vmul.f32 %v582, %v596
      %v613 = vadd.f32 %v609, %v611
      %v614 = vadd.f32 %v610, %v612
      %v615 = vtanh.pop %v613
      %v616 = vtanh.pop %v614
      %v617 = vmul.f32 %v606, %v615
      %v618 = vmul.f32 %v608, %v616
      %v619 = vpack.c.bf16 %v618, %v617
      %v621 = vunpack.c.l.b16 %v619
      %v622 = vunpack.c.h.b16 %v619
      %v623 = vpack.c.b16 %v621, %v621
      %v624 = vpack.c.b16 %v622, %v622
      %s627 = smul.u32 %s272, 2
      %s628 = smul.addr %s627, 4
      %s629 = scalar_lea.vmem %s250, %s628
      %630 = vst [vmem:[%s629] sm:$0xf] %v623
      %631 = vst [vmem:[%s629 + $0x4] sm:$0xf] %v624
      %s632 = smul.u32 %s17, 5
      %s633 = sadd.s32 %s632, 1
      %s634 = smul.u32 %s633, 8
      %s635 = smul.addr %s634, 8
      %s636 = scalar_lea.vmem %s226, %s635
      %v637 = vld [vmem:[%s636] sm:$0xff]
      %v638 = vld [vmem:[%s636 + $0x8] sm:$0xff]
      %v639 = vld [vmem:[%s636 + $0x10] sm:$0xff]
      %v640 = vld [vmem:[%s636 + $0x18] sm:$0xff]
      %v641 = vld [vmem:[%s636 + $0x20] sm:$0xff]
      %v642 = vld [vmem:[%s636 + $0x28] sm:$0xff]
      %v643 = vld [vmem:[%s636 + $0x30] sm:$0xff]
      %v644 = vld [vmem:[%s636 + $0x38] sm:$0xff]
      %v645 = vld [vmem:[%s236] sm:$0xff]
      %v646 = vld [vmem:[%s236 + $0x8] sm:$0xff]
      %v647 = vld [vmem:[%s236 + $0x10] sm:$0xff]
      %v648 = vld [vmem:[%s236 + $0x18] sm:$0xff]
      %v649 = vld [vmem:[%s236 + $0x20] sm:$0xff]
      %v650 = vld [vmem:[%s236 + $0x28] sm:$0xff]
      %v651 = vld [vmem:[%s236 + $0x30] sm:$0xff]
      %v652 = vld [vmem:[%s236 + $0x38] sm:$0xff]
      %v653 = vld [vmem:[%s236 + $0x40] sm:$0xff]
      %v654 = vld [vmem:[%s236 + $0x48] sm:$0xff]
      %v655 = vld [vmem:[%s236 + $0x50] sm:$0xff]
      %v656 = vld [vmem:[%s236 + $0x58] sm:$0xff]
      %v657 = vld [vmem:[%s236 + $0x60] sm:$0xff]
      %v658 = vld [vmem:[%s236 + $0x68] sm:$0xff]
      %v659 = vld [vmem:[%s236 + $0x70] sm:$0xff]
      %v660 = vld [vmem:[%s236 + $0x78] sm:$0xff]
      %v661 = vld [vmem:[%s236 + $0x80] sm:$0xff]
      %v662 = vld [vmem:[%s236 + $0x88] sm:$0xff]
      %v663 = vld [vmem:[%s236 + $0x90] sm:$0xff]
      %v664 = vld [vmem:[%s236 + $0x98] sm:$0xff]
      %v665 = vld [vmem:[%s236 + $0xa0] sm:$0xff]
      %v666 = vld [vmem:[%s236 + $0xa8] sm:$0xff]
      %v667 = vld [vmem:[%s236 + $0xb0] sm:$0xff]
      %v668 = vld [vmem:[%s236 + $0xb8] sm:$0xff]
      %v669 = vld [vmem:[%s236 + $0xc0] sm:$0xff]
      %v670 = vld [vmem:[%s236 + $0xc8] sm:$0xff]
      %v671 = vld [vmem:[%s236 + $0xd0] sm:$0xff]
      %v672 = vld [vmem:[%s236 + $0xd8] sm:$0xff]
      %v673 = vld [vmem:[%s236 + $0xe0] sm:$0xff]
      %v674 = vld [vmem:[%s236 + $0xe8] sm:$0xff]
      %v675 = vld [vmem:[%s236 + $0xf0] sm:$0xff]
      %v676 = vld [vmem:[%s236 + $0xf8] sm:$0xff]
      %v709 = vunpack.c.l.b16 %v645
      %v710 = vunpack.c.h.b16 %v645
      %v711 = vunpack.c.l.b16 %v646
      %v712 = vunpack.c.h.b16 %v646
      %v713 = vunpack.c.l.b16 %v647
      %v714 = vunpack.c.h.b16 %v647
      %v715 = vunpack.c.l.b16 %v648
      %v716 = vunpack.c.h.b16 %v648
      %v717 = vunpack.c.l.b16 %v649
      %v718 = vunpack.c.h.b16 %v649
      %v719 = vunpack.c.l.b16 %v650
      %v720 = vunpack.c.h.b16 %v650
      %v721 = vunpack.c.l.b16 %v651
      %v722 = vunpack.c.h.b16 %v651
      %v723 = vunpack.c.l.b16 %v652
      %v724 = vunpack.c.h.b16 %v652
      %v725 = vunpack.c.l.b16 %v653
      %v726 = vunpack.c.h.b16 %v653
      %v727 = vunpack.c.l.b16 %v654
      %v728 = vunpack.c.h.b16 %v654
      %v729 = vunpack.c.l.b16 %v655
      %v730 = vunpack.c.h.b16 %v655
      %v731 = vunpack.c.l.b16 %v656
      %v732 = vunpack.c.h.b16 %v656
      %v733 = vunpack.c.l.b16 %v657
      %v734 = vunpack.c.h.b16 %v657
      %v735 = vunpack.c.l.b16 %v658
      %v736 = vunpack.c.h.b16 %v658
      %v737 = vunpack.c.l.b16 %v659
      %v738 = vunpack.c.h.b16 %v659
      %v739 = vunpack.c.l.b16 %v660
      %v740 = vunpack.c.h.b16 %v660
      %v741 = vunpack.c.l.b16 %v661
      %v742 = vunpack.c.h.b16 %v661
      %v743 = vunpack.c.l.b16 %v662
      %v744 = vunpack.c.h.b16 %v662
      %v745 = vunpack.c.l.b16 %v663
      %v746 = vunpack.c.h.b16 %v663
      %v747 = vunpack.c.l.b16 %v664
      %v748 = vunpack.c.h.b16 %v664
      %v749 = vunpack.c.l.b16 %v665
      %v750 = vunpack.c.h.b16 %v665
      %v751 = vunpack.c.l.b16 %v666
      %v752 = vunpack.c.h.b16 %v666
      %v753 = vunpack.c.l.b16 %v667
      %v754 = vunpack.c.h.b16 %v667
      %v755 = vunpack.c.l.b16 %v668
      %v756 = vunpack.c.h.b16 %v668
      %v757 = vunpack.c.l.b16 %v669
      %v758 = vunpack.c.h.b16 %v669
      %v759 = vunpack.c.l.b16 %v670
      %v760 = vunpack.c.h.b16 %v670
      %v761 = vunpack.c.l.b16 %v671
      %v762 = vunpack.c.h.b16 %v671
      %v763 = vunpack.c.l.b16 %v672
      %v764 = vunpack.c.h.b16 %v672
      %v765 = vunpack.c.l.b16 %v673
      %v766 = vunpack.c.h.b16 %v673
      %v767 = vunpack.c.l.b16 %v674
      %v768 = vunpack.c.h.b16 %v674
      %v769 = vunpack.c.l.b16 %v675
      %v770 = vunpack.c.h.b16 %v675
      %v771 = vunpack.c.l.b16 %v676
      %v772 = vunpack.c.h.b16 %v676
      %v773 = vpack.c.b16 %v713, %v709
      %v774 = vpack.c.b16 %v714, %v710
      %v775 = vpack.c.b16 %v715, %v711
      %v776 = vpack.c.b16 %v716, %v712
      %v777 = vpack.c.b16 %v721, %v717
      %v778 = vpack.c.b16 %v722, %v718
      %v779 = vpack.c.b16 %v723, %v719
      %v780 = vpack.c.b16 %v724, %v720
      %v781 = vpack.c.b16 %v729, %v725
      %v782 = vpack.c.b16 %v730, %v726
      %v783 = vpack.c.b16 %v731, %v727
      %v784 = vpack.c.b16 %v732, %v728
      %v785 = vpack.c.b16 %v737, %v733
      %v786 = vpack.c.b16 %v738, %v734
      %v787 = vpack.c.b16 %v739, %v735
      %v788 = vpack.c.b16 %v740, %v736
      %v789 = vpack.c.b16 %v745, %v741
      %v790 = vpack.c.b16 %v746, %v742
      %v791 = vpack.c.b16 %v747, %v743
      %v792 = vpack.c.b16 %v748, %v744
      %v793 = vpack.c.b16 %v753, %v749
      %v794 = vpack.c.b16 %v754, %v750
      %v795 = vpack.c.b16 %v755, %v751
      %v796 = vpack.c.b16 %v756, %v752
      %v797 = vpack.c.b16 %v761, %v757
      %v798 = vpack.c.b16 %v762, %v758
      %v799 = vpack.c.b16 %v763, %v759
      %v800 = vpack.c.b16 %v764, %v760
      %v801 = vpack.c.b16 %v769, %v765
      %v802 = vpack.c.b16 %v770, %v766
      %v803 = vpack.c.b16 %v771, %v767
      %v804 = vpack.c.b16 %v772, %v768
      %837 = vmatprep.subr.bf16.mxu0 %v802
      %838 = vmatpush1.bf16.msra.mxu0 %v801
      %839 = vmatprep.subr.bf16.mxu0 %v798
      %840 = vmatpush1.bf16.msra.mxu0 %v797
      %841 = vmatprep.subr.bf16.mxu0 %v794
      %842 = vmatpush1.bf16.msra.mxu0 %v793
      %843 = vmatprep.subr.bf16.mxu0 %v790
      %844 = vmatpush1.bf16.msra.mxu0 %v789
      %845 = vmatprep.subr.bf16.mxu0 %v786
      %846 = vmatpush1.bf16.msra.mxu0 %v785
      %847 = vmatprep.subr.bf16.mxu0 %v782
      %848 = vmatpush1.bf16.msra.mxu0 %v781
      %849 = vmatprep.subr.bf16.mxu0 %v778
      %850 = vmatpush1.bf16.msra.mxu0 %v777
      %851 = vmatprep.subr.bf16.mxu0 %v774
      %852 = vmatpush1.bf16.msra.mxu0 %v773
      %853 = vmatprep.subr.bf16.mxu0 0
      %854 = vmatpush2.bf16.msra.mxu0 0
      %855 = vmatprep.subr.bf16.mxu0 0
      %856 = vmatpush2.bf16.msra.mxu0 0
      %857 = vmatprep.subr.bf16.mxu0 0
      %858 = vmatpush2.bf16.msra.mxu0 0
      %859 = vmatprep.subr.bf16.mxu0 0
      %860 = vmatpush2.bf16.msra.mxu0 0
      %861 = vmatprep.subr.bf16.mxu0 0
      %862 = vmatpush2.bf16.msra.mxu0 0
      %863 = vmatprep.subr.bf16.mxu0 0
      %864 = vmatpush2.bf16.msra.mxu0 0
      %865 = vmatprep.subr.bf16.mxu0 0
      %866 = vmatpush2.bf16.msra.mxu0 0
      %867 = vmatprep.subr.bf16.mxu0 0
      %868 = vmatpush2.bf16.msra.mxu0 0
      %869 = vmatprep.mubr.bf16.mxu0 0
      %870 = vmatmul.mubr.bf16.gmra.mxu0 %v619
      %v871 = vpop.f32.mrf.mxu0
      %v872 = vadd.f32 0.0, %v871
      %v873 = vpop.f32.mrf.mxu0
      %v874 = vadd.f32 0.0, %v873
      %v875 = vpop.f32.mrf.mxu0
      %v876 = vadd.f32 0.0, %v875
      %v877 = vpop.f32.mrf.mxu0
      %v878 = vadd.f32 0.0, %v877
      %879 = vdwg.mxu0
      %880 = vmatprep.subr.bf16.mxu0 %v804
      %881 = vmatpush1.bf16.msra.mxu0 %v803
      %882 = vmatprep.subr.bf16.mxu0 %v800
      %883 = vmatpush1.bf16.msra.mxu0 %v799
      %884 = vmatprep.subr.bf16.mxu0 %v796
      %885 = vmatpush1.bf16.msra.mxu0 %v795
      %886 = vmatprep.subr.bf16.mxu0 %v792
      %887 = vmatpush1.bf16.msra.mxu0 %v791
      %888 = vmatprep.subr.bf16.mxu0 %v788
      %889 = vmatpush1.bf16.msra.mxu0 %v787
      %890 = vmatprep.subr.bf16.mxu0 %v784
      %891 = vmatpush1.bf16.msra.mxu0 %v783
      %892 = vmatprep.subr.bf16.mxu0 %v780
      %893 = vmatpush1.bf16.msra.mxu0 %v779
      %894 = vmatprep.subr.bf16.mxu0 %v776
      %895 = vmatpush1.bf16.msra.mxu0 %v775
      %896 = vmatprep.subr.bf16.mxu0 0
      %897 = vmatpush2.bf16.msra.mxu0 0
      %898 = vmatprep.subr.bf16.mxu0 0
      %899 = vmatpush2.bf16.msra.mxu0 0
      %900 = vmatprep.subr.bf16.mxu0 0
      %901 = vmatpush2.bf16.msra.mxu0 0
      %902 = vmatprep.subr.bf16.mxu0 0
      %903 = vmatpush2.bf16.msra.mxu0 0
      %904 = vmatprep.subr.bf16.mxu0 0
      %905 = vmatpush2.bf16.msra.mxu0 0
      %906 = vmatprep.subr.bf16.mxu0 0
      %907 = vmatpush2.bf16.msra.mxu0 0
      %908 = vmatprep.subr.bf16.mxu0 0
      %909 = vmatpush2.bf16.msra.mxu0 0
      %910 = vmatprep.subr.bf16.mxu0 0
      %911 = vmatpush2.bf16.msra.mxu0 0
      %912 = vmatprep.mubr.bf16.mxu0 0
      %913 = vmatmul.mubr.bf16.gmra.mxu0 %v619
      %v914 = vpop.f32.mrf.mxu0
      %v915 = vadd.f32 0.0, %v914
      %v916 = vpop.f32.mrf.mxu0
      %v917 = vadd.f32 0.0, %v916
      %v918 = vpop.f32.mrf.mxu0
      %v919 = vadd.f32 0.0, %v918
      %v920 = vpop.f32.mrf.mxu0
      %v921 = vadd.f32 0.0, %v920
      %922 = vdwg.mxu0
      %v923 = vadd.f32 %v637, %v872
      %v924 = vadd.f32 %v638, %v874
      %v925 = vadd.f32 %v639, %v915
      %v926 = vadd.f32 %v640, %v917
      %v927 = vadd.f32 %v641, %v876
      %v928 = vadd.f32 %v642, %v878
      %v929 = vadd.f32 %v643, %v919
      %v930 = vadd.f32 %v644, %v921
      %v931 = vxor.u32 %v923, 2147483648
      %v932 = vxor.u32 %v927, 2147483648
      %v933 = vmul.f32 %v931, 1.442695
      %v934 = vpow.pop %v933
      %v935 = vmul.f32 %v932, 1.442695
      %v936 = vpow.pop %v935
      %v937 = vadd.f32 %v934, 1.0
      %v938 = vadd.f32 %v936, 1.0
      %v939 = vrcp.pop %v937
      %v940 = vmul.f32 1.0, %v939
      %v941 = vrcp.pop %v938
      %v942 = vmul.f32 1.0, %v941
      %v943 = vxor.u32 %v924, 2147483648
      %v944 = vxor.u32 %v928, 2147483648
      %v945 = vmul.f32 %v943, 1.442695
      %v946 = vpow.pop %v945
      %v947 = vmul.f32 %v944, 1.442695
      %v948 = vpow.pop %v947
      %v949 = vadd.f32 %v946, 1.0
      %v950 = vadd.f32 %v948, 1.0
      %v951 = vrcp.pop %v949
      %v952 = vmul.f32 1.0, %v951
      %v953 = vrcp.pop %v950
      %v954 = vmul.f32 1.0, %v953
      %v955 = vtanh.pop %v925
      %v956 = vtanh.pop %v929
      %v957 = vxor.u32 %v926, 2147483648
      %v958 = vxor.u32 %v930, 2147483648
      %v959 = vmul.f32 %v957, 1.442695
      %v960 = vpow.pop %v959
      %v961 = vmul.f32 %v958, 1.442695
      %v962 = vpow.pop %v961
      %v963 = vadd.f32 %v960, 1.0
      %v964 = vadd.f32 %v962, 1.0
      %v965 = vrcp.pop %v963
      %v966 = vmul.f32 1.0, %v965
      %v967 = vrcp.pop %v964
      %v968 = vmul.f32 1.0, %v967
      %v969 = vmul.f32 %v952, %v613
      %v970 = vmul.f32 %v954, %v614
      %v971 = vmul.f32 %v940, %v955
      %v972 = vmul.f32 %v942, %v956
      %v973 = vadd.f32 %v969, %v971
      %v974 = vadd.f32 %v970, %v972
      %v975 = vtanh.pop %v973
      %v976 = vtanh.pop %v974
      %v977 = vmul.f32 %v966, %v975
      %v978 = vmul.f32 %v968, %v976
      %v979 = vpack.c.bf16 %v978, %v977
      %v981 = vunpack.c.l.b16 %v979
      %v982 = vunpack.c.h.b16 %v979
      %v983 = vpack.c.b16 %v981, %v981
      %v984 = vpack.c.b16 %v982, %v982
      %s987 = smul.u32 %s633, 2
      %s988 = smul.addr %s987, 4
      %s989 = scalar_lea.vmem %s250, %s988
      %990 = vst [vmem:[%s989] sm:$0xf] %v983
      %991 = vst [vmem:[%s989 + $0x4] sm:$0xf] %v984
      %s992 = smul.u32 %s17, 3
      %s993 = sadd.s32 %s992, 2
      %s994 = smul.u32 %s993, 8
      %s995 = smul.addr %s994, 8
      %s996 = scalar_lea.vmem %s226, %s995
      %v997 = vld [vmem:[%s996] sm:$0xff]
      %v998 = vld [vmem:[%s996 + $0x8] sm:$0xff]
      %v999 = vld [vmem:[%s996 + $0x10] sm:$0xff]
      %v1000 = vld [vmem:[%s996 + $0x18] sm:$0xff]
      %v1001 = vld [vmem:[%s996 + $0x20] sm:$0xff]
      %v1002 = vld [vmem:[%s996 + $0x28] sm:$0xff]
      %v1003 = vld [vmem:[%s996 + $0x30] sm:$0xff]
      %v1004 = vld [vmem:[%s996 + $0x38] sm:$0xff]
      %v1005 = vld [vmem:[%s236] sm:$0xff]
      %v1006 = vld [vmem:[%s236 + $0x8] sm:$0xff]
      %v1007 = vld [vmem:[%s236 + $0x10] sm:$0xff]
      %v1008 = vld [vmem:[%s236 + $0x18] sm:$0xff]
      %v1009 = vld [vmem:[%s236 + $0x20] sm:$0xff]
      %v1010 = vld [vmem:[%s236 + $0x28] sm:$0xff]
      %v1011 = vld [vmem:[%s236 + $0x30] sm:$0xff]
      %v1012 = vld [vmem:[%s236 + $0x38] sm:$0xff]
      %v1013 = vld [vmem:[%s236 + $0x40] sm:$0xff]
      %v1014 = vld [vmem:[%s236 + $0x48] sm:$0xff]
      %v1015 = vld [vmem:[%s236 + $0x50] sm:$0xff]
      %v1016 = vld [vmem:[%s236 + $0x58] sm:$0xff]
      %v1017 = vld [vmem:[%s236 + $0x60] sm:$0xff]
      %v1018 = vld [vmem:[%s236 + $0x68] sm:$0xff]
      %v1019 = vld [vmem:[%s236 + $0x70] sm:$0xff]
      %v1020 = vld [vmem:[%s236 + $0x78] sm:$0xff]
      %v1021 = vld [vmem:[%s236 + $0x80] sm:$0xff]
      %v1022 = vld [vmem:[%s236 + $0x88] sm:$0xff]
      %v1023 = vld [vmem:[%s236 + $0x90] sm:$0xff]
      %v1024 = vld [vmem:[%s236 + $0x98] sm:$0xff]
      %v1025 = vld [vmem:[%s236 + $0xa0] sm:$0xff]
      %v1026 = vld [vmem:[%s236 + $0xa8] sm:$0xff]
      %v1027 = vld [vmem:[%s236 + $0xb0] sm:$0xff]
      %v1028 = vld [vmem:[%s236 + $0xb8] sm:$0xff]
      %v1029 = vld [vmem:[%s236 + $0xc0] sm:$0xff]
      %v1030 = vld [vmem:[%s236 + $0xc8] sm:$0xff]
      %v1031 = vld [vmem:[%s236 + $0xd0] sm:$0xff]
      %v1032 = vld [vmem:[%s236 + $0xd8] sm:$0xff]
      %v1033 = vld [vmem:[%s236 + $0xe0] sm:$0xff]
      %v1034 = vld [vmem:[%s236 + $0xe8] sm:$0xff]
      %v1035 = vld [vmem:[%s236 + $0xf0] sm:$0xff]
      %v1036 = vld [vmem:[%s236 + $0xf8] sm:$0xff]
      %v1069 = vunpack.c.l.b16 %v1005
      %v1070 = vunpack.c.h.b16 %v1005
      %v1071 = vunpack.c.l.b16 %v1006
      %v1072 = vunpack.c.h.b16 %v1006
      %v1073 = vunpack.c.l.b16 %v1007
      %v1074 = vunpack.c.h.b16 %v1007
      %v1075 = vunpack.c.l.b16 %v1008
      %v1076 = vunpack.c.h.b16 %v1008
      %v1077 = vunpack.c.l.b16 %v1009
      %v1078 = vunpack.c.h.b16 %v1009
      %v1079 = vunpack.c.l.b16 %v1010
      %v1080 = vunpack.c.h.b16 %v1010
      %v1081 = vunpack.c.l.b16 %v1011
      %v1082 = vunpack.c.h.b16 %v1011
      %v1083 = vunpack.c.l.b16 %v1012
      %v1084 = vunpack.c.h.b16 %v1012
      %v1085 = vunpack.c.l.b16 %v1013
      %v1086 = vunpack.c.h.b16 %v1013
      %v1087 = vunpack.c.l.b16 %v1014
      %v1088 = vunpack.c.h.b16 %v1014
      %v1089 = vunpack.c.l.b16 %v1015
      %v1090 = vunpack.c.h.b16 %v1015
      %v1091 = vunpack.c.l.b16 %v1016
      %v1092 = vunpack.c.h.b16 %v1016
      %v1093 = vunpack.c.l.b16 %v1017
      %v1094 = vunpack.c.h.b16 %v1017
      %v1095 = vunpack.c.l.b16 %v1018
      %v1096 = vunpack.c.h.b16 %v1018
      %v1097 = vunpack.c.l.b16 %v1019
      %v1098 = vunpack.c.h.b16 %v1019
      %v1099 = vunpack.c.l.b16 %v1020
      %v1100 = vunpack.c.h.b16 %v1020
      %v1101 = vunpack.c.l.b16 %v1021
      %v1102 = vunpack.c.h.b16 %v1021
      %v1103 = vunpack.c.l.b16 %v1022
      %v1104 = vunpack.c.h.b16 %v1022
      %v1105 = vunpack.c.l.b16 %v1023
      %v1106 = vunpack.c.h.b16 %v1023
      %v1107 = vunpack.c.l.b16 %v1024
      %v1108 = vunpack.c.h.b16 %v1024
      %v1109 = vunpack.c.l.b16 %v1025
      %v1110 = vunpack.c.h.b16 %v1025
      %v1111 = vunpack.c.l.b16 %v1026
      %v1112 = vunpack.c.h.b16 %v1026
      %v1113 = vunpack.c.l.b16 %v1027
      %v1114 = vunpack.c.h.b16 %v1027
      %v1115 = vunpack.c.l.b16 %v1028
      %v1116 = vunpack.c.h.b16 %v1028
      %v1117 = vunpack.c.l.b16 %v1029
      %v1118 = vunpack.c.h.b16 %v1029
      %v1119 = vunpack.c.l.b16 %v1030
      %v1120 = vunpack.c.h.b16 %v1030
      %v1121 = vunpack.c.l.b16 %v1031
      %v1122 = vunpack.c.h.b16 %v1031
      %v1123 = vunpack.c.l.b16 %v1032
      %v1124 = vunpack.c.h.b16 %v1032
      %v1125 = vunpack.c.l.b16 %v1033
      %v1126 = vunpack.c.h.b16 %v1033
      %v1127 = vunpack.c.l.b16 %v1034
      %v1128 = vunpack.c.h.b16 %v1034
      %v1129 = vunpack.c.l.b16 %v1035
      %v1130 = vunpack.c.h.b16 %v1035
      %v1131 = vunpack.c.l.b16 %v1036
      %v1132 = vunpack.c.h.b16 %v1036
      %v1133 = vpack.c.b16 %v1073, %v1069
      %v1134 = vpack.c.b16 %v1074, %v1070
      %v1135 = vpack.c.b16 %v1075, %v1071
      %v1136 = vpack.c.b16 %v1076, %v1072
      %v1137 = vpack.c.b16 %v1081, %v1077
      %v1138 = vpack.c.b16 %v1082, %v1078
      %v1139 = vpack.c.b16 %v1083, %v1079
      %v1140 = vpack.c.b16 %v1084, %v1080
      %v1141 = vpack.c.b16 %v1089, %v1085
      %v1142 = vpack.c.b16 %v1090, %v1086
      %v1143 = vpack.c.b16 %v1091, %v1087
      %v1144 = vpack.c.b16 %v1092, %v1088
      %v1145 = vpack.c.b16 %v1097, %v1093
      %v1146 = vpack.c.b16 %v1098, %v1094
      %v1147 = vpack.c.b16 %v1099, %v1095
      %v1148 = vpack.c.b16 %v1100, %v1096
      %v1149 = vpack.c.b16 %v1105, %v1101
      %v1150 = vpack.c.b16 %v1106, %v1102
      %v1151 = vpack.c.b16 %v1107, %v1103
      %v1152 = vpack.c.b16 %v1108, %v1104
      %v1153 = vpack.c.b16 %v1113, %v1109
      %v1154 = vpack.c.b16 %v1114, %v1110
      %v1155 = vpack.c.b16 %v1115, %v1111
      %v1156 = vpack.c.b16 %v1116, %v1112
      %v1157 = vpack.c.b16 %v1121, %v1117
      %v1158 = vpack.c.b16 %v1122, %v1118
      %v1159 = vpack.c.b16 %v1123, %v1119
      %v1160 = vpack.c.b16 %v1124, %v1120
      %v1161 = vpack.c.b16 %v1129, %v1125
      %v1162 = vpack.c.b16 %v1130, %v1126
      %v1163 = vpack.c.b16 %v1131, %v1127
      %v1164 = vpack.c.b16 %v1132, %v1128
      %1197 = vmatprep.subr.bf16.mxu0 %v1162
      %1198 = vmatpush1.bf16.msra.mxu0 %v1161
      %1199 = vmatprep.subr.bf16.mxu0 %v1158
      %1200 = vmatpush1.bf16.msra.mxu0 %v1157
      %1201 = vmatprep.subr.bf16.mxu0 %v1154
      %1202 = vmatpush1.bf16.msra.mxu0 %v1153
      %1203 = vmatprep.subr.bf16.mxu0 %v1150
      %1204 = vmatpush1.bf16.msra.mxu0 %v1149
      %1205 = vmatprep.subr.bf16.mxu0 %v1146
      %1206 = vmatpush1.bf16.msra.mxu0 %v1145
      %1207 = vmatprep.subr.bf16.mxu0 %v1142
      %1208 = vmatpush1.bf16.msra.mxu0 %v1141
      %1209 = vmatprep.subr.bf16.mxu0 %v1138
      %1210 = vmatpush1.bf16.msra.mxu0 %v1137
      %1211 = vmatprep.subr.bf16.mxu0 %v1134
      %1212 = vmatpush1.bf16.msra.mxu0 %v1133
      %1213 = vmatprep.subr.bf16.mxu0 0
      %1214 = vmatpush2.bf16.msra.mxu0 0
      %1215 = vmatprep.subr.bf16.mxu0 0
      %1216 = vmatpush2.bf16.msra.mxu0 0
      %1217 = vmatprep.subr.bf16.mxu0 0
      %1218 = vmatpush2.bf16.msra.mxu0 0
      %1219 = vmatprep.subr.bf16.mxu0 0
      %1220 = vmatpush2.bf16.msra.mxu0 0
      %1221 = vmatprep.subr.bf16.mxu0 0
      %1222 = vmatpush2.bf16.msra.mxu0 0
      %1223 = vmatprep.subr.bf16.mxu0 0
      %1224 = vmatpush2.bf16.msra.mxu0 0
      %1225 = vmatprep.subr.bf16.mxu0 0
      %1226 = vmatpush2.bf16.msra.mxu0 0
      %1227 = vmatprep.subr.bf16.mxu0 0
      %1228 = vmatpush2.bf16.msra.mxu0 0
      %1229 = vmatprep.mubr.bf16.mxu0 0
      %1230 = vmatmul.mubr.bf16.gmra.mxu0 %v979
      %v1231 = vpop.f32.mrf.mxu0
      %v1232 = vadd.f32 0.0, %v1231
      %v1233 = vpop.f32.mrf.mxu0
      %v1234 = vadd.f32 0.0, %v1233
      %v1235 = vpop.f32.mrf.mxu0
      %v1236 = vadd.f32 0.0, %v1235
      %v1237 = vpop.f32.mrf.mxu0
      %v1238 = vadd.f32 0.0, %v1237
      %1239 = vdwg.mxu0
      %1240 = vmatprep.subr.bf16.mxu0 %v1164
      %1241 = vmatpush1.bf16.msra.mxu0 %v1163
      %1242 = vmatprep.subr.bf16.mxu0 %v1160
      %1243 = vmatpush1.bf16.msra.mxu0 %v1159
      %1244 = vmatprep.subr.bf16.mxu0 %v1156
      %1245 = vmatpush1.bf16.msra.mxu0 %v1155
      %1246 = vmatprep.subr.bf16.mxu0 %v1152
      %1247 = vmatpush1.bf16.msra.mxu0 %v1151
      %1248 = vmatprep.subr.bf16.mxu0 %v1148
      %1249 = vmatpush1.bf16.msra.mxu0 %v1147
      %1250 = vmatprep.subr.bf16.mxu0 %v1144
      %1251 = vmatpush1.bf16.msra.mxu0 %v1143
      %1252 = vmatprep.subr.bf16.mxu0 %v1140
      %1253 = vmatpush1.bf16.msra.mxu0 %v1139
      %1254 = vmatprep.subr.bf16.mxu0 %v1136
      %1255 = vmatpush1.bf16.msra.mxu0 %v1135
      %1256 = vmatprep.subr.bf16.mxu0 0
      %1257 = vmatpush2.bf16.msra.mxu0 0
      %1258 = vmatprep.subr.bf16.mxu0 0
      %1259 = vmatpush2.bf16.msra.mxu0 0
      %1260 = vmatprep.subr.bf16.mxu0 0
      %1261 = vmatpush2.bf16.msra.mxu0 0
      %1262 = vmatprep.subr.bf16.mxu0 0
      %1263 = vmatpush2.bf16.msra.mxu0 0
      %1264 = vmatprep.subr.bf16.mxu0 0
      %1265 = vmatpush2.bf16.msra.mxu0 0
      %1266 = vmatprep.subr.bf16.mxu0 0
      %1267 = vmatpush2.bf16.msra.mxu0 0
      %1268 = vmatprep.subr.bf16.mxu0 0
      %1269 = vmatpush2.bf16.msra.mxu0 0
      %1270 = vmatprep.subr.bf16.mxu0 0
      %1271 = vmatpush2.bf16.msra.mxu0 0
      %1272 = vmatprep.mubr.bf16.mxu0 0
      %1273 = vmatmul.mubr.bf16.gmra.mxu0 %v979
      %v1274 = vpop.f32.mrf.mxu0
      %v1275 = vadd.f32 0.0, %v1274
      %v1276 = vpop.f32.mrf.mxu0
      %v1277 = vadd.f32 0.0, %v1276
      %v1278 = vpop.f32.mrf.mxu0
      %v1279 = vadd.f32 0.0, %v1278
      %v1280 = vpop.f32.mrf.mxu0
      %v1281 = vadd.f32 0.0, %v1280
      %1282 = vdwg.mxu0
      %v1283 = vadd.f32 %v997, %v1232
      %v1284 = vadd.f32 %v998, %v1234
      %v1285 = vadd.f32 %v999, %v1275
      %v1286 = vadd.f32 %v1000, %v1277
      %v1287 = vadd.f32 %v1001, %v1236
      %v1288 = vadd.f32 %v1002, %v1238
      %v1289 = vadd.f32 %v1003, %v1279
      %v1290 = vadd.f32 %v1004, %v1281
      %v1291 = vxor.u32 %v1283, 2147483648
      %v1292 = vxor.u32 %v1287, 2147483648
      %v1293 = vmul.f32 %v1291, 1.442695
      %v1294 = vpow.pop %v1293
      %v1295 = vmul.f32 %v1292, 1.442695
      %v1296 = vpow.pop %v1295
      %v1297 = vadd.f32 %v1294, 1.0
      %v1298 = vadd.f32 %v1296, 1.0
      %v1299 = vrcp.pop %v1297
      %v1300 = vmul.f32 1.0, %v1299
      %v1301 = vrcp.pop %v1298
      %v1302 = vmul.f32 1.0, %v1301
      %v1303 = vxor.u32 %v1284, 2147483648
      %v1304 = vxor.u32 %v1288, 2147483648
      %v1305 = vmul.f32 %v1303, 1.442695
      %v1306 = vpow.pop %v1305
      %v1307 = vmul.f32 %v1304, 1.442695
      %v1308 = vpow.pop %v1307
      %v1309 = vadd.f32 %v1306, 1.0
      %v1310 = vadd.f32 %v1308, 1.0
      %v1311 = vrcp.pop %v1309
      %v1312 = vmul.f32 1.0, %v1311
      %v1313 = vrcp.pop %v1310
      %v1314 = vmul.f32 1.0, %v1313
      %v1315 = vtanh.pop %v1285
      %v1316 = vtanh.pop %v1289
      %v1317 = vxor.u32 %v1286, 2147483648
      %v1318 = vxor.u32 %v1290, 2147483648
      %v1319 = vmul.f32 %v1317, 1.442695
      %v1320 = vpow.pop %v1319
      %v1321 = vmul.f32 %v1318, 1.442695
      %v1322 = vpow.pop %v1321
      %v1323 = vadd.f32 %v1320, 1.0
      %v1324 = vadd.f32 %v1322, 1.0
      %v1325 = vrcp.pop %v1323
      %v1326 = vmul.f32 1.0, %v1325
      %v1327 = vrcp.pop %v1324
      %v1328 = vmul.f32 1.0, %v1327
      %v1329 = vmul.f32 %v1312, %v973
      %v1330 = vmul.f32 %v1314, %v974
      %v1331 = vmul.f32 %v1300, %v1315
      %v1332 = vmul.f32 %v1302, %v1316
      %v1333 = vadd.f32 %v1329, %v1331
      %v1334 = vadd.f32 %v1330, %v1332
      %v1335 = vtanh.pop %v1333
      %v1336 = vtanh.pop %v1334
      %v1337 = vmul.f32 %v1326, %v1335
      %v1338 = vmul.f32 %v1328, %v1336
      %v1339 = vpack.c.bf16 %v1338, %v1337
      %v1341 = vunpack.c.l.b16 %v1339
      %v1342 = vunpack.c.h.b16 %v1339
      %v1343 = vpack.c.b16 %v1341, %v1341
      %v1344 = vpack.c.b16 %v1342, %v1342
      %s1347 = smul.u32 %s993, 2
      %s1348 = smul.addr %s1347, 4
      %s1349 = scalar_lea.vmem %s250, %s1348
      %1350 = vst [vmem:[%s1349] sm:$0xf] %v1343
      %1351 = vst [vmem:[%s1349 + $0x4] sm:$0xf] %v1344
      %s1352 = sadd.s32 %s17, 3
      %s1353 = smul.u32 %s1352, 8
      %s1354 = smul.addr %s1353, 8
      %s1355 = scalar_lea.vmem %s226, %s1354
      %v1356 = vld [vmem:[%s1355] sm:$0xff]
      %v1357 = vld [vmem:[%s1355 + $0x8] sm:$0xff]
      %v1358 = vld [vmem:[%s1355 + $0x10] sm:$0xff]
      %v1359 = vld [vmem:[%s1355 + $0x18] sm:$0xff]
      %v1360 = vld [vmem:[%s1355 + $0x20] sm:$0xff]
      %v1361 = vld [vmem:[%s1355 + $0x28] sm:$0xff]
      %v1362 = vld [vmem:[%s1355 + $0x30] sm:$0xff]
      %v1363 = vld [vmem:[%s1355 + $0x38] sm:$0xff]
      %v1364 = vld [vmem:[%s236] sm:$0xff]
      %v1365 = vld [vmem:[%s236 + $0x8] sm:$0xff]
      %v1366 = vld [vmem:[%s236 + $0x10] sm:$0xff]
      %v1367 = vld [vmem:[%s236 + $0x18] sm:$0xff]
      %v1368 = vld [vmem:[%s236 + $0x20] sm:$0xff]
      %v1369 = vld [vmem:[%s236 + $0x28] sm:$0xff]
      %v1370 = vld [vmem:[%s236 + $0x30] sm:$0xff]
      %v1371 = vld [vmem:[%s236 + $0x38] sm:$0xff]
      %v1372 = vld [vmem:[%s236 + $0x40] sm:$0xff]
      %v1373 = vld [vmem:[%s236 + $0x48] sm:$0xff]
      %v1374 = vld [vmem:[%s236 + $0x50] sm:$0xff]
      %v1375 = vld [vmem:[%s236 + $0x58] sm:$0xff]
      %v1376 = vld [vmem:[%s236 + $0x60] sm:$0xff]
      %v1377 = vld [vmem:[%s236 + $0x68] sm:$0xff]
      %v1378 = vld [vmem:[%s236 + $0x70] sm:$0xff]
      %v1379 = vld [vmem:[%s236 + $0x78] sm:$0xff]
      %v1380 = vld [vmem:[%s236 + $0x80] sm:$0xff]
      %v1381 = vld [vmem:[%s236 + $0x88] sm:$0xff]
      %v1382 = vld [vmem:[%s236 + $0x90] sm:$0xff]
      %v1383 = vld [vmem:[%s236 + $0x98] sm:$0xff]
      %v1384 = vld [vmem:[%s236 + $0xa0] sm:$0xff]
      %v1385 = vld [vmem:[%s236 + $0xa8] sm:$0xff]
      %v1386 = vld [vmem:[%s236 + $0xb0] sm:$0xff]
      %v1387 = vld [vmem:[%s236 + $0xb8] sm:$0xff]
      %v1388 = vld [vmem:[%s236 + $0xc0] sm:$0xff]
      %v1389 = vld [vmem:[%s236 + $0xc8] sm:$0xff]
      %v1390 = vld [vmem:[%s236 + $0xd0] sm:$0xff]
      %v1391 = vld [vmem:[%s236 + $0xd8] sm:$0xff]
      %v1392 = vld [vmem:[%s236 + $0xe0] sm:$0xff]
      %v1393 = vld [vmem:[%s236 + $0xe8] sm:$0xff]
      %v1394 = vld [vmem:[%s236 + $0xf0] sm:$0xff]
      %v1395 = vld [vmem:[%s236 + $0xf8] sm:$0xff]
      %v1428 = vunpack.c.l.b16 %v1364
      %v1429 = vunpack.c.h.b16 %v1364
      %v1430 = vunpack.c.l.b16 %v1365
      %v1431 = vunpack.c.h.b16 %v1365
      %v1432 = vunpack.c.l.b16 %v1366
      %v1433 = vunpack.c.h.b16 %v1366
      %v1434 = vunpack.c.l.b16 %v1367
      %v1435 = vunpack.c.h.b16 %v1367
      %v1436 = vunpack.c.l.b16 %v1368
      %v1437 = vunpack.c.h.b16 %v1368
      %v1438 = vunpack.c.l.b16 %v1369
      %v1439 = vunpack.c.h.b16 %v1369
      %v1440 = vunpack.c.l.b16 %v1370
      %v1441 = vunpack.c.h.b16 %v1370
      %v1442 = vunpack.c.l.b16 %v1371
      %v1443 = vunpack.c.h.b16 %v1371
      %v1444 = vunpack.c.l.b16 %v1372
      %v1445 = vunpack.c.h.b16 %v1372
      %v1446 = vunpack.c.l.b16 %v1373
      %v1447 = vunpack.c.h.b16 %v1373
      %v1448 = vunpack.c.l.b16 %v1374
      %v1449 = vunpack.c.h.b16 %v1374
      %v1450 = vunpack.c.l.b16 %v1375
      %v1451 = vunpack.c.h.b16 %v1375
      %v1452 = vunpack.c.l.b16 %v1376
      %v1453 = vunpack.c.h.b16 %v1376
      %v1454 = vunpack.c.l.b16 %v1377
      %v1455 = vunpack.c.h.b16 %v1377
      %v1456 = vunpack.c.l.b16 %v1378
      %v1457 = vunpack.c.h.b16 %v1378
      %v1458 = vunpack.c.l.b16 %v1379
      %v1459 = vunpack.c.h.b16 %v1379
      %v1460 = vunpack.c.l.b16 %v1380
      %v1461 = vunpack.c.h.b16 %v1380
      %v1462 = vunpack.c.l.b16 %v1381
      %v1463 = vunpack.c.h.b16 %v1381
      %v1464 = vunpack.c.l.b16 %v1382
      %v1465 = vunpack.c.h.b16 %v1382
      %v1466 = vunpack.c.l.b16 %v1383
      %v1467 = vunpack.c.h.b16 %v1383
      %v1468 = vunpack.c.l.b16 %v1384
      %v1469 = vunpack.c.h.b16 %v1384
      %v1470 = vunpack.c.l.b16 %v1385
      %v1471 = vunpack.c.h.b16 %v1385
      %v1472 = vunpack.c.l.b16 %v1386
      %v1473 = vunpack.c.h.b16 %v1386
      %v1474 = vunpack.c.l.b16 %v1387
      %v1475 = vunpack.c.h.b16 %v1387
      %v1476 = vunpack.c.l.b16 %v1388
      %v1477 = vunpack.c.h.b16 %v1388
      %v1478 = vunpack.c.l.b16 %v1389
      %v1479 = vunpack.c.h.b16 %v1389
      %v1480 = vunpack.c.l.b16 %v1390
      %v1481 = vunpack.c.h.b16 %v1390
      %v1482 = vunpack.c.l.b16 %v1391
      %v1483 = vunpack.c.h.b16 %v1391
      %v1484 = vunpack.c.l.b16 %v1392
      %v1485 = vunpack.c.h.b16 %v1392
      %v1486 = vunpack.c.l.b16 %v1393
      %v1487 = vunpack.c.h.b16 %v1393
      %v1488 = vunpack.c.l.b16 %v1394
      %v1489 = vunpack.c.h.b16 %v1394
      %v1490 = vunpack.c.l.b16 %v1395
      %v1491 = vunpack.c.h.b16 %v1395
      %v1492 = vpack.c.b16 %v1432, %v1428
      %v1493 = vpack.c.b16 %v1433, %v1429
      %v1494 = vpack.c.b16 %v1434, %v1430
      %v1495 = vpack.c.b16 %v1435, %v1431
      %v1496 = vpack.c.b16 %v1440, %v1436
      %v1497 = vpack.c.b16 %v1441, %v1437
      %v1498 = vpack.c.b16 %v1442, %v1438
      %v1499 = vpack.c.b16 %v1443, %v1439
      %v1500 = vpack.c.b16 %v1448, %v1444
      %v1501 = vpack.c.b16 %v1449, %v1445
      %v1502 = vpack.c.b16 %v1450, %v1446
      %v1503 = vpack.c.b16 %v1451, %v1447
      %v1504 = vpack.c.b16 %v1456, %v1452
      %v1505 = vpack.c.b16 %v1457, %v1453
      %v1506 = vpack.c.b16 %v1458, %v1454
      %v1507 = vpack.c.b16 %v1459, %v1455
      %v1508 = vpack.c.b16 %v1464, %v1460
      %v1509 = vpack.c.b16 %v1465, %v1461
      %v1510 = vpack.c.b16 %v1466, %v1462
      %v1511 = vpack.c.b16 %v1467, %v1463
      %v1512 = vpack.c.b16 %v1472, %v1468
      %v1513 = vpack.c.b16 %v1473, %v1469
      %v1514 = vpack.c.b16 %v1474, %v1470
      %v1515 = vpack.c.b16 %v1475, %v1471
      %v1516 = vpack.c.b16 %v1480, %v1476
      %v1517 = vpack.c.b16 %v1481, %v1477
      %v1518 = vpack.c.b16 %v1482, %v1478
      %v1519 = vpack.c.b16 %v1483, %v1479
      %v1520 = vpack.c.b16 %v1488, %v1484
      %v1521 = vpack.c.b16 %v1489, %v1485
      %v1522 = vpack.c.b16 %v1490, %v1486
      %v1523 = vpack.c.b16 %v1491, %v1487
      %1556 = vmatprep.subr.bf16.mxu0 %v1521
      %1557 = vmatpush1.bf16.msra.mxu0 %v1520
      %1558 = vmatprep.subr.bf16.mxu0 %v1517
      %1559 = vmatpush1.bf16.msra.mxu0 %v1516
      %1560 = vmatprep.subr.bf16.mxu0 %v1513
      %1561 = vmatpush1.bf16.msra.mxu0 %v1512
      %1562 = vmatprep.subr.bf16.mxu0 %v1509
      %1563 = vmatpush1.bf16.msra.mxu0 %v1508
      %1564 = vmatprep.subr.bf16.mxu0 %v1505
      %1565 = vmatpush1.bf16.msra.mxu0 %v1504
      %1566 = vmatprep.subr.bf16.mxu0 %v1501
      %1567 = vmatpush1.bf16.msra.mxu0 %v1500
      %1568 = vmatprep.subr.bf16.mxu0 %v1497
      %1569 = vmatpush1.bf16.msra.mxu0 %v1496
      %1570 = vmatprep.subr.bf16.mxu0 %v1493
      %1571 = vmatpush1.bf16.msra.mxu0 %v1492
      %1572 = vmatprep.subr.bf16.mxu0 0
      %1573 = vmatpush2.bf16.msra.mxu0 0
      %1574 = vmatprep.subr.bf16.mxu0 0
      %1575 = vmatpush2.bf16.msra.mxu0 0
      %1576 = vmatprep.subr.bf16.mxu0 0
      %1577 = vmatpush2.bf16.msra.mxu0 0
      %1578 = vmatprep.subr.bf16.mxu0 0
      %1579 = vmatpush2.bf16.msra.mxu0 0
      %1580 = vmatprep.subr.bf16.mxu0 0
      %1581 = vmatpush2.bf16.msra.mxu0 0
      %1582 = vmatprep.subr.bf16.mxu0 0
      %1583 = vmatpush2.bf16.msra.mxu0 0
      %1584 = vmatprep.subr.bf16.mxu0 0
      %1585 = vmatpush2.bf16.msra.mxu0 0
      %1586 = vmatprep.subr.bf16.mxu0 0
      %1587 = vmatpush2.bf16.msra.mxu0 0
      %1588 = vmatprep.mubr.bf16.mxu0 0
      %1589 = vmatmul.mubr.bf16.gmra.mxu0 %v1339
      %v1590 = vpop.f32.mrf.mxu0
      %v1591 = vadd.f32 0.0, %v1590
      %v1592 = vpop.f32.mrf.mxu0
      %v1593 = vadd.f32 0.0, %v1592
      %v1594 = vpop.f32.mrf.mxu0
      %v1595 = vadd.f32 0.0, %v1594
      %v1596 = vpop.f32.mrf.mxu0
      %v1597 = vadd.f32 0.0, %v1596
      %1598 = vdwg.mxu0
      %1599 = vmatprep.subr.bf16.mxu0 %v1523
      %1600 = vmatpush1.bf16.msra.mxu0 %v1522
      %1601 = vmatprep.subr.bf16.mxu0 %v1519
      %1602 = vmatpush1.bf16.msra.mxu0 %v1518
      %1603 = vmatprep.subr.bf16.mxu0 %v1515
      %1604 = vmatpush1.bf16.msra.mxu0 %v1514
      %1605 = vmatprep.subr.bf16.mxu0 %v1511
      %1606 = vmatpush1.bf16.msra.mxu0 %v1510
      %1607 = vmatprep.subr.bf16.mxu0 %v1507
      %1608 = vmatpush1.bf16.msra.mxu0 %v1506
      %1609 = vmatprep.subr.bf16.mxu0 %v1503
      %1610 = vmatpush1.bf16.msra.mxu0 %v1502
      %1611 = vmatprep.subr.bf16.mxu0 %v1499
      %1612 = vmatpush1.bf16.msra.mxu0 %v1498
      %1613 = vmatprep.subr.bf16.mxu0 %v1495
      %1614 = vmatpush1.bf16.msra.mxu0 %v1494
      %1615 = vmatprep.subr.bf16.mxu0 0
      %1616 = vmatpush2.bf16.msra.mxu0 0
      %1617 = vmatprep.subr.bf16.mxu0 0
      %1618 = vmatpush2.bf16.msra.mxu0 0
      %1619 = vmatprep.subr.bf16.mxu0 0
      %1620 = vmatpush2.bf16.msra.mxu0 0
      %1621 = vmatprep.subr.bf16.mxu0 0
      %1622 = vmatpush2.bf16.msra.mxu0 0
      %1623 = vmatprep.subr.bf16.mxu0 0
      %1624 = vmatpush2.bf16.msra.mxu0 0
      %1625 = vmatprep.subr.bf16.mxu0 0
      %1626 = vmatpush2.bf16.msra.mxu0 0
      %1627 = vmatprep.subr.bf16.mxu0 0
      %1628 = vmatpush2.bf16.msra.mxu0 0
      %1629 = vmatprep.subr.bf16.mxu0 0
      %1630 = vmatpush2.bf16.msra.mxu0 0
      %1631 = vmatprep.mubr.bf16.mxu0 0
      %1632 = vmatmul.mubr.bf16.gmra.mxu0 %v1339
      %v1633 = vpop.f32.mrf.mxu0
      %v1634 = vadd.f32 0.0, %v1633
      %v1635 = vpop.f32.mrf.mxu0
      %v1636 = vadd.f32 0.0, %v1635
      %v1637 = vpop.f32.mrf.mxu0
      %v1638 = vadd.f32 0.0, %v1637
      %v1639 = vpop.f32.mrf.mxu0
      %v1640 = vadd.f32 0.0, %v1639
      %1641 = vdwg.mxu0
      %v1642 = vadd.f32 %v1356, %v1591
      %v1643 = vadd.f32 %v1357, %v1593
      %v1644 = vadd.f32 %v1358, %v1634
      %v1645 = vadd.f32 %v1359, %v1636
      %v1646 = vadd.f32 %v1360, %v1595
      %v1647 = vadd.f32 %v1361, %v1597
      %v1648 = vadd.f32 %v1362, %v1638
      %v1649 = vadd.f32 %v1363, %v1640
      %v1650 = vxor.u32 %v1642, 2147483648
      %v1651 = vxor.u32 %v1646, 2147483648
      %v1652 = vmul.f32 %v1650, 1.442695
      %v1653 = vpow.pop %v1652
      %v1654 = vmul.f32 %v1651, 1.442695
      %v1655 = vpow.pop %v1654
      %v1656 = vadd.f32 %v1653, 1.0
      %v1657 = vadd.f32 %v1655, 1.0
      %v1658 = vrcp.pop %v1656
      %v1659 = vmul.f32 1.0, %v1658
      %v1660 = vrcp.pop %v1657
      %v1661 = vmul.f32 1.0, %v1660
      %v1662 = vxor.u32 %v1643, 2147483648
      %v1663 = vxor.u32 %v1647, 2147483648
      %v1664 = vmul.f32 %v1662, 1.442695
      %v1665 = vpow.pop %v1664
      %v1666 = vmul.f32 %v1663, 1.442695
      %v1667 = vpow.pop %v1666
      %v1668 = vadd.f32 %v1665, 1.0
      %v1669 = vadd.f32 %v1667, 1.0
      %v1670 = vrcp.pop %v1668
      %v1671 = vmul.f32 1.0, %v1670
      %v1672 = vrcp.pop %v1669
      %v1673 = vmul.f32 1.0, %v1672
      %v1674 = vtanh.pop %v1644
      %v1675 = vtanh.pop %v1648
      %v1676 = vxor.u32 %v1645, 2147483648
      %v1677 = vxor.u32 %v1649, 2147483648
      %v1678 = vmul.f32 %v1676, 1.442695
      %v1679 = vpow.pop %v1678
      %v1680 = vmul.f32 %v1677, 1.442695
      %v1681 = vpow.pop %v1680
      %v1682 = vadd.f32 %v1679, 1.0
      %v1683 = vadd.f32 %v1681, 1.0
      %v1684 = vrcp.pop %v1682
      %v1685 = vmul.f32 1.0, %v1684
      %v1686 = vrcp.pop %v1683
      %v1687 = vmul.f32 1.0, %v1686
      %v1688 = vmul.f32 %v1671, %v1333
      %v1689 = vmul.f32 %v1673, %v1334
      %v1690 = vmul.f32 %v1659, %v1674
      %v1691 = vmul.f32 %v1661, %v1675
      %v1692 = vadd.f32 %v1688, %v1690
      %v1693 = vadd.f32 %v1689, %v1691
      %v1694 = vtanh.pop %v1692
      %v1695 = vtanh.pop %v1693
      %v1696 = vmul.f32 %v1685, %v1694
      %v1697 = vmul.f32 %v1687, %v1695
      %v1698 = vpack.c.bf16 %v1697, %v1696
      %v1700 = vunpack.c.l.b16 %v1698
      %v1701 = vunpack.c.h.b16 %v1698
      %v1702 = vpack.c.b16 %v1700, %v1700
      %v1703 = vpack.c.b16 %v1701, %v1701
      %s1706 = smul.u32 %s1352, 2
      %s1707 = smul.addr %s1706, 4
      %s1708 = scalar_lea.vmem %s250, %s1707
      %1709 = vst [vmem:[%s1708] sm:$0xf] %v1702
      %1710 = vst [vmem:[%s1708 + $0x4] sm:$0xf] %v1703
      %s1711 = ssub.s32 4, %s17
      %s1712 = smul.u32 %s1711, 8
      %s1713 = smul.addr %s1712, 8
      %s1714 = scalar_lea.vmem %s226, %s1713
      %v1715 = vld [vmem:[%s1714] sm:$0xff]
      %v1716 = vld [vmem:[%s1714 + $0x8] sm:$0xff]
      %v1717 = vld [vmem:[%s1714 + $0x10] sm:$0xff]
      %v1718 = vld [vmem:[%s1714 + $0x18] sm:$0xff]
      %v1719 = vld [vmem:[%s1714 + $0x20] sm:$0xff]
      %v1720 = vld [vmem:[%s1714 + $0x28] sm:$0xff]
      %v1721 = vld [vmem:[%s1714 + $0x30] sm:$0xff]
      %v1722 = vld [vmem:[%s1714 + $0x38] sm:$0xff]
      %v1723 = vld [vmem:[%s236] sm:$0xff]
      %v1724 = vld [vmem:[%s236 + $0x8] sm:$0xff]
      %v1725 = vld [vmem:[%s236 + $0x10] sm:$0xff]
      %v1726 = vld [vmem:[%s236 + $0x18] sm:$0xff]
      %v1727 = vld [vmem:[%s236 + $0x20] sm:$0xff]
      %v1728 = vld [vmem:[%s236 + $0x28] sm:$0xff]
      %v1729 = vld [vmem:[%s236 + $0x30] sm:$0xff]
      %v1730 = vld [vmem:[%s236 + $0x38] sm:$0xff]
      %v1731 = vld [vmem:[%s236 + $0x40] sm:$0xff]
      %v1732 = vld [vmem:[%s236 + $0x48] sm:$0xff]
      %v1733 = vld [vmem:[%s236 + $0x50] sm:$0xff]
      %v1734 = vld [vmem:[%s236 + $0x58] sm:$0xff]
      %v1735 = vld [vmem:[%s236 + $0x60] sm:$0xff]
      %v1736 = vld [vmem:[%s236 + $0x68] sm:$0xff]
      %v1737 = vld [vmem:[%s236 + $0x70] sm:$0xff]
      %v1738 = vld [vmem:[%s236 + $0x78] sm:$0xff]
      %v1739 = vld [vmem:[%s236 + $0x80] sm:$0xff]
      %v1740 = vld [vmem:[%s236 + $0x88] sm:$0xff]
      %v1741 = vld [vmem:[%s236 + $0x90] sm:$0xff]
      %v1742 = vld [vmem:[%s236 + $0x98] sm:$0xff]
      %v1743 = vld [vmem:[%s236 + $0xa0] sm:$0xff]
      %v1744 = vld [vmem:[%s236 + $0xa8] sm:$0xff]
      %v1745 = vld [vmem:[%s236 + $0xb0] sm:$0xff]
      %v1746 = vld [vmem:[%s236 + $0xb8] sm:$0xff]
      %v1747 = vld [vmem:[%s236 + $0xc0] sm:$0xff]
      %v1748 = vld [vmem:[%s236 + $0xc8] sm:$0xff]
      %v1749 = vld [vmem:[%s236 + $0xd0] sm:$0xff]
      %v1750 = vld [vmem:[%s236 + $0xd8] sm:$0xff]
      %v1751 = vld [vmem:[%s236 + $0xe0] sm:$0xff]
      %v1752 = vld [vmem:[%s236 + $0xe8] sm:$0xff]
      %v1753 = vld [vmem:[%s236 + $0xf0] sm:$0xff]
      %v1754 = vld [vmem:[%s236 + $0xf8] sm:$0xff]
      %v1787 = vunpack.c.l.b16 %v1723
      %v1788 = vunpack.c.h.b16 %v1723
      %v1789 = vunpack.c.l.b16 %v1724
      %v1790 = vunpack.c.h.b16 %v1724
      %v1791 = vunpack.c.l.b16 %v1725
      %v1792 = vunpack.c.h.b16 %v1725
      %v1793 = vunpack.c.l.b16 %v1726
      %v1794 = vunpack.c.h.b16 %v1726
      %v1795 = vunpack.c.l.b16 %v1727
      %v1796 = vunpack.c.h.b16 %v1727
      %v1797 = vunpack.c.l.b16 %v1728
      %v1798 = vunpack.c.h.b16 %v1728
      %v1799 = vunpack.c.l.b16 %v1729
      %v1800 = vunpack.c.h.b16 %v1729
      %v1801 = vunpack.c.l.b16 %v1730
      %v1802 = vunpack.c.h.b16 %v1730
      %v1803 = vunpack.c.l.b16 %v1731
      %v1804 = vunpack.c.h.b16 %v1731
      %v1805 = vunpack.c.l.b16 %v1732
      %v1806 = vunpack.c.h.b16 %v1732
      %v1807 = vunpack.c.l.b16 %v1733
      %v1808 = vunpack.c.h.b16 %v1733
      %v1809 = vunpack.c.l.b16 %v1734
      %v1810 = vunpack.c.h.b16 %v1734
      %v1811 = vunpack.c.l.b16 %v1735
      %v1812 = vunpack.c.h.b16 %v1735
      %v1813 = vunpack.c.l.b16 %v1736
      %v1814 = vunpack.c.h.b16 %v1736
      %v1815 = vunpack.c.l.b16 %v1737
      %v1816 = vunpack.c.h.b16 %v1737
      %v1817 = vunpack.c.l.b16 %v1738
      %v1818 = vunpack.c.h.b16 %v1738
      %v1819 = vunpack.c.l.b16 %v1739
      %v1820 = vunpack.c.h.b16 %v1739
      %v1821 = vunpack.c.l.b16 %v1740
      %v1822 = vunpack.c.h.b16 %v1740
      %v1823 = vunpack.c.l.b16 %v1741
      %v1824 = vunpack.c.h.b16 %v1741
      %v1825 = vunpack.c.l.b16 %v1742
      %v1826 = vunpack.c.h.b16 %v1742
      %v1827 = vunpack.c.l.b16 %v1743
      %v1828 = vunpack.c.h.b16 %v1743
      %v1829 = vunpack.c.l.b16 %v1744
      %v1830 = vunpack.c.h.b16 %v1744
      %v1831 = vunpack.c.l.b16 %v1745
      %v1832 = vunpack.c.h.b16 %v1745
      %v1833 = vunpack.c.l.b16 %v1746
      %v1834 = vunpack.c.h.b16 %v1746
      %v1835 = vunpack.c.l.b16 %v1747
      %v1836 = vunpack.c.h.b16 %v1747
      %v1837 = vunpack.c.l.b16 %v1748
      %v1838 = vunpack.c.h.b16 %v1748
      %v1839 = vunpack.c.l.b16 %v1749
      %v1840 = vunpack.c.h.b16 %v1749
      %v1841 = vunpack.c.l.b16 %v1750
      %v1842 = vunpack.c.h.b16 %v1750
      %v1843 = vunpack.c.l.b16 %v1751
      %v1844 = vunpack.c.h.b16 %v1751
      %v1845 = vunpack.c.l.b16 %v1752
      %v1846 = vunpack.c.h.b16 %v1752
      %v1847 = vunpack.c.l.b16 %v1753
      %v1848 = vunpack.c.h.b16 %v1753
      %v1849 = vunpack.c.l.b16 %v1754
      %v1850 = vunpack.c.h.b16 %v1754
      %v1851 = vpack.c.b16 %v1791, %v1787
      %v1852 = vpack.c.b16 %v1792, %v1788
      %v1853 = vpack.c.b16 %v1793, %v1789
      %v1854 = vpack.c.b16 %v1794, %v1790
      %v1855 = vpack.c.b16 %v1799, %v1795
      %v1856 = vpack.c.b16 %v1800, %v1796
      %v1857 = vpack.c.b16 %v1801, %v1797
      %v1858 = vpack.c.b16 %v1802, %v1798
      %v1859 = vpack.c.b16 %v1807, %v1803
      %v1860 = vpack.c.b16 %v1808, %v1804
      %v1861 = vpack.c.b16 %v1809, %v1805
      %v1862 = vpack.c.b16 %v1810, %v1806
      %v1863 = vpack.c.b16 %v1815, %v1811
      %v1864 = vpack.c.b16 %v1816, %v1812
      %v1865 = vpack.c.b16 %v1817, %v1813
      %v1866 = vpack.c.b16 %v1818, %v1814
      %v1867 = vpack.c.b16 %v1823, %v1819
      %v1868 = vpack.c.b16 %v1824, %v1820
      %v1869 = vpack.c.b16 %v1825, %v1821
      %v1870 = vpack.c.b16 %v1826, %v1822
      %v1871 = vpack.c.b16 %v1831, %v1827
      %v1872 = vpack.c.b16 %v1832, %v1828
      %v1873 = vpack.c.b16 %v1833, %v1829
      %v1874 = vpack.c.b16 %v1834, %v1830
      %v1875 = vpack.c.b16 %v1839, %v1835
      %v1876 = vpack.c.b16 %v1840, %v1836
      %v1877 = vpack.c.b16 %v1841, %v1837
      %v1878 = vpack.c.b16 %v1842, %v1838
      %v1879 = vpack.c.b16 %v1847, %v1843
      %v1880 = vpack.c.b16 %v1848, %v1844
      %v1881 = vpack.c.b16 %v1849, %v1845
      %v1882 = vpack.c.b16 %v1850, %v1846
      %1915 = vmatprep.subr.bf16.mxu0 %v1880
      %1916 = vmatpush1.bf16.msra.mxu0 %v1879
      %1917 = vmatprep.subr.bf16.mxu0 %v1876
      %1918 = vmatpush1.bf16.msra.mxu0 %v1875
      %1919 = vmatprep.subr.bf16.mxu0 %v1872
      %1920 = vmatpush1.bf16.msra.mxu0 %v1871
      %1921 = vmatprep.subr.bf16.mxu0 %v1868
      %1922 = vmatpush1.bf16.msra.mxu0 %v1867
      %1923 = vmatprep.subr.bf16.mxu0 %v1864
      %1924 = vmatpush1.bf16.msra.mxu0 %v1863
      %1925 = vmatprep.subr.bf16.mxu0 %v1860
      %1926 = vmatpush1.bf16.msra.mxu0 %v1859
      %1927 = vmatprep.subr.bf16.mxu0 %v1856
      %1928 = vmatpush1.bf16.msra.mxu0 %v1855
      %1929 = vmatprep.subr.bf16.mxu0 %v1852
      %1930 = vmatpush1.bf16.msra.mxu0 %v1851
      %1931 = vmatprep.subr.bf16.mxu0 0
      %1932 = vmatpush2.bf16.msra.mxu0 0
      %1933 = vmatprep.subr.bf16.mxu0 0
      %1934 = vmatpush2.bf16.msra.mxu0 0
      %1935 = vmatprep.subr.bf16.mxu0 0
      %1936 = vmatpush2.bf16.msra.mxu0 0
      %1937 = vmatprep.subr.bf16.mxu0 0
      %1938 = vmatpush2.bf16.msra.mxu0 0
      %1939 = vmatprep.subr.bf16.mxu0 0
      %1940 = vmatpush2.bf16.msra.mxu0 0
      %1941 = vmatprep.subr.bf16.mxu0 0
      %1942 = vmatpush2.bf16.msra.mxu0 0
      %1943 = vmatprep.subr.bf16.mxu0 0
      %1944 = vmatpush2.bf16.msra.mxu0 0
      %1945 = vmatprep.subr.bf16.mxu0 0
      %1946 = vmatpush2.bf16.msra.mxu0 0
      %1947 = vmatprep.mubr.bf16.mxu0 0
      %1948 = vmatmul.mubr.bf16.gmra.mxu0 %v1698
      %v1949 = vpop.f32.mrf.mxu0
      %v1950 = vadd.f32 0.0, %v1949
      %v1951 = vpop.f32.mrf.mxu0
      %v1952 = vadd.f32 0.0, %v1951
      %v1953 = vpop.f32.mrf.mxu0
      %v1954 = vadd.f32 0.0, %v1953
      %v1955 = vpop.f32.mrf.mxu0
      %v1956 = vadd.f32 0.0, %v1955
      %1957 = vdwg.mxu0
      %1958 = vmatprep.subr.bf16.mxu0 %v1882
      %1959 = vmatpush1.bf16.msra.mxu0 %v1881
      %1960 = vmatprep.subr.bf16.mxu0 %v1878
      %1961 = vmatpush1.bf16.msra.mxu0 %v1877
      %1962 = vmatprep.subr.bf16.mxu0 %v1874
      %1963 = vmatpush1.bf16.msra.mxu0 %v1873
      %1964 = vmatprep.subr.bf16.mxu0 %v1870
      %1965 = vmatpush1.bf16.msra.mxu0 %v1869
      %1966 = vmatprep.subr.bf16.mxu0 %v1866
      %1967 = vmatpush1.bf16.msra.mxu0 %v1865
      %1968 = vmatprep.subr.bf16.mxu0 %v1862
      %1969 = vmatpush1.bf16.msra.mxu0 %v1861
      %1970 = vmatprep.subr.bf16.mxu0 %v1858
      %1971 = vmatpush1.bf16.msra.mxu0 %v1857
      %1972 = vmatprep.subr.bf16.mxu0 %v1854
      %1973 = vmatpush1.bf16.msra.mxu0 %v1853
      %1974 = vmatprep.subr.bf16.mxu0 0
      %1975 = vmatpush2.bf16.msra.mxu0 0
      %1976 = vmatprep.subr.bf16.mxu0 0
      %1977 = vmatpush2.bf16.msra.mxu0 0
      %1978 = vmatprep.subr.bf16.mxu0 0
      %1979 = vmatpush2.bf16.msra.mxu0 0
      %1980 = vmatprep.subr.bf16.mxu0 0
      %1981 = vmatpush2.bf16.msra.mxu0 0
      %1982 = vmatprep.subr.bf16.mxu0 0
      %1983 = vmatpush2.bf16.msra.mxu0 0
      %1984 = vmatprep.subr.bf16.mxu0 0
      %1985 = vmatpush2.bf16.msra.mxu0 0
      %1986 = vmatprep.subr.bf16.mxu0 0
      %1987 = vmatpush2.bf16.msra.mxu0 0
      %1988 = vmatprep.subr.bf16.mxu0 0
      %1989 = vmatpush2.bf16.msra.mxu0 0
      %1990 = vmatprep.mubr.bf16.mxu0 0
      %1991 = vmatmul.mubr.bf16.gmra.mxu0 %v1698
      %v1992 = vpop.f32.mrf.mxu0
      %v1993 = vadd.f32 0.0, %v1992
      %v1994 = vpop.f32.mrf.mxu0
      %v1995 = vadd.f32 0.0, %v1994
      %v1996 = vpop.f32.mrf.mxu0
      %v1997 = vadd.f32 0.0, %v1996
      %v1998 = vpop.f32.mrf.mxu0
      %v1999 = vadd.f32 0.0, %v1998
      %2000 = vdwg.mxu0
      %v2001 = vadd.f32 %v1715, %v1950
      %v2002 = vadd.f32 %v1716, %v1952
      %v2003 = vadd.f32 %v1717, %v1993
      %v2004 = vadd.f32 %v1718, %v1995
      %v2005 = vadd.f32 %v1719, %v1954
      %v2006 = vadd.f32 %v1720, %v1956
      %v2007 = vadd.f32 %v1721, %v1997
      %v2008 = vadd.f32 %v1722, %v1999
      %v2009 = vxor.u32 %v2001, 2147483648
      %v2010 = vxor.u32 %v2005, 2147483648
      %v2011 = vmul.f32 %v2009, 1.442695
      %v2012 = vpow.pop %v2011
      %v2013 = vmul.f32 %v2010, 1.442695
      %v2014 = vpow.pop %v2013
      %v2015 = vadd.f32 %v2012, 1.0
      %v2016 = vadd.f32 %v2014, 1.0
      %v2017 = vrcp.pop %v2015
      %v2018 = vmul.f32 1.0, %v2017
      %v2019 = vrcp.pop %v2016
      %v2020 = vmul.f32 1.0, %v2019
      %v2021 = vxor.u32 %v2002, 2147483648
      %v2022 = vxor.u32 %v2006, 2147483648
      %v2023 = vmul.f32 %v2021, 1.442695
      %v2024 = vpow.pop %v2023
      %v2025 = vmul.f32 %v2022, 1.442695
      %v2026 = vpow.pop %v2025
      %v2027 = vadd.f32 %v2024, 1.0
      %v2028 = vadd.f32 %v2026, 1.0
      %v2029 = vrcp.pop %v2027
      %v2030 = vmul.f32 1.0, %v2029
      %v2031 = vrcp.pop %v2028
      %v2032 = vmul.f32 1.0, %v2031
      %v2033 = vtanh.pop %v2003
      %v2034 = vtanh.pop %v2007
      %v2035 = vxor.u32 %v2004, 2147483648
      %v2036 = vxor.u32 %v2008, 2147483648
      %v2037 = vmul.f32 %v2035, 1.442695
      %v2038 = vpow.pop %v2037
      %v2039 = vmul.f32 %v2036, 1.442695
      %v2040 = vpow.pop %v2039
      %v2041 = vadd.f32 %v2038, 1.0
      %v2042 = vadd.f32 %v2040, 1.0
      %v2043 = vrcp.pop %v2041
      %v2044 = vmul.f32 1.0, %v2043
      %v2045 = vrcp.pop %v2042
      %v2046 = vmul.f32 1.0, %v2045
      %v2047 = vmul.f32 %v2030, %v1692
      %v2048 = vmul.f32 %v2032, %v1693
      %v2049 = vmul.f32 %v2018, %v2033
      %v2050 = vmul.f32 %v2020, %v2034
      %v2051 = vadd.f32 %v2047, %v2049
      %v2052 = vadd.f32 %v2048, %v2050
      %v2053 = vtanh.pop %v2051
      %v2054 = vtanh.pop %v2052
      %v2055 = vmul.f32 %v2044, %v2053
      %v2056 = vmul.f32 %v2046, %v2054
      %v2057 = vpack.c.bf16 %v2056, %v2055
      %v2059 = vunpack.c.l.b16 %v2057
      %v2060 = vunpack.c.h.b16 %v2057
      %v2061 = vpack.c.b16 %v2059, %v2059
      %v2062 = vpack.c.b16 %v2060, %v2060
      %s2065 = smul.u32 %s1711, 2
      %s2066 = smul.addr %s2065, 4
      %s2067 = scalar_lea.vmem %s250, %s2066
      %2068 = vst [vmem:[%s2067] sm:$0xf] %v2061
      %2069 = vst [vmem:[%s2067 + $0x4] sm:$0xf] %v2062
      %s2070 = smul.u32 %s17, 4294967293
      %s2071 = sadd.s32 %s2070, 5
      %s2072 = smul.u32 %s2071, 8
      %s2073 = smul.addr %s2072, 8
      %s2074 = scalar_lea.vmem %s226, %s2073
      %v2075 = vld [vmem:[%s2074] sm:$0xff]
      %v2076 = vld [vmem:[%s2074 + $0x8] sm:$0xff]
      %v2077 = vld [vmem:[%s2074 + $0x10] sm:$0xff]
      %v2078 = vld [vmem:[%s2074 + $0x18] sm:$0xff]
      %v2079 = vld [vmem:[%s2074 + $0x20] sm:$0xff]
      %v2080 = vld [vmem:[%s2074 + $0x28] sm:$0xff]
      %v2081 = vld [vmem:[%s2074 + $0x30] sm:$0xff]
      %v2082 = vld [vmem:[%s2074 + $0x38] sm:$0xff]
      %v2083 = vld [vmem:[%s236] sm:$0xff]
      %v2084 = vld [vmem:[%s236 + $0x8] sm:$0xff]
      %v2085 = vld [vmem:[%s236 + $0x10] sm:$0xff]
      %v2086 = vld [vmem:[%s236 + $0x18] sm:$0xff]
      %v2087 = vld [vmem:[%s236 + $0x20] sm:$0xff]
      %v2088 = vld [vmem:[%s236 + $0x28] sm:$0xff]
      %v2089 = vld [vmem:[%s236 + $0x30] sm:$0xff]
      %v2090 = vld [vmem:[%s236 + $0x38] sm:$0xff]
      %v2091 = vld [vmem:[%s236 + $0x40] sm:$0xff]
      %v2092 = vld [vmem:[%s236 + $0x48] sm:$0xff]
      %v2093 = vld [vmem:[%s236 + $0x50] sm:$0xff]
      %v2094 = vld [vmem:[%s236 + $0x58] sm:$0xff]
      %v2095 = vld [vmem:[%s236 + $0x60] sm:$0xff]
      %v2096 = vld [vmem:[%s236 + $0x68] sm:$0xff]
      %v2097 = vld [vmem:[%s236 + $0x70] sm:$0xff]
      %v2098 = vld [vmem:[%s236 + $0x78] sm:$0xff]
      %v2099 = vld [vmem:[%s236 + $0x80] sm:$0xff]
      %v2100 = vld [vmem:[%s236 + $0x88] sm:$0xff]
      %v2101 = vld [vmem:[%s236 + $0x90] sm:$0xff]
      %v2102 = vld [vmem:[%s236 + $0x98] sm:$0xff]
      %v2103 = vld [vmem:[%s236 + $0xa0] sm:$0xff]
      %v2104 = vld [vmem:[%s236 + $0xa8] sm:$0xff]
      %v2105 = vld [vmem:[%s236 + $0xb0] sm:$0xff]
      %v2106 = vld [vmem:[%s236 + $0xb8] sm:$0xff]
      %v2107 = vld [vmem:[%s236 + $0xc0] sm:$0xff]
      %v2108 = vld [vmem:[%s236 + $0xc8] sm:$0xff]
      %v2109 = vld [vmem:[%s236 + $0xd0] sm:$0xff]
      %v2110 = vld [vmem:[%s236 + $0xd8] sm:$0xff]
      %v2111 = vld [vmem:[%s236 + $0xe0] sm:$0xff]
      %v2112 = vld [vmem:[%s236 + $0xe8] sm:$0xff]
      %v2113 = vld [vmem:[%s236 + $0xf0] sm:$0xff]
      %v2114 = vld [vmem:[%s236 + $0xf8] sm:$0xff]
      %v2147 = vunpack.c.l.b16 %v2083
      %v2148 = vunpack.c.h.b16 %v2083
      %v2149 = vunpack.c.l.b16 %v2084
      %v2150 = vunpack.c.h.b16 %v2084
      %v2151 = vunpack.c.l.b16 %v2085
      %v2152 = vunpack.c.h.b16 %v2085
      %v2153 = vunpack.c.l.b16 %v2086
      %v2154 = vunpack.c.h.b16 %v2086
      %v2155 = vunpack.c.l.b16 %v2087
      %v2156 = vunpack.c.h.b16 %v2087
      %v2157 = vunpack.c.l.b16 %v2088
      %v2158 = vunpack.c.h.b16 %v2088
      %v2159 = vunpack.c.l.b16 %v2089
      %v2160 = vunpack.c.h.b16 %v2089
      %v2161 = vunpack.c.l.b16 %v2090
      %v2162 = vunpack.c.h.b16 %v2090
      %v2163 = vunpack.c.l.b16 %v2091
      %v2164 = vunpack.c.h.b16 %v2091
      %v2165 = vunpack.c.l.b16 %v2092
      %v2166 = vunpack.c.h.b16 %v2092
      %v2167 = vunpack.c.l.b16 %v2093
      %v2168 = vunpack.c.h.b16 %v2093
      %v2169 = vunpack.c.l.b16 %v2094
      %v2170 = vunpack.c.h.b16 %v2094
      %v2171 = vunpack.c.l.b16 %v2095
      %v2172 = vunpack.c.h.b16 %v2095
      %v2173 = vunpack.c.l.b16 %v2096
      %v2174 = vunpack.c.h.b16 %v2096
      %v2175 = vunpack.c.l.b16 %v2097
      %v2176 = vunpack.c.h.b16 %v2097
      %v2177 = vunpack.c.l.b16 %v2098
      %v2178 = vunpack.c.h.b16 %v2098
      %v2179 = vunpack.c.l.b16 %v2099
      %v2180 = vunpack.c.h.b16 %v2099
      %v2181 = vunpack.c.l.b16 %v2100
      %v2182 = vunpack.c.h.b16 %v2100
      %v2183 = vunpack.c.l.b16 %v2101
      %v2184 = vunpack.c.h.b16 %v2101
      %v2185 = vunpack.c.l.b16 %v2102
      %v2186 = vunpack.c.h.b16 %v2102
      %v2187 = vunpack.c.l.b16 %v2103
      %v2188 = vunpack.c.h.b16 %v2103
      %v2189 = vunpack.c.l.b16 %v2104
      %v2190 = vunpack.c.h.b16 %v2104
      %v2191 = vunpack.c.l.b16 %v2105
      %v2192 = vunpack.c.h.b16 %v2105
      %v2193 = vunpack.c.l.b16 %v2106
      %v2194 = vunpack.c.h.b16 %v2106
      %v2195 = vunpack.c.l.b16 %v2107
      %v2196 = vunpack.c.h.b16 %v2107
      %v2197 = vunpack.c.l.b16 %v2108
      %v2198 = vunpack.c.h.b16 %v2108
      %v2199 = vunpack.c.l.b16 %v2109
      %v2200 = vunpack.c.h.b16 %v2109
      %v2201 = vunpack.c.l.b16 %v2110
      %v2202 = vunpack.c.h.b16 %v2110
      %v2203 = vunpack.c.l.b16 %v2111
      %v2204 = vunpack.c.h.b16 %v2111
      %v2205 = vunpack.c.l.b16 %v2112
      %v2206 = vunpack.c.h.b16 %v2112
      %v2207 = vunpack.c.l.b16 %v2113
      %v2208 = vunpack.c.h.b16 %v2113
      %v2209 = vunpack.c.l.b16 %v2114
      %v2210 = vunpack.c.h.b16 %v2114
      %v2211 = vpack.c.b16 %v2151, %v2147
      %v2212 = vpack.c.b16 %v2152, %v2148
      %v2213 = vpack.c.b16 %v2153, %v2149
      %v2214 = vpack.c.b16 %v2154, %v2150
      %v2215 = vpack.c.b16 %v2159, %v2155
      %v2216 = vpack.c.b16 %v2160, %v2156
      %v2217 = vpack.c.b16 %v2161, %v2157
      %v2218 = vpack.c.b16 %v2162, %v2158
      %v2219 = vpack.c.b16 %v2167, %v2163
      %v2220 = vpack.c.b16 %v2168, %v2164
      %v2221 = vpack.c.b16 %v2169, %v2165
      %v2222 = vpack.c.b16 %v2170, %v2166
      %v2223 = vpack.c.b16 %v2175, %v2171
      %v2224 = vpack.c.b16 %v2176, %v2172
      %v2225 = vpack.c.b16 %v2177, %v2173
      %v2226 = vpack.c.b16 %v2178, %v2174
      %v2227 = vpack.c.b16 %v2183, %v2179
      %v2228 = vpack.c.b16 %v2184, %v2180
      %v2229 = vpack.c.b16 %v2185, %v2181
      %v2230 = vpack.c.b16 %v2186, %v2182
      %v2231 = vpack.c.b16 %v2191, %v2187
      %v2232 = vpack.c.b16 %v2192, %v2188
      %v2233 = vpack.c.b16 %v2193, %v2189
      %v2234 = vpack.c.b16 %v2194, %v2190
      %v2235 = vpack.c.b16 %v2199, %v2195
      %v2236 = vpack.c.b16 %v2200, %v2196
      %v2237 = vpack.c.b16 %v2201, %v2197
      %v2238 = vpack.c.b16 %v2202, %v2198
      %v2239 = vpack.c.b16 %v2207, %v2203
      %v2240 = vpack.c.b16 %v2208, %v2204
      %v2241 = vpack.c.b16 %v2209, %v2205
      %v2242 = vpack.c.b16 %v2210, %v2206
      %2275 = vmatprep.subr.bf16.mxu0 %v2240
      %2276 = vmatpush1.bf16.msra.mxu0 %v2239
      %2277 = vmatprep.subr.bf16.mxu0 %v2236
      %2278 = vmatpush1.bf16.msra.mxu0 %v2235
      %2279 = vmatprep.subr.bf16.mxu0 %v2232
      %2280 = vmatpush1.bf16.msra.mxu0 %v2231
      %2281 = vmatprep.subr.bf16.mxu0 %v2228
      %2282 = vmatpush1.bf16.msra.mxu0 %v2227
      %2283 = vmatprep.subr.bf16.mxu0 %v2224
      %2284 = vmatpush1.bf16.msra.mxu0 %v2223
      %2285 = vmatprep.subr.bf16.mxu0 %v2220
      %2286 = vmatpush1.bf16.msra.mxu0 %v2219
      %2287 = vmatprep.subr.bf16.mxu0 %v2216
      %2288 = vmatpush1.bf16.msra.mxu0 %v2215
      %2289 = vmatprep.subr.bf16.mxu0 %v2212
      %2290 = vmatpush1.bf16.msra.mxu0 %v2211
      %2291 = vmatprep.subr.bf16.mxu0 0
      %2292 = vmatpush2.bf16.msra.mxu0 0
      %2293 = vmatprep.subr.bf16.mxu0 0
      %2294 = vmatpush2.bf16.msra.mxu0 0
      %2295 = vmatprep.subr.bf16.mxu0 0
      %2296 = vmatpush2.bf16.msra.mxu0 0
      %2297 = vmatprep.subr.bf16.mxu0 0
      %2298 = vmatpush2.bf16.msra.mxu0 0
      %2299 = vmatprep.subr.bf16.mxu0 0
      %2300 = vmatpush2.bf16.msra.mxu0 0
      %2301 = vmatprep.subr.bf16.mxu0 0
      %2302 = vmatpush2.bf16.msra.mxu0 0
      %2303 = vmatprep.subr.bf16.mxu0 0
      %2304 = vmatpush2.bf16.msra.mxu0 0
      %2305 = vmatprep.subr.bf16.mxu0 0
      %2306 = vmatpush2.bf16.msra.mxu0 0
      %2307 = vmatprep.mubr.bf16.mxu0 0
      %2308 = vmatmul.mubr.bf16.gmra.mxu0 %v2057
      %v2309 = vpop.f32.mrf.mxu0
      %v2310 = vadd.f32 0.0, %v2309
      %v2311 = vpop.f32.mrf.mxu0
      %v2312 = vadd.f32 0.0, %v2311
      %v2313 = vpop.f32.mrf.mxu0
      %v2314 = vadd.f32 0.0, %v2313
      %v2315 = vpop.f32.mrf.mxu0
      %v2316 = vadd.f32 0.0, %v2315
      %2317 = vdwg.mxu0
      %2318 = vmatprep.subr.bf16.mxu0 %v2242
      %2319 = vmatpush1.bf16.msra.mxu0 %v2241
      %2320 = vmatprep.subr.bf16.mxu0 %v2238
      %2321 = vmatpush1.bf16.msra.mxu0 %v2237
      %2322 = vmatprep.subr.bf16.mxu0 %v2234
      %2323 = vmatpush1.bf16.msra.mxu0 %v2233
      %2324 = vmatprep.subr.bf16.mxu0 %v2230
      %2325 = vmatpush1.bf16.msra.mxu0 %v2229
      %2326 = vmatprep.subr.bf16.mxu0 %v2226
      %2327 = vmatpush1.bf16.msra.mxu0 %v2225
      %2328 = vmatprep.subr.bf16.mxu0 %v2222
      %2329 = vmatpush1.bf16.msra.mxu0 %v2221
      %2330 = vmatprep.subr.bf16.mxu0 %v2218
      %2331 = vmatpush1.bf16.msra.mxu0 %v2217
      %2332 = vmatprep.subr.bf16.mxu0 %v2214
      %2333 = vmatpush1.bf16.msra.mxu0 %v2213
      %2334 = vmatprep.subr.bf16.mxu0 0
      %2335 = vmatpush2.bf16.msra.mxu0 0
      %2336 = vmatprep.subr.bf16.mxu0 0
      %2337 = vmatpush2.bf16.msra.mxu0 0
      %2338 = vmatprep.subr.bf16.mxu0 0
      %2339 = vmatpush2.bf16.msra.mxu0 0
      %2340 = vmatprep.subr.bf16.mxu0 0
      %2341 = vmatpush2.bf16.msra.mxu0 0
      %2342 = vmatprep.subr.bf16.mxu0 0
      %2343 = vmatpush2.bf16.msra.mxu0 0
      %2344 = vmatprep.subr.bf16.mxu0 0
      %2345 = vmatpush2.bf16.msra.mxu0 0
      %2346 = vmatprep.subr.bf16.mxu0 0
      %2347 = vmatpush2.bf16.msra.mxu0 0
      %2348 = vmatprep.subr.bf16.mxu0 0
      %2349 = vmatpush2.bf16.msra.mxu0 0
      %2350 = vmatprep.mubr.bf16.mxu0 0
      %2351 = vmatmul.mubr.bf16.gmra.mxu0 %v2057
      %v2352 = vpop.f32.mrf.mxu0
      %v2353 = vadd.f32 0.0, %v2352
      %v2354 = vpop.f32.mrf.mxu0
      %v2355 = vadd.f32 0.0, %v2354
      %v2356 = vpop.f32.mrf.mxu0
      %v2357 = vadd.f32 0.0, %v2356
      %v2358 = vpop.f32.mrf.mxu0
      %v2359 = vadd.f32 0.0, %v2358
      %2360 = vdwg.mxu0
      %v2361 = vadd.f32 %v2075, %v2310
      %v2362 = vadd.f32 %v2076, %v2312
      %v2363 = vadd.f32 %v2077, %v2353
      %v2364 = vadd.f32 %v2078, %v2355
      %v2365 = vadd.f32 %v2079, %v2314
      %v2366 = vadd.f32 %v2080, %v2316
      %v2367 = vadd.f32 %v2081, %v2357
      %v2368 = vadd.f32 %v2082, %v2359
      %v2369 = vxor.u32 %v2361, 2147483648
      %v2370 = vxor.u32 %v2365, 2147483648
      %v2371 = vmul.f32 %v2369, 1.442695
      %v2372 = vpow.pop %v2371
      %v2373 = vmul.f32 %v2370, 1.442695
      %v2374 = vpow.pop %v2373
      %v2375 = vadd.f32 %v2372, 1.0
      %v2376 = vadd.f32 %v2374, 1.0
      %v2377 = vrcp.pop %v2375
      %v2378 = vmul.f32 1.0, %v2377
      %v2379 = vrcp.pop %v2376
      %v2380 = vmul.f32 1.0, %v2379
      %v2381 = vxor.u32 %v2362, 2147483648
      %v2382 = vxor.u32 %v2366, 2147483648
      %v2383 = vmul.f32 %v2381, 1.442695
      %v2384 = vpow.pop %v2383
      %v2385 = vmul.f32 %v2382, 1.442695
      %v2386 = vpow.pop %v2385
      %v2387 = vadd.f32 %v2384, 1.0
      %v2388 = vadd.f32 %v2386, 1.0
      %v2389 = vrcp.pop %v2387
      %v2390 = vmul.f32 1.0, %v2389
      %v2391 = vrcp.pop %v2388
      %v2392 = vmul.f32 1.0, %v2391
      %v2393 = vtanh.pop %v2363
      %v2394 = vtanh.pop %v2367
      %v2395 = vxor.u32 %v2364, 2147483648
      %v2396 = vxor.u32 %v2368, 2147483648
      %v2397 = vmul.f32 %v2395, 1.442695
      %v2398 = vpow.pop %v2397
      %v2399 = vmul.f32 %v2396, 1.442695
      %v2400 = vpow.pop %v2399
      %v2401 = vadd.f32 %v2398, 1.0
      %v2402 = vadd.f32 %v2400, 1.0
      %v2403 = vrcp.pop %v2401
      %v2404 = vmul.f32 1.0, %v2403
      %v2405 = vrcp.pop %v2402
      %v2406 = vmul.f32 1.0, %v2405
      %v2407 = vmul.f32 %v2390, %v2051
      %v2408 = vmul.f32 %v2392, %v2052
      %v2409 = vmul.f32 %v2378, %v2393
      %v2410 = vmul.f32 %v2380, %v2394
      %v2411 = vadd.f32 %v2407, %v2409
      %v2412 = vadd.f32 %v2408, %v2410
      %v2413 = vtanh.pop %v2411
      %v2414 = vtanh.pop %v2412
      %v2415 = vmul.f32 %v2404, %v2413
      %v2416 = vmul.f32 %v2406, %v2414
      %v2417 = vpack.c.bf16 %v2416, %v2415
      %v2419 = vunpack.c.l.b16 %v2417
      %v2420 = vunpack.c.h.b16 %v2417
      %v2421 = vpack.c.b16 %v2419, %v2419
      %v2422 = vpack.c.b16 %v2420, %v2420
      %s2425 = smul.u32 %s2071, 2
      %s2426 = smul.addr %s2425, 4
      %s2427 = scalar_lea.vmem %s250, %s2426
      %2428 = vst [vmem:[%s2427] sm:$0xf] %v2421
      %2429 = vst [vmem:[%s2427 + $0x4] sm:$0xf] %v2422
      %s2430 = smul.u32 %s17, 4294967291
      %s2431 = sadd.s32 %s2430, 6
      %s2432 = smul.u32 %s2431, 8
      %s2433 = smul.addr %s2432, 8
      %s2434 = scalar_lea.vmem %s226, %s2433
      %v2435 = vld [vmem:[%s2434] sm:$0xff]
      %v2436 = vld [vmem:[%s2434 + $0x8] sm:$0xff]
      %v2437 = vld [vmem:[%s2434 + $0x10] sm:$0xff]
      %v2438 = vld [vmem:[%s2434 + $0x18] sm:$0xff]
      %v2439 = vld [vmem:[%s2434 + $0x20] sm:$0xff]
      %v2440 = vld [vmem:[%s2434 + $0x28] sm:$0xff]
      %v2441 = vld [vmem:[%s2434 + $0x30] sm:$0xff]
      %v2442 = vld [vmem:[%s2434 + $0x38] sm:$0xff]
      %v2443 = vld [vmem:[%s236] sm:$0xff]
      %v2444 = vld [vmem:[%s236 + $0x8] sm:$0xff]
      %v2445 = vld [vmem:[%s236 + $0x10] sm:$0xff]
      %v2446 = vld [vmem:[%s236 + $0x18] sm:$0xff]
      %v2447 = vld [vmem:[%s236 + $0x20] sm:$0xff]
      %v2448 = vld [vmem:[%s236 + $0x28] sm:$0xff]
      %v2449 = vld [vmem:[%s236 + $0x30] sm:$0xff]
      %v2450 = vld [vmem:[%s236 + $0x38] sm:$0xff]
      %v2451 = vld [vmem:[%s236 + $0x40] sm:$0xff]
      %v2452 = vld [vmem:[%s236 + $0x48] sm:$0xff]
      %v2453 = vld [vmem:[%s236 + $0x50] sm:$0xff]
      %v2454 = vld [vmem:[%s236 + $0x58] sm:$0xff]
      %v2455 = vld [vmem:[%s236 + $0x60] sm:$0xff]
      %v2456 = vld [vmem:[%s236 + $0x68] sm:$0xff]
      %v2457 = vld [vmem:[%s236 + $0x70] sm:$0xff]
      %v2458 = vld [vmem:[%s236 + $0x78] sm:$0xff]
      %v2459 = vld [vmem:[%s236 + $0x80] sm:$0xff]
      %v2460 = vld [vmem:[%s236 + $0x88] sm:$0xff]
      %v2461 = vld [vmem:[%s236 + $0x90] sm:$0xff]
      %v2462 = vld [vmem:[%s236 + $0x98] sm:$0xff]
      %v2463 = vld [vmem:[%s236 + $0xa0] sm:$0xff]
      %v2464 = vld [vmem:[%s236 + $0xa8] sm:$0xff]
      %v2465 = vld [vmem:[%s236 + $0xb0] sm:$0xff]
      %v2466 = vld [vmem:[%s236 + $0xb8] sm:$0xff]
      %v2467 = vld [vmem:[%s236 + $0xc0] sm:$0xff]
      %v2468 = vld [vmem:[%s236 + $0xc8] sm:$0xff]
      %v2469 = vld [vmem:[%s236 + $0xd0] sm:$0xff]
      %v2470 = vld [vmem:[%s236 + $0xd8] sm:$0xff]
      %v2471 = vld [vmem:[%s236 + $0xe0] sm:$0xff]
      %v2472 = vld [vmem:[%s236 + $0xe8] sm:$0xff]
      %v2473 = vld [vmem:[%s236 + $0xf0] sm:$0xff]
      %v2474 = vld [vmem:[%s236 + $0xf8] sm:$0xff]
      %v2507 = vunpack.c.l.b16 %v2443
      %v2508 = vunpack.c.h.b16 %v2443
      %v2509 = vunpack.c.l.b16 %v2444
      %v2510 = vunpack.c.h.b16 %v2444
      %v2511 = vunpack.c.l.b16 %v2445
      %v2512 = vunpack.c.h.b16 %v2445
      %v2513 = vunpack.c.l.b16 %v2446
      %v2514 = vunpack.c.h.b16 %v2446
      %v2515 = vunpack.c.l.b16 %v2447
      %v2516 = vunpack.c.h.b16 %v2447
      %v2517 = vunpack.c.l.b16 %v2448
      %v2518 = vunpack.c.h.b16 %v2448
      %v2519 = vunpack.c.l.b16 %v2449
      %v2520 = vunpack.c.h.b16 %v2449
      %v2521 = vunpack.c.l.b16 %v2450
      %v2522 = vunpack.c.h.b16 %v2450
      %v2523 = vunpack.c.l.b16 %v2451
      %v2524 = vunpack.c.h.b16 %v2451
      %v2525 = vunpack.c.l.b16 %v2452
      %v2526 = vunpack.c.h.b16 %v2452
      %v2527 = vunpack.c.l.b16 %v2453
      %v2528 = vunpack.c.h.b16 %v2453
      %v2529 = vunpack.c.l.b16 %v2454
      %v2530 = vunpack.c.h.b16 %v2454
      %v2531 = vunpack.c.l.b16 %v2455
      %v2532 = vunpack.c.h.b16 %v2455
      %v2533 = vunpack.c.l.b16 %v2456
      %v2534 = vunpack.c.h.b16 %v2456
      %v2535 = vunpack.c.l.b16 %v2457
      %v2536 = vunpack.c.h.b16 %v2457
      %v2537 = vunpack.c.l.b16 %v2458
      %v2538 = vunpack.c.h.b16 %v2458
      %v2539 = vunpack.c.l.b16 %v2459
      %v2540 = vunpack.c.h.b16 %v2459
      %v2541 = vunpack.c.l.b16 %v2460
      %v2542 = vunpack.c.h.b16 %v2460
      %v2543 = vunpack.c.l.b16 %v2461
      %v2544 = vunpack.c.h.b16 %v2461
      %v2545 = vunpack.c.l.b16 %v2462
      %v2546 = vunpack.c.h.b16 %v2462
      %v2547 = vunpack.c.l.b16 %v2463
      %v2548 = vunpack.c.h.b16 %v2463
      %v2549 = vunpack.c.l.b16 %v2464
      %v2550 = vunpack.c.h.b16 %v2464
      %v2551 = vunpack.c.l.b16 %v2465
      %v2552 = vunpack.c.h.b16 %v2465
      %v2553 = vunpack.c.l.b16 %v2466
      %v2554 = vunpack.c.h.b16 %v2466
      %v2555 = vunpack.c.l.b16 %v2467
      %v2556 = vunpack.c.h.b16 %v2467
      %v2557 = vunpack.c.l.b16 %v2468
      %v2558 = vunpack.c.h.b16 %v2468
      %v2559 = vunpack.c.l.b16 %v2469
      %v2560 = vunpack.c.h.b16 %v2469
      %v2561 = vunpack.c.l.b16 %v2470
      %v2562 = vunpack.c.h.b16 %v2470
      %v2563 = vunpack.c.l.b16 %v2471
      %v2564 = vunpack.c.h.b16 %v2471
      %v2565 = vunpack.c.l.b16 %v2472
      %v2566 = vunpack.c.h.b16 %v2472
      %v2567 = vunpack.c.l.b16 %v2473
      %v2568 = vunpack.c.h.b16 %v2473
      %v2569 = vunpack.c.l.b16 %v2474
      %v2570 = vunpack.c.h.b16 %v2474
      %v2571 = vpack.c.b16 %v2511, %v2507
      %v2572 = vpack.c.b16 %v2512, %v2508
      %v2573 = vpack.c.b16 %v2513, %v2509
      %v2574 = vpack.c.b16 %v2514, %v2510
      %v2575 = vpack.c.b16 %v2519, %v2515
      %v2576 = vpack.c.b16 %v2520, %v2516
      %v2577 = vpack.c.b16 %v2521, %v2517
      %v2578 = vpack.c.b16 %v2522, %v2518
      %v2579 = vpack.c.b16 %v2527, %v2523
      %v2580 = vpack.c.b16 %v2528, %v2524
      %v2581 = vpack.c.b16 %v2529, %v2525
      %v2582 = vpack.c.b16 %v2530, %v2526
      %v2583 = vpack.c.b16 %v2535, %v2531
      %v2584 = vpack.c.b16 %v2536, %v2532
      %v2585 = vpack.c.b16 %v2537, %v2533
      %v2586 = vpack.c.b16 %v2538, %v2534
      %v2587 = vpack.c.b16 %v2543, %v2539
      %v2588 = vpack.c.b16 %v2544, %v2540
      %v2589 = vpack.c.b16 %v2545, %v2541
      %v2590 = vpack.c.b16 %v2546, %v2542
      %v2591 = vpack.c.b16 %v2551, %v2547
      %v2592 = vpack.c.b16 %v2552, %v2548
      %v2593 = vpack.c.b16 %v2553, %v2549
      %v2594 = vpack.c.b16 %v2554, %v2550
      %v2595 = vpack.c.b16 %v2559, %v2555
      %v2596 = vpack.c.b16 %v2560, %v2556
      %v2597 = vpack.c.b16 %v2561, %v2557
      %v2598 = vpack.c.b16 %v2562, %v2558
      %v2599 = vpack.c.b16 %v2567, %v2563
      %v2600 = vpack.c.b16 %v2568, %v2564
      %v2601 = vpack.c.b16 %v2569, %v2565
      %v2602 = vpack.c.b16 %v2570, %v2566
      %2635 = vmatprep.subr.bf16.mxu0 %v2600
      %2636 = vmatpush1.bf16.msra.mxu0 %v2599
      %2637 = vmatprep.subr.bf16.mxu0 %v2596
      %2638 = vmatpush1.bf16.msra.mxu0 %v2595
      %2639 = vmatprep.subr.bf16.mxu0 %v2592
      %2640 = vmatpush1.bf16.msra.mxu0 %v2591
      %2641 = vmatprep.subr.bf16.mxu0 %v2588
      %2642 = vmatpush1.bf16.msra.mxu0 %v2587
      %2643 = vmatprep.subr.bf16.mxu0 %v2584
      %2644 = vmatpush1.bf16.msra.mxu0 %v2583
      %2645 = vmatprep.subr.bf16.mxu0 %v2580
      %2646 = vmatpush1.bf16.msra.mxu0 %v2579
      %2647 = vmatprep.subr.bf16.mxu0 %v2576
      %2648 = vmatpush1.bf16.msra.mxu0 %v2575
      %2649 = vmatprep.subr.bf16.mxu0 %v2572
      %2650 = vmatpush1.bf16.msra.mxu0 %v2571
      %2651 = vmatprep.subr.bf16.mxu0 0
      %2652 = vmatpush2.bf16.msra.mxu0 0
      %2653 = vmatprep.subr.bf16.mxu0 0
      %2654 = vmatpush2.bf16.msra.mxu0 0
      %2655 = vmatprep.subr.bf16.mxu0 0
      %2656 = vmatpush2.bf16.msra.mxu0 0
      %2657 = vmatprep.subr.bf16.mxu0 0
      %2658 = vmatpush2.bf16.msra.mxu0 0
      %2659 = vmatprep.subr.bf16.mxu0 0
      %2660 = vmatpush2.bf16.msra.mxu0 0
      %2661 = vmatprep.subr.bf16.mxu0 0
      %2662 = vmatpush2.bf16.msra.mxu0 0
      %2663 = vmatprep.subr.bf16.mxu0 0
      %2664 = vmatpush2.bf16.msra.mxu0 0
      %2665 = vmatprep.subr.bf16.mxu0 0
      %2666 = vmatpush2.bf16.msra.mxu0 0
      %2667 = vmatprep.mubr.bf16.mxu0 0
      %2668 = vmatmul.mubr.bf16.gmra.mxu0 %v2417
      %v2669 = vpop.f32.mrf.mxu0
      %v2670 = vadd.f32 0.0, %v2669
      %v2671 = vpop.f32.mrf.mxu0
      %v2672 = vadd.f32 0.0, %v2671
      %v2673 = vpop.f32.mrf.mxu0
      %v2674 = vadd.f32 0.0, %v2673
      %v2675 = vpop.f32.mrf.mxu0
      %v2676 = vadd.f32 0.0, %v2675
      %2677 = vdwg.mxu0
      %2678 = vmatprep.subr.bf16.mxu0 %v2602
      %2679 = vmatpush1.bf16.msra.mxu0 %v2601
      %2680 = vmatprep.subr.bf16.mxu0 %v2598
      %2681 = vmatpush1.bf16.msra.mxu0 %v2597
      %2682 = vmatprep.subr.bf16.mxu0 %v2594
      %2683 = vmatpush1.bf16.msra.mxu0 %v2593
      %2684 = vmatprep.subr.bf16.mxu0 %v2590
      %2685 = vmatpush1.bf16.msra.mxu0 %v2589
      %2686 = vmatprep.subr.bf16.mxu0 %v2586
      %2687 = vmatpush1.bf16.msra.mxu0 %v2585
      %2688 = vmatprep.subr.bf16.mxu0 %v2582
      %2689 = vmatpush1.bf16.msra.mxu0 %v2581
      %2690 = vmatprep.subr.bf16.mxu0 %v2578
      %2691 = vmatpush1.bf16.msra.mxu0 %v2577
      %2692 = vmatprep.subr.bf16.mxu0 %v2574
      %2693 = vmatpush1.bf16.msra.mxu0 %v2573
      %2694 = vmatprep.subr.bf16.mxu0 0
      %2695 = vmatpush2.bf16.msra.mxu0 0
      %2696 = vmatprep.subr.bf16.mxu0 0
      %2697 = vmatpush2.bf16.msra.mxu0 0
      %2698 = vmatprep.subr.bf16.mxu0 0
      %2699 = vmatpush2.bf16.msra.mxu0 0
      %2700 = vmatprep.subr.bf16.mxu0 0
      %2701 = vmatpush2.bf16.msra.mxu0 0
      %2702 = vmatprep.subr.bf16.mxu0 0
      %2703 = vmatpush2.bf16.msra.mxu0 0
      %2704 = vmatprep.subr.bf16.mxu0 0
      %2705 = vmatpush2.bf16.msra.mxu0 0
      %2706 = vmatprep.subr.bf16.mxu0 0
      %2707 = vmatpush2.bf16.msra.mxu0 0
      %2708 = vmatprep.subr.bf16.mxu0 0
      %2709 = vmatpush2.bf16.msra.mxu0 0
      %2710 = vmatprep.mubr.bf16.mxu0 0
      %2711 = vmatmul.mubr.bf16.gmra.mxu0 %v2417
      %v2712 = vpop.f32.mrf.mxu0
      %v2713 = vadd.f32 0.0, %v2712
      %v2714 = vpop.f32.mrf.mxu0
      %v2715 = vadd.f32 0.0, %v2714
      %v2716 = vpop.f32.mrf.mxu0
      %v2717 = vadd.f32 0.0, %v2716
      %v2718 = vpop.f32.mrf.mxu0
      %v2719 = vadd.f32 0.0, %v2718
      %2720 = vdwg.mxu0
      %v2721 = vadd.f32 %v2435, %v2670
      %v2722 = vadd.f32 %v2436, %v2672
      %v2723 = vadd.f32 %v2437, %v2713
      %v2724 = vadd.f32 %v2438, %v2715
      %v2725 = vadd.f32 %v2439, %v2674
      %v2726 = vadd.f32 %v2440, %v2676
      %v2727 = vadd.f32 %v2441, %v2717
      %v2728 = vadd.f32 %v2442, %v2719
      %v2729 = vxor.u32 %v2721, 2147483648
      %v2730 = vxor.u32 %v2725, 2147483648
      %v2731 = vmul.f32 %v2729, 1.442695
      %v2732 = vpow.pop %v2731
      %v2733 = vmul.f32 %v2730, 1.442695
      %v2734 = vpow.pop %v2733
      %v2735 = vadd.f32 %v2732, 1.0
      %v2736 = vadd.f32 %v2734, 1.0
      %v2737 = vrcp.pop %v2735
      %v2738 = vmul.f32 1.0, %v2737
      %v2739 = vrcp.pop %v2736
      %v2740 = vmul.f32 1.0, %v2739
      %v2741 = vxor.u32 %v2722, 2147483648
      %v2742 = vxor.u32 %v2726, 2147483648
      %v2743 = vmul.f32 %v2741, 1.442695
      %v2744 = vpow.pop %v2743
      %v2745 = vmul.f32 %v2742, 1.442695
      %v2746 = vpow.pop %v2745
      %v2747 = vadd.f32 %v2744, 1.0
      %v2748 = vadd.f32 %v2746, 1.0
      %v2749 = vrcp.pop %v2747
      %v2750 = vmul.f32 1.0, %v2749
      %v2751 = vrcp.pop %v2748
      %v2752 = vmul.f32 1.0, %v2751
      %v2753 = vtanh.pop %v2723
      %v2754 = vtanh.pop %v2727
      %v2755 = vxor.u32 %v2724, 2147483648
      %v2756 = vxor.u32 %v2728, 2147483648
      %v2757 = vmul.f32 %v2755, 1.442695
      %v2758 = vpow.pop %v2757
      %v2759 = vmul.f32 %v2756, 1.442695
      %v2760 = vpow.pop %v2759
      %v2761 = vadd.f32 %v2758, 1.0
      %v2762 = vadd.f32 %v2760, 1.0
      %v2763 = vrcp.pop %v2761
      %v2764 = vmul.f32 1.0, %v2763
      %v2765 = vrcp.pop %v2762
      %v2766 = vmul.f32 1.0, %v2765
      %v2767 = vmul.f32 %v2750, %v2411
      %v2768 = vmul.f32 %v2752, %v2412
      %v2769 = vmul.f32 %v2738, %v2753
      %v2770 = vmul.f32 %v2740, %v2754
      %v2771 = vadd.f32 %v2767, %v2769
      %v2772 = vadd.f32 %v2768, %v2770
      %v2773 = vtanh.pop %v2771
      %v2774 = vtanh.pop %v2772
      %v2775 = vmul.f32 %v2764, %v2773
      %v2776 = vmul.f32 %v2766, %v2774
      %v2777 = vpack.c.bf16 %v2776, %v2775
      %v2779 = vunpack.c.l.b16 %v2777
      %v2780 = vunpack.c.h.b16 %v2777
      %v2781 = vpack.c.b16 %v2779, %v2779
      %v2782 = vpack.c.b16 %v2780, %v2780
      %s2785 = smul.u32 %s2431, 2
      %s2786 = smul.addr %s2785, 4
      %s2787 = scalar_lea.vmem %s250, %s2786
      %2788 = vst [vmem:[%s2787] sm:$0xf] %v2781
      %2789 = vst [vmem:[%s2787 + $0x4] sm:$0xf] %v2782
      %s2790 = smul.u32 %s17, 4294967289
      %s2791 = sadd.s32 %s2790, 7
      %s2792 = smul.u32 %s2791, 8
      %s2793 = smul.addr %s2792, 8
      %s2794 = scalar_lea.vmem %s226, %s2793
      %v2795 = vld [vmem:[%s2794] sm:$0xff]
      %v2796 = vld [vmem:[%s2794 + $0x8] sm:$0xff]
      %v2797 = vld [vmem:[%s2794 + $0x10] sm:$0xff]
      %v2798 = vld [vmem:[%s2794 + $0x18] sm:$0xff]
      %v2799 = vld [vmem:[%s2794 + $0x20] sm:$0xff]
      %v2800 = vld [vmem:[%s2794 + $0x28] sm:$0xff]
      %v2801 = vld [vmem:[%s2794 + $0x30] sm:$0xff]
      %v2802 = vld [vmem:[%s2794 + $0x38] sm:$0xff]
      %v2803 = vld [vmem:[%s236] sm:$0xff]
      %v2804 = vld [vmem:[%s236 + $0x8] sm:$0xff]
      %v2805 = vld [vmem:[%s236 + $0x10] sm:$0xff]
      %v2806 = vld [vmem:[%s236 + $0x18] sm:$0xff]
      %v2807 = vld [vmem:[%s236 + $0x20] sm:$0xff]
      %v2808 = vld [vmem:[%s236 + $0x28] sm:$0xff]
      %v2809 = vld [vmem:[%s236 + $0x30] sm:$0xff]
      %v2810 = vld [vmem:[%s236 + $0x38] sm:$0xff]
      %v2811 = vld [vmem:[%s236 + $0x40] sm:$0xff]
      %v2812 = vld [vmem:[%s236 + $0x48] sm:$0xff]
      %v2813 = vld [vmem:[%s236 + $0x50] sm:$0xff]
      %v2814 = vld [vmem:[%s236 + $0x58] sm:$0xff]
      %v2815 = vld [vmem:[%s236 + $0x60] sm:$0xff]
      %v2816 = vld [vmem:[%s236 + $0x68] sm:$0xff]
      %v2817 = vld [vmem:[%s236 + $0x70] sm:$0xff]
      %v2818 = vld [vmem:[%s236 + $0x78] sm:$0xff]
      %v2819 = vld [vmem:[%s236 + $0x80] sm:$0xff]
      %v2820 = vld [vmem:[%s236 + $0x88] sm:$0xff]
      %v2821 = vld [vmem:[%s236 + $0x90] sm:$0xff]
      %v2822 = vld [vmem:[%s236 + $0x98] sm:$0xff]
      %v2823 = vld [vmem:[%s236 + $0xa0] sm:$0xff]
      %v2824 = vld [vmem:[%s236 + $0xa8] sm:$0xff]
      %v2825 = vld [vmem:[%s236 + $0xb0] sm:$0xff]
      %v2826 = vld [vmem:[%s236 + $0xb8] sm:$0xff]
      %v2827 = vld [vmem:[%s236 + $0xc0] sm:$0xff]
      %v2828 = vld [vmem:[%s236 + $0xc8] sm:$0xff]
      %v2829 = vld [vmem:[%s236 + $0xd0] sm:$0xff]
      %v2830 = vld [vmem:[%s236 + $0xd8] sm:$0xff]
      %v2831 = vld [vmem:[%s236 + $0xe0] sm:$0xff]
      %v2832 = vld [vmem:[%s236 + $0xe8] sm:$0xff]
      %v2833 = vld [vmem:[%s236 + $0xf0] sm:$0xff]
      %v2834 = vld [vmem:[%s236 + $0xf8] sm:$0xff]
      %v2867 = vunpack.c.l.b16 %v2803
      %v2868 = vunpack.c.h.b16 %v2803
      %v2869 = vunpack.c.l.b16 %v2804
      %v2870 = vunpack.c.h.b16 %v2804
      %v2871 = vunpack.c.l.b16 %v2805
      %v2872 = vunpack.c.h.b16 %v2805
      %v2873 = vunpack.c.l.b16 %v2806
      %v2874 = vunpack.c.h.b16 %v2806
      %v2875 = vunpack.c.l.b16 %v2807
      %v2876 = vunpack.c.h.b16 %v2807
      %v2877 = vunpack.c.l.b16 %v2808
      %v2878 = vunpack.c.h.b16 %v2808
      %v2879 = vunpack.c.l.b16 %v2809
      %v2880 = vunpack.c.h.b16 %v2809
      %v2881 = vunpack.c.l.b16 %v2810
      %v2882 = vunpack.c.h.b16 %v2810
      %v2883 = vunpack.c.l.b16 %v2811
      %v2884 = vunpack.c.h.b16 %v2811
      %v2885 = vunpack.c.l.b16 %v2812
      %v2886 = vunpack.c.h.b16 %v2812
      %v2887 = vunpack.c.l.b16 %v2813
      %v2888 = vunpack.c.h.b16 %v2813
      %v2889 = vunpack.c.l.b16 %v2814
      %v2890 = vunpack.c.h.b16 %v2814
      %v2891 = vunpack.c.l.b16 %v2815
      %v2892 = vunpack.c.h.b16 %v2815
      %v2893 = vunpack.c.l.b16 %v2816
      %v2894 = vunpack.c.h.b16 %v2816
      %v2895 = vunpack.c.l.b16 %v2817
      %v2896 = vunpack.c.h.b16 %v2817
      %v2897 = vunpack.c.l.b16 %v2818
      %v2898 = vunpack.c.h.b16 %v2818
      %v2899 = vunpack.c.l.b16 %v2819
      %v2900 = vunpack.c.h.b16 %v2819
      %v2901 = vunpack.c.l.b16 %v2820
      %v2902 = vunpack.c.h.b16 %v2820
      %v2903 = vunpack.c.l.b16 %v2821
      %v2904 = vunpack.c.h.b16 %v2821
      %v2905 = vunpack.c.l.b16 %v2822
      %v2906 = vunpack.c.h.b16 %v2822
      %v2907 = vunpack.c.l.b16 %v2823
      %v2908 = vunpack.c.h.b16 %v2823
      %v2909 = vunpack.c.l.b16 %v2824
      %v2910 = vunpack.c.h.b16 %v2824
      %v2911 = vunpack.c.l.b16 %v2825
      %v2912 = vunpack.c.h.b16 %v2825
      %v2913 = vunpack.c.l.b16 %v2826
      %v2914 = vunpack.c.h.b16 %v2826
      %v2915 = vunpack.c.l.b16 %v2827
      %v2916 = vunpack.c.h.b16 %v2827
      %v2917 = vunpack.c.l.b16 %v2828
      %v2918 = vunpack.c.h.b16 %v2828
      %v2919 = vunpack.c.l.b16 %v2829
      %v2920 = vunpack.c.h.b16 %v2829
      %v2921 = vunpack.c.l.b16 %v2830
      %v2922 = vunpack.c.h.b16 %v2830
      %v2923 = vunpack.c.l.b16 %v2831
      %v2924 = vunpack.c.h.b16 %v2831
      %v2925 = vunpack.c.l.b16 %v2832
      %v2926 = vunpack.c.h.b16 %v2832
      %v2927 = vunpack.c.l.b16 %v2833
      %v2928 = vunpack.c.h.b16 %v2833
      %v2929 = vunpack.c.l.b16 %v2834
      %v2930 = vunpack.c.h.b16 %v2834
      %v2931 = vpack.c.b16 %v2871, %v2867
      %v2932 = vpack.c.b16 %v2872, %v2868
      %v2933 = vpack.c.b16 %v2873, %v2869
      %v2934 = vpack.c.b16 %v2874, %v2870
      %v2935 = vpack.c.b16 %v2879, %v2875
      %v2936 = vpack.c.b16 %v2880, %v2876
      %v2937 = vpack.c.b16 %v2881, %v2877
      %v2938 = vpack.c.b16 %v2882, %v2878
      %v2939 = vpack.c.b16 %v2887, %v2883
      %v2940 = vpack.c.b16 %v2888, %v2884
      %v2941 = vpack.c.b16 %v2889, %v2885
      %v2942 = vpack.c.b16 %v2890, %v2886
      %v2943 = vpack.c.b16 %v2895, %v2891
      %v2944 = vpack.c.b16 %v2896, %v2892
      %v2945 = vpack.c.b16 %v2897, %v2893
      %v2946 = vpack.c.b16 %v2898, %v2894
      %v2947 = vpack.c.b16 %v2903, %v2899
      %v2948 = vpack.c.b16 %v2904, %v2900
      %v2949 = vpack.c.b16 %v2905, %v2901
      %v2950 = vpack.c.b16 %v2906, %v2902
      %v2951 = vpack.c.b16 %v2911, %v2907
      %v2952 = vpack.c.b16 %v2912, %v2908
      %v2953 = vpack.c.b16 %v2913, %v2909
      %v2954 = vpack.c.b16 %v2914, %v2910
      %v2955 = vpack.c.b16 %v2919, %v2915
      %v2956 = vpack.c.b16 %v2920, %v2916
      %v2957 = vpack.c.b16 %v2921, %v2917
      %v2958 = vpack.c.b16 %v2922, %v2918
      %v2959 = vpack.c.b16 %v2927, %v2923
      %v2960 = vpack.c.b16 %v2928, %v2924
      %v2961 = vpack.c.b16 %v2929, %v2925
      %v2962 = vpack.c.b16 %v2930, %v2926
      %2995 = vmatprep.subr.bf16.mxu0 %v2960
      %2996 = vmatpush1.bf16.msra.mxu0 %v2959
      %2997 = vmatprep.subr.bf16.mxu0 %v2956
      %2998 = vmatpush1.bf16.msra.mxu0 %v2955
      %2999 = vmatprep.subr.bf16.mxu0 %v2952
      %3000 = vmatpush1.bf16.msra.mxu0 %v2951
      %3001 = vmatprep.subr.bf16.mxu0 %v2948
      %3002 = vmatpush1.bf16.msra.mxu0 %v2947
      %3003 = vmatprep.subr.bf16.mxu0 %v2944
      %3004 = vmatpush1.bf16.msra.mxu0 %v2943
      %3005 = vmatprep.subr.bf16.mxu0 %v2940
      %3006 = vmatpush1.bf16.msra.mxu0 %v2939
      %3007 = vmatprep.subr.bf16.mxu0 %v2936
      %3008 = vmatpush1.bf16.msra.mxu0 %v2935
      %3009 = vmatprep.subr.bf16.mxu0 %v2932
      %3010 = vmatpush1.bf16.msra.mxu0 %v2931
      %3011 = vmatprep.subr.bf16.mxu0 0
      %3012 = vmatpush2.bf16.msra.mxu0 0
      %3013 = vmatprep.subr.bf16.mxu0 0
      %3014 = vmatpush2.bf16.msra.mxu0 0
      %3015 = vmatprep.subr.bf16.mxu0 0
      %3016 = vmatpush2.bf16.msra.mxu0 0
      %3017 = vmatprep.subr.bf16.mxu0 0
      %3018 = vmatpush2.bf16.msra.mxu0 0
      %3019 = vmatprep.subr.bf16.mxu0 0
      %3020 = vmatpush2.bf16.msra.mxu0 0
      %3021 = vmatprep.subr.bf16.mxu0 0
      %3022 = vmatpush2.bf16.msra.mxu0 0
      %3023 = vmatprep.subr.bf16.mxu0 0
      %3024 = vmatpush2.bf16.msra.mxu0 0
      %3025 = vmatprep.subr.bf16.mxu0 0
      %3026 = vmatpush2.bf16.msra.mxu0 0
      %3027 = vmatprep.mubr.bf16.mxu0 0
      %3028 = vmatmul.mubr.bf16.gmra.mxu0 %v2777
      %v3029 = vpop.f32.mrf.mxu0
      %v3030 = vadd.f32 0.0, %v3029
      %v3031 = vpop.f32.mrf.mxu0
      %v3032 = vadd.f32 0.0, %v3031
      %v3033 = vpop.f32.mrf.mxu0
      %v3034 = vadd.f32 0.0, %v3033
      %v3035 = vpop.f32.mrf.mxu0
      %v3036 = vadd.f32 0.0, %v3035
      %3037 = vdwg.mxu0
      %3038 = vmatprep.subr.bf16.mxu0 %v2962
      %3039 = vmatpush1.bf16.msra.mxu0 %v2961
      %3040 = vmatprep.subr.bf16.mxu0 %v2958
      %3041 = vmatpush1.bf16.msra.mxu0 %v2957
      %3042 = vmatprep.subr.bf16.mxu0 %v2954
      %3043 = vmatpush1.bf16.msra.mxu0 %v2953
      %3044 = vmatprep.subr.bf16.mxu0 %v2950
      %3045 = vmatpush1.bf16.msra.mxu0 %v2949
      %3046 = vmatprep.subr.bf16.mxu0 %v2946
      %3047 = vmatpush1.bf16.msra.mxu0 %v2945
      %3048 = vmatprep.subr.bf16.mxu0 %v2942
      %3049 = vmatpush1.bf16.msra.mxu0 %v2941
      %3050 = vmatprep.subr.bf16.mxu0 %v2938
      %3051 = vmatpush1.bf16.msra.mxu0 %v2937
      %3052 = vmatprep.subr.bf16.mxu0 %v2934
      %3053 = vmatpush1.bf16.msra.mxu0 %v2933
      %3054 = vmatprep.subr.bf16.mxu0 0
      %3055 = vmatpush2.bf16.msra.mxu0 0
      %3056 = vmatprep.subr.bf16.mxu0 0
      %3057 = vmatpush2.bf16.msra.mxu0 0
      %3058 = vmatprep.subr.bf16.mxu0 0
      %3059 = vmatpush2.bf16.msra.mxu0 0
      %3060 = vmatprep.subr.bf16.mxu0 0
      %3061 = vmatpush2.bf16.msra.mxu0 0
      %3062 = vmatprep.subr.bf16.mxu0 0
      %3063 = vmatpush2.bf16.msra.mxu0 0
      %3064 = vmatprep.subr.bf16.mxu0 0
      %3065 = vmatpush2.bf16.msra.mxu0 0
      %3066 = vmatprep.subr.bf16.mxu0 0
      %3067 = vmatpush2.bf16.msra.mxu0 0
      %3068 = vmatprep.subr.bf16.mxu0 0
      %3069 = vmatpush2.bf16.msra.mxu0 0
      %3070 = vmatprep.mubr.bf16.mxu0 0
      %3071 = vmatmul.mubr.bf16.gmra.mxu0 %v2777
      %v3072 = vpop.f32.mrf.mxu0
      %v3073 = vadd.f32 0.0, %v3072
      %v3074 = vpop.f32.mrf.mxu0
      %v3075 = vadd.f32 0.0, %v3074
      %v3076 = vpop.f32.mrf.mxu0
      %v3077 = vadd.f32 0.0, %v3076
      %v3078 = vpop.f32.mrf.mxu0
      %v3079 = vadd.f32 0.0, %v3078
      %3080 = vdwg.mxu0
      %v3081 = vadd.f32 %v2795, %v3030
      %v3082 = vadd.f32 %v2796, %v3032
      %v3083 = vadd.f32 %v2797, %v3073
      %v3084 = vadd.f32 %v2798, %v3075
      %v3085 = vadd.f32 %v2799, %v3034
      %v3086 = vadd.f32 %v2800, %v3036
      %v3087 = vadd.f32 %v2801, %v3077
      %v3088 = vadd.f32 %v2802, %v3079
      %v3089 = vxor.u32 %v3081, 2147483648
      %v3090 = vxor.u32 %v3085, 2147483648
      %v3091 = vmul.f32 %v3089, 1.442695
      %v3092 = vpow.pop %v3091
      %v3093 = vmul.f32 %v3090, 1.442695
      %v3094 = vpow.pop %v3093
      %v3095 = vadd.f32 %v3092, 1.0
      %v3096 = vadd.f32 %v3094, 1.0
      %v3097 = vrcp.pop %v3095
      %v3098 = vmul.f32 1.0, %v3097
      %v3099 = vrcp.pop %v3096
      %v3100 = vmul.f32 1.0, %v3099
      %v3101 = vxor.u32 %v3082, 2147483648
      %v3102 = vxor.u32 %v3086, 2147483648
      %v3103 = vmul.f32 %v3101, 1.442695
      %v3104 = vpow.pop %v3103
      %v3105 = vmul.f32 %v3102, 1.442695
      %v3106 = vpow.pop %v3105
      %v3107 = vadd.f32 %v3104, 1.0
      %v3108 = vadd.f32 %v3106, 1.0
      %v3109 = vrcp.pop %v3107
      %v3110 = vmul.f32 1.0, %v3109
      %v3111 = vrcp.pop %v3108
      %v3112 = vmul.f32 1.0, %v3111
      %v3113 = vtanh.pop %v3083
      %v3114 = vtanh.pop %v3087
      %v3115 = vxor.u32 %v3084, 2147483648
      %v3116 = vxor.u32 %v3088, 2147483648
      %v3117 = vmul.f32 %v3115, 1.442695
      %v3118 = vpow.pop %v3117
      %v3119 = vmul.f32 %v3116, 1.442695
      %v3120 = vpow.pop %v3119
      %v3121 = vadd.f32 %v3118, 1.0
      %v3122 = vadd.f32 %v3120, 1.0
      %v3123 = vrcp.pop %v3121
      %v3124 = vmul.f32 1.0, %v3123
      %v3125 = vrcp.pop %v3122
      %v3126 = vmul.f32 1.0, %v3125
      %v3127 = vmul.f32 %v3110, %v2771
      %v3128 = vmul.f32 %v3112, %v2772
      %v3129 = vmul.f32 %v3098, %v3113
      %v3130 = vmul.f32 %v3100, %v3114
      %v3131 = vadd.f32 %v3127, %v3129
      %v3132 = vadd.f32 %v3128, %v3130
      %v3133 = vtanh.pop %v3131
      %v3134 = vtanh.pop %v3132
      %v3135 = vmul.f32 %v3124, %v3133
      %v3136 = vmul.f32 %v3126, %v3134
      %v3137 = vpack.c.bf16 %v3136, %v3135
      %v3139 = vunpack.c.l.b16 %v3137
      %v3140 = vunpack.c.h.b16 %v3137
      %v3141 = vpack.c.b16 %v3139, %v3139
      %v3142 = vpack.c.b16 %v3140, %v3140
      %s3145 = smul.u32 %s2791, 2
      %s3146 = smul.addr %s3145, 4
      %s3147 = scalar_lea.vmem %s250, %s3146
      %3148 = vst [vmem:[%s3147] sm:$0xf] %v3141
      %3149 = vst [vmem:[%s3147 + $0x4] sm:$0xf] %v3142
      %3150 = vst [vmem:[%s258] sm:$0xff] %v3135
      %3151 = vst [vmem:[%s258 + $0x8] sm:$0xff] %v3136
      %3152 = vst [vmem:[%s261] sm:$0xff] %v3131
      %3153 = vst [vmem:[%s261 + $0x8] sm:$0xff] %v3132
      %s3154 = smul.u32 %s18, 2
      %s3155 = ssub.s32 0, %s3154
      %s3156 = smul.u32 %s17, %s3155
      %s3157 = sadd.s32 %s18, %s3156
      %s3158 = smul.u32 8, %s3157
      %p3159 = scmp.lt.s32.totalorder %s17, 1
      %s3160 = scalar_select %p3159, %s17, 1
      %p3161 = scmp.lt.s32.totalorder %s3158, 7
      %s3162 = scalar_select %p3161, %s3158, 7
      %s3163 = smul.addr %s3162, 2
      %s3164 = smul.addr %s3160, 16
      %s3165 = sadd.s32 %s3163, %s3164
      %s3166 = smul.addr %s3165, 4
      %s3167 = scalar_lea.vmem %s2, %s3166
      // Predicated region
      $region29: #{lstm_net_forward.2} parent=27 // pred_check
        %p3168 = pneg %p115
      $region30: #{lstm_net_forward.2} parent=27 // pred_check_branch
        %3170 = sbr.rel (%p3168) target = $region32
      $region31: #{lstm_net_forward.2} parent=27 // pred_region
        %s3171 = smul.u32 %s18, 2
        %s3172 = ssub.s32 0, %s3171
        %s3173 = smul.u32 %s17, %s3172
        %s3174 = sadd.s32 %s18, %s3173
        %s3175 = smul.u32 8, %s3174
      $region32: #{lstm_net_forward.2} parent=27 // pred_fallthru
        _
    $region28: #{lstm_net_forward.2} parent=5 // pred_fallthru
      _
    %p3176 = scmp.le.s32.totalorder 2, %s8
    // Predicated region
    $region33: #{lstm_net_forward.2} parent=5 // pred_check
      %p3177 = pneg %p3176
    $region34: #{lstm_net_forward.2} parent=5 // pred_check_branch
      %3179 = sbr.rel (%p3177) target = $region36
    $region35: #{lstm_net_forward.2} parent=5 // pred_region
      %s3180 = ssub.s32 %s8, 2
      // Predicated region
      $region37: #{lstm_net_forward.2} parent=35 // pred_check
        %p3181 = pneg %p121
      $region38: #{lstm_net_forward.2} parent=35 // pred_check_branch
        %3183 = sbr.rel (%p3181) target = $region40
      $region39: #{lstm_net_forward.2} parent=35 // pred_region
        %s3184 = smul.u32 %s20, 2
        %s3185 = ssub.s32 0, %s3184
        %s3186 = smul.u32 %s19, %s3185
        %s3187 = sadd.s32 %s20, %s3186
        %s3188 = smul.u32 8, %s3187
        %p3189 = scmp.lt.s32.totalorder %s19, 1
        %s3190 = scalar_select %p3189, %s19, 1
        %p3191 = scmp.lt.s32.totalorder %s3188, 7
        %s3192 = scalar_select %p3191, %s3188, 7
        %s3193 = smul.addr %s3192, 2
        %s3194 = smul.addr %s3190, 16
        %s3195 = sadd.s32 %s3193, %s3194
        %s3196 = smul.addr %s3195, 4
        %s3197 = scalar_lea.vmem %s2, %s3196
      $region40: #{lstm_net_forward.2} parent=35 // pred_fallthru
        _
    $region36: #{lstm_net_forward.2} parent=5 // pred_fallthru
      _
  $region6: #{lstm_net_forward.2} parent=0 // loop_footer
    %s12 = sadd.s32 1, %s8
  $region7: #{lstm_net_forward.2} parent=0 // loop_footer_branch
    %7 = sbr.rel target = $region3
  $region8: #{lstm_net_forward.2} parent=0 // loop_exit
    _

</llo_original>
